<compile_context>
chip_gen: v5e
topology: v5e:2x2
jax: 0.10.0
libtpu: 0.0.40
codegen_flags: <defaults>
</compile_context>

<pallas_src>
import functools

import jax
import jax.numpy as jnp
from jax import lax
from jax.experimental import pallas as pl
from jax.experimental.pallas import tpu as pltpu

_BN_EPS = 1e-5


def _conv_bn_relu(h, w_ref, eps):
    """1x1 conv (bf16 MXU matmul, f32 accumulation) + BatchNorm (train-mode
    batch statistics over all B*H*W rows, gamma=1, beta=0) + ReLU."""
    y = jnp.dot(h.astype(jnp.bfloat16), w_ref[...].astype(jnp.bfloat16),
                preferred_element_type=jnp.float32)
    mean = jnp.mean(y, axis=0, keepdims=True)
    var = jnp.mean(jnp.square(y - mean), axis=0, keepdims=True)
    return jnp.maximum((y - mean) * lax.rsqrt(var + eps), 0.0)


# ---------------------------------------------------------------------------
# Single fused kernel: ChannelAttention gate -> Q/K/V projections -> attention
# (QK^T + RPE bias + softmax + P@V) -> out-projection.
# ---------------------------------------------------------------------------
def _fused_kernel(x_ref, lutg_ref, ca_w1_ref, ca_w2_ref, *refs,
                  nq, nk, nv, no, batch, seq, ct, scale, eps):
    wq = refs[0:nq]
    wk = refs[nq:nq + nk]
    wv = refs[nq + nk:nq + nk + nv]
    wo = refs[nq + nk + nv:nq + nk + nv + no]
    o_ref = refs[nq + nk + nv + no]
    qin_scr, q_scr, kt_scr, v_scr, ctx_scr = refs[nq + nk + nv + no + 1:]

    # ---- ChannelAttention gate + gated query input (per batch, in-kernel) --
    # Replaces a second pre-multiplied (B*L, C) input stream and ~8 XLA ops.
    def _fc(z):
        h1 = jnp.maximum(jnp.dot(z, ca_w1_ref[...],
                                 preferred_element_type=jnp.float32), 0.0)
        return jnp.dot(h1, ca_w2_ref[...], preferred_element_type=jnp.float32)

    for b in range(batch):                      # batch is tiny; static unroll
        lo = b * seq
        xb = x_ref[lo:lo + seq, :]              # (L, C)
        avg = jnp.mean(xb, axis=0, keepdims=True)
        mx = jnp.max(xb, axis=0, keepdims=True)
        z = _fc(avg) + _fc(mx)                  # (1, C)
        gate = 1.0 / (1.0 + jnp.exp(-z))        # sigmoid, hand-rolled
        qin_scr[lo:lo + seq, :] = xb * gate     # gated query input

    # ---- projection stacks (BN statistics are global over B*H*W rows) ------
    def stack(h, ws):
        for w_ref in ws:
            h = _conv_bn_relu(h, w_ref, eps)
        return h

    # Fold the softmax scale Ct^-0.5 into Q once: it then multiplies both
    # QK^T and the q-dependent RPE bias, exactly as the reference.
    q = stack(qin_scr[...], wq) * scale         # (B*L, Ct)
    k = stack(x_ref[...], wk)                   # (B*L, Ct)
    v = stack(x_ref[...], wv)                   # (B*L, Ct)

    q_scr[...] = q
    kt_scr[...] = jnp.transpose(k)              # K transposed ONCE -> (Ct, B*L)
    v_scr[...] = v

    # ---- attention per batch (context written to VMEM scratch) -------------
    for b in range(batch):
        lo = b * seq
        qb = q_scr[lo:lo + seq, :]              # (L, Ct) f32, scale folded
        ktb = kt_scr[:, lo:lo + seq]            # (Ct, L)
        vb = v_scr[lo:lo + seq, :]              # (L, Ct)

        # similarity: natural (q, d) @ (d, k) contraction (no per-use transpose)
        s = jnp.dot(qb.astype(jnp.bfloat16), ktb.astype(jnp.bfloat16),
                    preferred_element_type=jnp.float32)          # (L, L)

        # relative-position bias: pos[i, j] = sum_d qb[i, d] * lutg[d, i, j]
        # (Ct-term VPU MAC; keeps the EUP/MXU free and needs no gather)
        for d in range(ct):
            s = s + qb[:, d:d + 1] * lutg_ref[d]

        # softmax over keys, kept entirely in vregs
        m = jnp.max(s, axis=-1, keepdims=True)
        p = jnp.exp(s - m)
        p = p * pl.reciprocal(jnp.sum(p, axis=-1, keepdims=True), approx=True)

        ctx_scr[lo:lo + seq, :] = jnp.dot(p.astype(jnp.bfloat16),
                                          vb.astype(jnp.bfloat16),
                                          preferred_element_type=jnp.float32)

    # ---- out-projection (global BN stats) + (B, C_out, L) output -----------
    h = ctx_scr[...]                            # (B*L, Ct)
    for w_ref in wo:
        h = _conv_bn_relu(h, w_ref, eps)        # (B*L, C_out)

    ht = jnp.transpose(h)                       # (C_out, B*L)
    for b in range(batch):
        o_ref[b] = ht[:, b * seq:(b + 1) * seq]  # (C_out, L) per-batch slab


def fused_forward(x2d, lutg, ca_w1, ca_w2, wq, wk, wv, wo, *, batch, seq, scale):
    n, _ = x2d.shape
    ct = wq[-1].shape[1]
    c_out = wo[-1].shape[1]

    kernel = functools.partial(
        _fused_kernel, nq=len(wq), nk=len(wk), nv=len(wv), no=len(wo),
        batch=batch, seq=seq, ct=ct, scale=scale, eps=_BN_EPS)

    # Advisory cost estimate so XLA can schedule the remaining glue around us.
    flops = 0
    for w in (*wq, *wk, *wv, *wo):
        flops += 2 * n * w.shape[0] * w.shape[1]
    flops += batch * (4 * seq * seq * ct + 2 * seq * seq * ct)   # QK^T, P@V, bias MAC
    flops += batch * 6 * seq * seq                               # softmax arithmetic
    transcendentals = batch * seq * seq                          # exp
    bytes_accessed = 4 * (x2d.size + lutg.size + ca_w1.size + ca_w2.size
                          + sum(w.size for w in (*wq, *wk, *wv, *wo))
                          + batch * c_out * seq)

    return pl.pallas_call(
        kernel,
        out_shape=jax.ShapeDtypeStruct((batch, c_out, seq), jnp.float32),
        scratch_shapes=[
            pltpu.VMEM((n, x2d.shape[1]), jnp.float32),  # gated query input
            pltpu.VMEM((n, ct), jnp.float32),            # Q (scale folded)
            pltpu.VMEM((ct, n), jnp.float32),            # K^T (lane-dense)
            pltpu.VMEM((n, ct), jnp.float32),            # V
            pltpu.VMEM((n, ct), jnp.float32),            # context
        ],
        compiler_params=pltpu.CompilerParams(vmem_limit_bytes=64 * 1024 * 1024),
        cost_estimate=pl.CostEstimate(flops=flops,
                                      transcendentals=transcendentals,
                                      bytes_accessed=bytes_accessed),
    )(x2d, lutg, ca_w1, ca_w2, *wq, *wk, *wv, *wo)


# ---------------------------------------------------------------------------
# Plain-JAX glue (layout plumbing + static parameter-side RPE table only)
# ---------------------------------------------------------------------------
def relative_position_index(H, W):
    """Postion_RPE.get_index(): relative_position_index of shape (L, L)."""
    ch = jnp.arange(H)
    cw = jnp.arange(W)
    coords = jnp.stack(jnp.meshgrid(ch, cw, indexing="ij"))      # (2, H, W)
    cf = coords.reshape(2, -1)                                   # (2, L)
    rel = cf[:, :, None] - cf[:, None, :]                        # (2, L, L)
    rel = jnp.transpose(rel, (1, 2, 0))
    r0 = (rel[..., 0] + H - 1) * (2 * W - 1)
    r1 = rel[..., 1] + W - 1
    return (r0 + r1).astype(jnp.int32)                           # (L, L)


def self_attention_block2(params, query_feats):
    """Forward pass of SelfAttentionBlock2.  query_feats: (B, C, H, W) NCHW."""
    B, C, H, W = query_feats.shape
    L = H * W
    Ct = params["query"][0].shape[1]
    C_out = params["out"][-1].shape[1]

    x2d = jnp.transpose(query_feats.reshape(B, C, L), (0, 2, 1)).reshape(B * L, C)

    # Static relative-bias table gathered from the PARAMETER (not from
    # activations): lutg[d, i, j] = lut[d, rel_idx[i, j]].  Batch-independent.
    rel_idx = relative_position_index(H, W)                      # (L, L)
    lutg = jnp.take(params["lut"], rel_idx, axis=1)              # (Ct, L, L)

    # Zero-pad the ChannelAttention hidden dim (C//16) to >= 8 for friendlier
    # tiling; exact (relu(0)=0 and the padded rows of w2 are zero).
    w1, w2 = params["ca_w1"], params["ca_w2"]
    hid = w1.shape[1]
    hp = max(8, -(-hid // 8) * 8)
    w1 = jnp.pad(w1, ((0, 0), (0, hp - hid)))
    w2 = jnp.pad(w2, ((0, hp - hid), (0, 0)))

    out3 = fused_forward(x2d, lutg, w1, w2,
                         params["query"], params["key"], params["value"],
                         params["out"],
                         batch=B, seq=L, scale=float(Ct) ** -0.5)
    # Kernel already emits (B, C_out, L): no trailing transpose needed.
    return out3.reshape(B, C_out, H, W)


def init_params(key, query_in_channels, transform_channels, out_channels,
                key_query_num_convs, value_out_num_convs, feature_size):
    H, W = feature_size
    num_buckets = (2 * H - 1) * (2 * W - 1)
    keys = iter(jax.random.split(key, 32))

    def w(cin, cout, std=0.02):
        return std * jax.random.normal(next(keys), (cin, cout), jnp.float32)

    def stack(cin, cout, n):
        dims = [cin] + [cout] * n
        return [w(dims[i], dims[i + 1]) for i in range(n)]

    return {
        "query": stack(query_in_channels, transform_channels, key_query_num_convs),
        "key": stack(query_in_channels, transform_channels, key_query_num_convs),
        "value": stack(query_in_channels, transform_channels, value_out_num_convs),
        "out": stack(transform_channels, out_channels, value_out_num_convs),
        # Postion_RPE lookup table: (dim, num_buckets), trunc_normal(std=0.02)
        "lut": 0.02 * jax.random.normal(next(keys),
                                        (transform_channels, num_buckets),
                                        jnp.float32),
        # ChannelAttention FC (ratio=16): Conv(C, C//16) / Conv(C//16, C), no bias
        "ca_w1": w(query_in_channels, query_in_channels // 16),
        "ca_w2": w(query_in_channels // 16, query_in_channels),
    }


if __name__ == "__main__":
    # Small shapes consistent with the module: channels = 32 (>= 16 for the
    # ChannelAttention ratio), feature_size = (8, 8) -> L = 64.
    B, C, H, W = 2, 32, 8, 8
    Ct, C_out = 16, 32

    root = jax.random.PRNGKey(0)
    kp, kx = jax.random.split(root)
    params = init_params(kp, query_in_channels=C, transform_channels=Ct,
                         out_channels=C_out, key_query_num_convs=2,
                         value_out_num_convs=1, feature_size=(H, W))
    x = jax.random.normal(kx, (B, C, H, W), jnp.float32)

    y = jax.jit(self_attention_block2)(params, x)
    jax.block_until_ready(y)

    assert y.shape == (B, C_out, H, W), y.shape
    assert bool(jnp.all(jnp.isfinite(y)))
    print("KERNEL_OK")
</pallas_src>

<mosaic_0001>
module attributes {stable_mosaic.version = 11 : i64} {
  func.func @_fused_kernel(%arg0: memref<128x32xf32, #tpu.memory_space<vmem>>, %arg1: memref<16x64x64xf32, #tpu.memory_space<vmem>>, %arg2: memref<32x8xf32, #tpu.memory_space<vmem>>, %arg3: memref<8x32xf32, #tpu.memory_space<vmem>>, %arg4: memref<32x16xf32, #tpu.memory_space<vmem>>, %arg5: memref<16x16xf32, #tpu.memory_space<vmem>>, %arg6: memref<32x16xf32, #tpu.memory_space<vmem>>, %arg7: memref<16x16xf32, #tpu.memory_space<vmem>>, %arg8: memref<32x16xf32, #tpu.memory_space<vmem>>, %arg9: memref<16x32xf32, #tpu.memory_space<vmem>>, %arg10: memref<2x32x64xf32, #tpu.memory_space<vmem>>, %arg11: memref<128x32xf32, #tpu.memory_space<vmem>>, %arg12: memref<128x16xf32, #tpu.memory_space<vmem>>, %arg13: memref<16x128xf32, #tpu.memory_space<vmem>>, %arg14: memref<128x16xf32, #tpu.memory_space<vmem>>, %arg15: memref<128x16xf32, #tpu.memory_space<vmem>>) attributes {dimension_semantics = [], scalar_prefetch = 0 : i64, scratch_operands = 5 : i64, tpu.core_type = #tpu.core_type<tc>} {
    %c0 = arith.constant 0 : index
    %c0_0 = arith.constant 0 : index
    %0 = vector.load %arg0[%c0, %c0_0] : memref<128x32xf32, #tpu.memory_space<vmem>>, vector<64x32xf32>
    %cst = arith.constant dense<0.000000e+00> : vector<32xf32>
    %1 = vector.multi_reduction <add>, %0, %cst [0] : vector<64x32xf32> to vector<32xf32>
    %2 = vector.shape_cast %1 : vector<32xf32> to vector<1x32xf32>
    %cst_1 = arith.constant 6.400000e+01 : f32
    %3 = vector.broadcast %cst_1 : f32 to vector<1x32xf32>
    %4 = arith.divf %2, %3 : vector<1x32xf32>
    %cst_2 = arith.constant dense<0xFF800000> : vector<32xf32>
    %5 = vector.multi_reduction <maximumf>, %0, %cst_2 [0] : vector<64x32xf32> to vector<32xf32>
    %6 = vector.shape_cast %5 : vector<32xf32> to vector<1x32xf32>
    %c0_3 = arith.constant 0 : index
    %c0_4 = arith.constant 0 : index
    %7 = vector.load %arg2[%c0_3, %c0_4] : memref<32x8xf32, #tpu.memory_space<vmem>>, vector<32x8xf32>
    %cst_5 = arith.constant dense<0.000000e+00> : vector<1x8xf32>
    %8 = tpu.matmul %4, %7, %cst_5 {dimension_numbers = #tpu.dot_dimension_numbers<[1], [0], [0], [1], [0, 0, 1, 1], [], []>} : vector<1x32xf32>, vector<32x8xf32>, vector<1x8xf32> -> vector<1x8xf32>
    %cst_6 = arith.constant 0.000000e+00 : f32
    %9 = vector.broadcast %cst_6 : f32 to vector<1x8xf32>
    %10 = arith.maximumf %8, %9 : vector<1x8xf32>
    %c0_7 = arith.constant 0 : index
    %c0_8 = arith.constant 0 : index
    %11 = vector.load %arg3[%c0_7, %c0_8] : memref<8x32xf32, #tpu.memory_space<vmem>>, vector<8x32xf32>
    %cst_9 = arith.constant dense<0.000000e+00> : vector<1x32xf32>
    %12 = tpu.matmul %10, %11, %cst_9 {dimension_numbers = #tpu.dot_dimension_numbers<[1], [0], [0], [1], [0, 0, 1, 1], [], []>} : vector<1x8xf32>, vector<8x32xf32>, vector<1x32xf32> -> vector<1x32xf32>
    %c0_10 = arith.constant 0 : index
    %c0_11 = arith.constant 0 : index
    %13 = vector.load %arg2[%c0_10, %c0_11] : memref<32x8xf32, #tpu.memory_space<vmem>>, vector<32x8xf32>
    %cst_12 = arith.constant dense<0.000000e+00> : vector<1x8xf32>
    %14 = tpu.matmul %6, %13, %cst_12 {dimension_numbers = #tpu.dot_dimension_numbers<[1], [0], [0], [1], [0, 0, 1, 1], [], []>} : vector<1x32xf32>, vector<32x8xf32>, vector<1x8xf32> -> vector<1x8xf32>
    %cst_13 = arith.constant 0.000000e+00 : f32
    %15 = vector.broadcast %cst_13 : f32 to vector<1x8xf32>
    %16 = arith.maximumf %14, %15 : vector<1x8xf32>
    %c0_14 = arith.constant 0 : index
    %c0_15 = arith.constant 0 : index
    %17 = vector.load %arg3[%c0_14, %c0_15] : memref<8x32xf32, #tpu.memory_space<vmem>>, vector<8x32xf32>
    %cst_16 = arith.constant dense<0.000000e+00> : vector<1x32xf32>
    %18 = tpu.matmul %16, %17, %cst_16 {dimension_numbers = #tpu.dot_dimension_numbers<[1], [0], [0], [1], [0, 0, 1, 1], [], []>} : vector<1x8xf32>, vector<8x32xf32>, vector<1x32xf32> -> vector<1x32xf32>
    %19 = arith.addf %12, %18 : vector<1x32xf32>
    %cst_17 = arith.constant 0.000000e+00 : f32
    %20 = vector.broadcast %cst_17 : f32 to vector<1x32xf32>
    %21 = arith.subf %20, %19 : vector<1x32xf32>
    %22 = math.exp %21 : vector<1x32xf32>
    %cst_18 = arith.constant 1.000000e+00 : f32
    %23 = vector.broadcast %cst_18 : f32 to vector<1x32xf32>
    %24 = arith.addf %23, %22 : vector<1x32xf32>
    %cst_19 = arith.constant 1.000000e+00 : f32
    %25 = vector.broadcast %cst_19 : f32 to vector<1x32xf32>
    %26 = arith.divf %25, %24 : vector<1x32xf32>
    %27 = vector.broadcast %26 : vector<1x32xf32> to vector<64x32xf32>
    %28 = arith.mulf %0, %27 : vector<64x32xf32>
    %c0_20 = arith.constant 0 : index
    %c0_21 = arith.constant 0 : index
    %29 = vector.load %arg11[%c0_20, %c0_21] : memref<128x32xf32, #tpu.memory_space<vmem>>, vector<64x32xf32>
    tpu.vector_store %arg11[%c0_20, %c0_21], %28 {strides = array<i32>} : memref<128x32xf32, #tpu.memory_space<vmem>>, vector<64x32xf32>,
    %c64 = arith.constant 64 : index
    %c0_22 = arith.constant 0 : index
    %30 = vector.load %arg0[%c64, %c0_22] : memref<128x32xf32, #tpu.memory_space<vmem>>, vector<64x32xf32>
    %cst_23 = arith.constant dense<0.000000e+00> : vector<32xf32>
    %31 = vector.multi_reduction <add>, %30, %cst_23 [0] : vector<64x32xf32> to vector<32xf32>
    %32 = vector.shape_cast %31 : vector<32xf32> to vector<1x32xf32>
    %cst_24 = arith.constant 6.400000e+01 : f32
    %33 = vector.broadcast %cst_24 : f32 to vector<1x32xf32>
    %34 = arith.divf %32, %33 : vector<1x32xf32>
    %cst_25 = arith.constant dense<0xFF800000> : vector<32xf32>
    %35 = vector.multi_reduction <maximumf>, %30, %cst_25 [0] : vector<64x32xf32> to vector<32xf32>
    %36 = vector.shape_cast %35 : vector<32xf32> to vector<1x32xf32>
    %c0_26 = arith.constant 0 : index
    %c0_27 = arith.constant 0 : index
    %37 = vector.load %arg2[%c0_26, %c0_27] : memref<32x8xf32, #tpu.memory_space<vmem>>, vector<32x8xf32>
    %cst_28 = arith.constant dense<0.000000e+00> : vector<1x8xf32>
    %38 = tpu.matmul %34, %37, %cst_28 {dimension_numbers = #tpu.dot_dimension_numbers<[1], [0], [0], [1], [0, 0, 1, 1], [], []>} : vector<1x32xf32>, vector<32x8xf32>, vector<1x8xf32> -> vector<1x8xf32>
    %cst_29 = arith.constant 0.000000e+00 : f32
    %39 = vector.broadcast %cst_29 : f32 to vector<1x8xf32>
    %40 = arith.maximumf %38, %39 : vector<1x8xf32>
    %c0_30 = arith.constant 0 : index
    %c0_31 = arith.constant 0 : index
    %41 = vector.load %arg3[%c0_30, %c0_31] : memref<8x32xf32, #tpu.memory_space<vmem>>, vector<8x32xf32>
    %cst_32 = arith.constant dense<0.000000e+00> : vector<1x32xf32>
    %42 = tpu.matmul %40, %41, %cst_32 {dimension_numbers = #tpu.dot_dimension_numbers<[1], [0], [0], [1], [0, 0, 1, 1], [], []>} : vector<1x8xf32>, vector<8x32xf32>, vector<1x32xf32> -> vector<1x32xf32>
    %c0_33 = arith.constant 0 : index
    %c0_34 = arith.constant 0 : index
    %43 = vector.load %arg2[%c0_33, %c0_34] : memref<32x8xf32, #tpu.memory_space<vmem>>, vector<32x8xf32>
    %cst_35 = arith.constant dense<0.000000e+00> : vector<1x8xf32>
    %44 = tpu.matmul %36, %43, %cst_35 {dimension_numbers = #tpu.dot_dimension_numbers<[1], [0], [0], [1], [0, 0, 1, 1], [], []>} : vector<1x32xf32>, vector<32x8xf32>, vector<1x8xf32> -> vector<1x8xf32>
    %cst_36 = arith.constant 0.000000e+00 : f32
    %45 = vector.broadcast %cst_36 : f32 to vector<1x8xf32>
    %46 = arith.maximumf %44, %45 : vector<1x8xf32>
    %c0_37 = arith.constant 0 : index
    %c0_38 = arith.constant 0 : index
    %47 = vector.load %arg3[%c0_37, %c0_38] : memref<8x32xf32, #tpu.memory_space<vmem>>, vector<8x32xf32>
    %cst_39 = arith.constant dense<0.000000e+00> : vector<1x32xf32>
    %48 = tpu.matmul %46, %47, %cst_39 {dimension_numbers = #tpu.dot_dimension_numbers<[1], [0], [0], [1], [0, 0, 1, 1], [], []>} : vector<1x8xf32>, vector<8x32xf32>, vector<1x32xf32> -> vector<1x32xf32>
    %49 = arith.addf %42, %48 : vector<1x32xf32>
    %cst_40 = arith.constant 0.000000e+00 : f32
    %50 = vector.broadcast %cst_40 : f32 to vector<1x32xf32>
    %51 = arith.subf %50, %49 : vector<1x32xf32>
    %52 = math.exp %51 : vector<1x32xf32>
    %cst_41 = arith.constant 1.000000e+00 : f32
    %53 = vector.broadcast %cst_41 : f32 to vector<1x32xf32>
    %54 = arith.addf %53, %52 : vector<1x32xf32>
    %cst_42 = arith.constant 1.000000e+00 : f32
    %55 = vector.broadcast %cst_42 : f32 to vector<1x32xf32>
    %56 = arith.divf %55, %54 : vector<1x32xf32>
    %57 = vector.broadcast %56 : vector<1x32xf32> to vector<64x32xf32>
    %58 = arith.mulf %30, %57 : vector<64x32xf32>
    %c64_43 = arith.constant 64 : index
    %c0_44 = arith.constant 0 : index
    %59 = vector.load %arg11[%c64_43, %c0_44] : memref<128x32xf32, #tpu.memory_space<vmem>>, vector<64x32xf32>
    tpu.vector_store %arg11[%c64_43, %c0_44], %58 {strides = array<i32>} : memref<128x32xf32, #tpu.memory_space<vmem>>, vector<64x32xf32>,
    %c0_45 = arith.constant 0 : index
    %c0_46 = arith.constant 0 : index
    %60 = vector.load %arg11[%c0_45, %c0_46] : memref<128x32xf32, #tpu.memory_space<vmem>>, vector<128x32xf32>
    %61 = arith.truncf %60 : vector<128x32xf32> to vector<128x32xbf16>
    %c0_47 = arith.constant 0 : index
    %c0_48 = arith.constant 0 : index
    %62 = vector.load %arg4[%c0_47, %c0_48] : memref<32x16xf32, #tpu.memory_space<vmem>>, vector<32x16xf32>
    %63 = arith.truncf %62 : vector<32x16xf32> to vector<32x16xbf16>
    %cst_49 = arith.constant dense<0.000000e+00> : vector<128x16xf32>
    %64 = tpu.matmul %61, %63, %cst_49 {dimension_numbers = #tpu.dot_dimension_numbers<[1], [0], [0], [1], [0, 0, 1, 1], [], []>} : vector<128x32xbf16>, vector<32x16xbf16>, vector<128x16xf32> -> vector<128x16xf32>
    %cst_50 = arith.constant dense<0.000000e+00> : vector<16xf32>
    %65 = vector.multi_reduction <add>, %64, %cst_50 [0] : vector<128x16xf32> to vector<16xf32>
    %66 = vector.shape_cast %65 : vector<16xf32> to vector<1x16xf32>
    %cst_51 = arith.constant 1.280000e+02 : f32
    %67 = vector.broadcast %cst_51 : f32 to vector<1x16xf32>
    %68 = arith.divf %66, %67 : vector<1x16xf32>
    %69 = vector.broadcast %68 : vector<1x16xf32> to vector<128x16xf32>
    %70 = arith.subf %64, %69 : vector<128x16xf32>
    %71 = arith.mulf %70, %70 : vector<128x16xf32>
    %cst_52 = arith.constant dense<0.000000e+00> : vector<16xf32>
    %72 = vector.multi_reduction <add>, %71, %cst_52 [0] : vector<128x16xf32> to vector<16xf32>
    %73 = vector.shape_cast %72 : vector<16xf32> to vector<1x16xf32>
    %cst_53 = arith.constant 1.280000e+02 : f32
    %74 = vector.broadcast %cst_53 : f32 to vector<1x16xf32>
    %75 = arith.divf %73, %74 : vector<1x16xf32>
    %76 = vector.broadcast %68 : vector<1x16xf32> to vector<128x16xf32>
    %77 = arith.subf %64, %76 : vector<128x16xf32>
    %cst_54 = arith.constant 9.99999974E-6 : f32
    %78 = vector.broadcast %cst_54 : f32 to vector<1x16xf32>
    %79 = arith.addf %75, %78 : vector<1x16xf32>
    %80 = math.rsqrt %79 : vector<1x16xf32>
    %81 = vector.broadcast %80 : vector<1x16xf32> to vector<128x16xf32>
    %82 = arith.mulf %77, %81 : vector<128x16xf32>
    %cst_55 = arith.constant 0.000000e+00 : f32
    %83 = vector.broadcast %cst_55 : f32 to vector<128x16xf32>
    %84 = arith.maximumf %82, %83 : vector<128x16xf32>
    %85 = arith.truncf %84 : vector<128x16xf32> to vector<128x16xbf16>
    %c0_56 = arith.constant 0 : index
    %c0_57 = arith.constant 0 : index
    %86 = vector.load %arg5[%c0_56, %c0_57] : memref<16x16xf32, #tpu.memory_space<vmem>>, vector<16x16xf32>
    %87 = arith.truncf %86 : vector<16x16xf32> to vector<16x16xbf16>
    %cst_58 = arith.constant dense<0.000000e+00> : vector<128x16xf32>
    %88 = tpu.matmul %85, %87, %cst_58 {dimension_numbers = #tpu.dot_dimension_numbers<[1], [0], [0], [1], [0, 0, 1, 1], [], []>} : vector<128x16xbf16>, vector<16x16xbf16>, vector<128x16xf32> -> vector<128x16xf32>
    %cst_59 = arith.constant dense<0.000000e+00> : vector<16xf32>
    %89 = vector.multi_reduction <add>, %88, %cst_59 [0] : vector<128x16xf32> to vector<16xf32>
    %90 = vector.shape_cast %89 : vector<16xf32> to vector<1x16xf32>
    %cst_60 = arith.constant 1.280000e+02 : f32
    %91 = vector.broadcast %cst_60 : f32 to vector<1x16xf32>
    %92 = arith.divf %90, %91 : vector<1x16xf32>
    %93 = vector.broadcast %92 : vector<1x16xf32> to vector<128x16xf32>
    %94 = arith.subf %88, %93 : vector<128x16xf32>
    %95 = arith.mulf %94, %94 : vector<128x16xf32>
    %cst_61 = arith.constant dense<0.000000e+00> : vector<16xf32>
    %96 = vector.multi_reduction <add>, %95, %cst_61 [0] : vector<128x16xf32> to vector<16xf32>
    %97 = vector.shape_cast %96 : vector<16xf32> to vector<1x16xf32>
    %cst_62 = arith.constant 1.280000e+02 : f32
    %98 = vector.broadcast %cst_62 : f32 to vector<1x16xf32>
    %99 = arith.divf %97, %98 : vector<1x16xf32>
    %100 = vector.broadcast %92 : vector<1x16xf32> to vector<128x16xf32>
    %101 = arith.subf %88, %100 : vector<128x16xf32>
    %cst_63 = arith.constant 9.99999974E-6 : f32
    %102 = vector.broadcast %cst_63 : f32 to vector<1x16xf32>
    %103 = arith.addf %99, %102 : vector<1x16xf32>
    %104 = math.rsqrt %103 : vector<1x16xf32>
    %105 = vector.broadcast %104 : vector<1x16xf32> to vector<128x16xf32>
    %106 = arith.mulf %101, %105 : vector<128x16xf32>
    %cst_64 = arith.constant 0.000000e+00 : f32
    %107 = vector.broadcast %cst_64 : f32 to vector<128x16xf32>
    %108 = arith.maximumf %106, %107 : vector<128x16xf32>
    %cst_65 = arith.constant 2.500000e-01 : f32
    %109 = vector.broadcast %cst_65 : f32 to vector<128x16xf32>
    %110 = arith.mulf %108, %109 : vector<128x16xf32>
    %c0_66 = arith.constant 0 : index
    %c0_67 = arith.constant 0 : index
    %111 = vector.load %arg0[%c0_66, %c0_67] : memref<128x32xf32, #tpu.memory_space<vmem>>, vector<128x32xf32>
    %112 = arith.truncf %111 : vector<128x32xf32> to vector<128x32xbf16>
    %c0_68 = arith.constant 0 : index
    %c0_69 = arith.constant 0 : index
    %113 = vector.load %arg6[%c0_68, %c0_69] : memref<32x16xf32, #tpu.memory_space<vmem>>, vector<32x16xf32>
    %114 = arith.truncf %113 : vector<32x16xf32> to vector<32x16xbf16>
    %cst_70 = arith.constant dense<0.000000e+00> : vector<128x16xf32>
    %115 = tpu.matmul %112, %114, %cst_70 {dimension_numbers = #tpu.dot_dimension_numbers<[1], [0], [0], [1], [0, 0, 1, 1], [], []>} : vector<128x32xbf16>, vector<32x16xbf16>, vector<128x16xf32> -> vector<128x16xf32>
    %cst_71 = arith.constant dense<0.000000e+00> : vector<16xf32>
    %116 = vector.multi_reduction <add>, %115, %cst_71 [0] : vector<128x16xf32> to vector<16xf32>
    %117 = vector.shape_cast %116 : vector<16xf32> to vector<1x16xf32>
    %cst_72 = arith.constant 1.280000e+02 : f32
    %118 = vector.broadcast %cst_72 : f32 to vector<1x16xf32>
    %119 = arith.divf %117, %118 : vector<1x16xf32>
    %120 = vector.broadcast %119 : vector<1x16xf32> to vector<128x16xf32>
    %121 = arith.subf %115, %120 : vector<128x16xf32>
    %122 = arith.mulf %121, %121 : vector<128x16xf32>
    %cst_73 = arith.constant dense<0.000000e+00> : vector<16xf32>
    %123 = vector.multi_reduction <add>, %122, %cst_73 [0] : vector<128x16xf32> to vector<16xf32>
    %124 = vector.shape_cast %123 : vector<16xf32> to vector<1x16xf32>
    %cst_74 = arith.constant 1.280000e+02 : f32
    %125 = vector.broadcast %cst_74 : f32 to vector<1x16xf32>
    %126 = arith.divf %124, %125 : vector<1x16xf32>
    %127 = vector.broadcast %119 : vector<1x16xf32> to vector<128x16xf32>
    %128 = arith.subf %115, %127 : vector<128x16xf32>
    %cst_75 = arith.constant 9.99999974E-6 : f32
    %129 = vector.broadcast %cst_75 : f32 to vector<1x16xf32>
    %130 = arith.addf %126, %129 : vector<1x16xf32>
    %131 = math.rsqrt %130 : vector<1x16xf32>
    %132 = vector.broadcast %131 : vector<1x16xf32> to vector<128x16xf32>
    %133 = arith.mulf %128, %132 : vector<128x16xf32>
    %cst_76 = arith.constant 0.000000e+00 : f32
    %134 = vector.broadcast %cst_76 : f32 to vector<128x16xf32>
    %135 = arith.maximumf %133, %134 : vector<128x16xf32>
    %136 = arith.truncf %135 : vector<128x16xf32> to vector<128x16xbf16>
    %c0_77 = arith.constant 0 : index
    %c0_78 = arith.constant 0 : index
    %137 = vector.load %arg7[%c0_77, %c0_78] : memref<16x16xf32, #tpu.memory_space<vmem>>, vector<16x16xf32>
    %138 = arith.truncf %137 : vector<16x16xf32> to vector<16x16xbf16>
    %cst_79 = arith.constant dense<0.000000e+00> : vector<128x16xf32>
    %139 = tpu.matmul %136, %138, %cst_79 {dimension_numbers = #tpu.dot_dimension_numbers<[1], [0], [0], [1], [0, 0, 1, 1], [], []>} : vector<128x16xbf16>, vector<16x16xbf16>, vector<128x16xf32> -> vector<128x16xf32>
    %cst_80 = arith.constant dense<0.000000e+00> : vector<16xf32>
    %140 = vector.multi_reduction <add>, %139, %cst_80 [0] : vector<128x16xf32> to vector<16xf32>
    %141 = vector.shape_cast %140 : vector<16xf32> to vector<1x16xf32>
    %cst_81 = arith.constant 1.280000e+02 : f32
    %142 = vector.broadcast %cst_81 : f32 to vector<1x16xf32>
    %143 = arith.divf %141, %142 : vector<1x16xf32>
    %144 = vector.broadcast %143 : vector<1x16xf32> to vector<128x16xf32>
    %145 = arith.subf %139, %144 : vector<128x16xf32>
    %146 = arith.mulf %145, %145 : vector<128x16xf32>
    %cst_82 = arith.constant dense<0.000000e+00> : vector<16xf32>
    %147 = vector.multi_reduction <add>, %146, %cst_82 [0] : vector<128x16xf32> to vector<16xf32>
    %148 = vector.shape_cast %147 : vector<16xf32> to vector<1x16xf32>
    %cst_83 = arith.constant 1.280000e+02 : f32
    %149 = vector.broadcast %cst_83 : f32 to vector<1x16xf32>
    %150 = arith.divf %148, %149 : vector<1x16xf32>
    %151 = vector.broadcast %143 : vector<1x16xf32> to vector<128x16xf32>
    %152 = arith.subf %139, %151 : vector<128x16xf32>
    %cst_84 = arith.constant 9.99999974E-6 : f32
    %153 = vector.broadcast %cst_84 : f32 to vector<1x16xf32>
    %154 = arith.addf %150, %153 : vector<1x16xf32>
    %155 = math.rsqrt %154 : vector<1x16xf32>
    %156 = vector.broadcast %155 : vector<1x16xf32> to vector<128x16xf32>
    %157 = arith.mulf %152, %156 : vector<128x16xf32>
    %cst_85 = arith.constant 0.000000e+00 : f32
    %158 = vector.broadcast %cst_85 : f32 to vector<128x16xf32>
    %159 = arith.maximumf %157, %158 : vector<128x16xf32>
    %c0_86 = arith.constant 0 : index
    %c0_87 = arith.constant 0 : index
    %160 = vector.load %arg0[%c0_86, %c0_87] : memref<128x32xf32, #tpu.memory_space<vmem>>, vector<128x32xf32>
    %161 = arith.truncf %160 : vector<128x32xf32> to vector<128x32xbf16>
    %c0_88 = arith.constant 0 : index
    %c0_89 = arith.constant 0 : index
    %162 = vector.load %arg8[%c0_88, %c0_89] : memref<32x16xf32, #tpu.memory_space<vmem>>, vector<32x16xf32>
    %163 = arith.truncf %162 : vector<32x16xf32> to vector<32x16xbf16>
    %cst_90 = arith.constant dense<0.000000e+00> : vector<128x16xf32>
    %164 = tpu.matmul %161, %163, %cst_90 {dimension_numbers = #tpu.dot_dimension_numbers<[1], [0], [0], [1], [0, 0, 1, 1], [], []>} : vector<128x32xbf16>, vector<32x16xbf16>, vector<128x16xf32> -> vector<128x16xf32>
    %cst_91 = arith.constant dense<0.000000e+00> : vector<16xf32>
    %165 = vector.multi_reduction <add>, %164, %cst_91 [0] : vector<128x16xf32> to vector<16xf32>
    %166 = vector.shape_cast %165 : vector<16xf32> to vector<1x16xf32>
    %cst_92 = arith.constant 1.280000e+02 : f32
    %167 = vector.broadcast %cst_92 : f32 to vector<1x16xf32>
    %168 = arith.divf %166, %167 : vector<1x16xf32>
    %169 = vector.broadcast %168 : vector<1x16xf32> to vector<128x16xf32>
    %170 = arith.subf %164, %169 : vector<128x16xf32>
    %171 = arith.mulf %170, %170 : vector<128x16xf32>
    %cst_93 = arith.constant dense<0.000000e+00> : vector<16xf32>
    %172 = vector.multi_reduction <add>, %171, %cst_93 [0] : vector<128x16xf32> to vector<16xf32>
    %173 = vector.shape_cast %172 : vector<16xf32> to vector<1x16xf32>
    %cst_94 = arith.constant 1.280000e+02 : f32
    %174 = vector.broadcast %cst_94 : f32 to vector<1x16xf32>
    %175 = arith.divf %173, %174 : vector<1x16xf32>
    %176 = vector.broadcast %168 : vector<1x16xf32> to vector<128x16xf32>
    %177 = arith.subf %164, %176 : vector<128x16xf32>
    %cst_95 = arith.constant 9.99999974E-6 : f32
    %178 = vector.broadcast %cst_95 : f32 to vector<1x16xf32>
    %179 = arith.addf %175, %178 : vector<1x16xf32>
    %180 = math.rsqrt %179 : vector<1x16xf32>
    %181 = vector.broadcast %180 : vector<1x16xf32> to vector<128x16xf32>
    %182 = arith.mulf %177, %181 : vector<128x16xf32>
    %cst_96 = arith.constant 0.000000e+00 : f32
    %183 = vector.broadcast %cst_96 : f32 to vector<128x16xf32>
    %184 = arith.maximumf %182, %183 : vector<128x16xf32>
    %c0_97 = arith.constant 0 : index
    %c0_98 = arith.constant 0 : index
    %185 = vector.load %arg12[%c0_97, %c0_98] : memref<128x16xf32, #tpu.memory_space<vmem>>, vector<128x16xf32>
    tpu.vector_store %arg12[%c0_97, %c0_98], %110 {strides = array<i32>} : memref<128x16xf32, #tpu.memory_space<vmem>>, vector<128x16xf32>,
    %186 = tpu.transpose %159, [1, 0] : vector<128x16xf32> -> vector<16x128xf32>
    %c0_99 = arith.constant 0 : index
    %c0_100 = arith.constant 0 : index
    %187 = vector.load %arg13[%c0_99, %c0_100] : memref<16x128xf32, #tpu.memory_space<vmem>>, vector<16x128xf32>
    tpu.vector_store %arg13[%c0_99, %c0_100], %186 {strides = array<i32>} : memref<16x128xf32, #tpu.memory_space<vmem>>, vector<16x128xf32>,
    %c0_101 = arith.constant 0 : index
    %c0_102 = arith.constant 0 : index
    %188 = vector.load %arg14[%c0_101, %c0_102] : memref<128x16xf32, #tpu.memory_space<vmem>>, vector<128x16xf32>
    tpu.vector_store %arg14[%c0_101, %c0_102], %184 {strides = array<i32>} : memref<128x16xf32, #tpu.memory_space<vmem>>, vector<128x16xf32>,
    %c0_103 = arith.constant 0 : index
    %c0_104 = arith.constant 0 : index
    %189 = vector.load %arg12[%c0_103, %c0_104] : memref<128x16xf32, #tpu.memory_space<vmem>>, vector<64x16xf32>
    %c0_105 = arith.constant 0 : index
    %c0_106 = arith.constant 0 : index
    %190 = vector.load %arg13[%c0_105, %c0_106] : memref<16x128xf32, #tpu.memory_space<vmem>>, vector<16x64xf32>
    %c0_107 = arith.constant 0 : index
    %c0_108 = arith.constant 0 : index
    %191 = vector.load %arg14[%c0_107, %c0_108] : memref<128x16xf32, #tpu.memory_space<vmem>>, vector<64x16xf32>
    %192 = arith.truncf %189 : vector<64x16xf32> to vector<64x16xbf16>
    %193 = arith.truncf %190 : vector<16x64xf32> to vector<16x64xbf16>
    %cst_109 = arith.constant dense<0.000000e+00> : vector<64x64xf32>
    %194 = tpu.matmul %192, %193, %cst_109 {dimension_numbers = #tpu.dot_dimension_numbers<[1], [0], [0], [1], [0, 0, 1, 1], [], []>} : vector<64x16xbf16>, vector<16x64xbf16>, vector<64x64xf32> -> vector<64x64xf32>
    %195 = vector.extract_strided_slice %189 {offsets = [0, 0], sizes = [64, 1], strides = [1, 1]} : vector<64x16xf32> to vector<64x1xf32>
    %c0_110 = arith.constant 0 : index
    %c0_111 = arith.constant 0 : index
    %c0_112 = arith.constant 0 : index
    %196 = vector.load %arg1[%c0_110, %c0_111, %c0_112] : memref<16x64x64xf32, #tpu.memory_space<vmem>>, vector<1x64x64xf32>
    %197 = vector.shape_cast %196 : vector<1x64x64xf32> to vector<64x64xf32>
    %198 = vector.broadcast %195 : vector<64x1xf32> to vector<64x64xf32>
    %199 = arith.mulf %198, %197 : vector<64x64xf32>
    %200 = arith.addf %194, %199 : vector<64x64xf32>
    %201 = vector.extract_strided_slice %189 {offsets = [0, 1], sizes = [64, 1], strides = [1, 1]} : vector<64x16xf32> to vector<64x1xf32>
    %c1 = arith.constant 1 : index
    %c0_113 = arith.constant 0 : index
    %c0_114 = arith.constant 0 : index
    %202 = vector.load %arg1[%c1, %c0_113, %c0_114] : memref<16x64x64xf32, #tpu.memory_space<vmem>>, vector<1x64x64xf32>
    %203 = vector.shape_cast %202 : vector<1x64x64xf32> to vector<64x64xf32>
    %204 = vector.broadcast %201 : vector<64x1xf32> to vector<64x64xf32>
    %205 = arith.mulf %204, %203 : vector<64x64xf32>
    %206 = arith.addf %200, %205 : vector<64x64xf32>
    %207 = vector.extract_strided_slice %189 {offsets = [0, 2], sizes = [64, 1], strides = [1, 1]} : vector<64x16xf32> to vector<64x1xf32>
    %c2 = arith.constant 2 : index
    %c0_115 = arith.constant 0 : index
    %c0_116 = arith.constant 0 : index
    %208 = vector.load %arg1[%c2, %c0_115, %c0_116] : memref<16x64x64xf32, #tpu.memory_space<vmem>>, vector<1x64x64xf32>
    %209 = vector.shape_cast %208 : vector<1x64x64xf32> to vector<64x64xf32>
    %210 = vector.broadcast %207 : vector<64x1xf32> to vector<64x64xf32>
    %211 = arith.mulf %210, %209 : vector<64x64xf32>
    %212 = arith.addf %206, %211 : vector<64x64xf32>
    %213 = vector.extract_strided_slice %189 {offsets = [0, 3], sizes = [64, 1], strides = [1, 1]} : vector<64x16xf32> to vector<64x1xf32>
    %c3 = arith.constant 3 : index
    %c0_117 = arith.constant 0 : index
    %c0_118 = arith.constant 0 : index
    %214 = vector.load %arg1[%c3, %c0_117, %c0_118] : memref<16x64x64xf32, #tpu.memory_space<vmem>>, vector<1x64x64xf32>
    %215 = vector.shape_cast %214 : vector<1x64x64xf32> to vector<64x64xf32>
    %216 = vector.broadcast %213 : vector<64x1xf32> to vector<64x64xf32>
    %217 = arith.mulf %216, %215 : vector<64x64xf32>
    %218 = arith.addf %212, %217 : vector<64x64xf32>
    %219 = vector.extract_strided_slice %189 {offsets = [0, 4], sizes = [64, 1], strides = [1, 1]} : vector<64x16xf32> to vector<64x1xf32>
    %c4 = arith.constant 4 : index
    %c0_119 = arith.constant 0 : index
    %c0_120 = arith.constant 0 : index
    %220 = vector.load %arg1[%c4, %c0_119, %c0_120] : memref<16x64x64xf32, #tpu.memory_space<vmem>>, vector<1x64x64xf32>
    %221 = vector.shape_cast %220 : vector<1x64x64xf32> to vector<64x64xf32>
    %222 = vector.broadcast %219 : vector<64x1xf32> to vector<64x64xf32>
    %223 = arith.mulf %222, %221 : vector<64x64xf32>
    %224 = arith.addf %218, %223 : vector<64x64xf32>
    %225 = vector.extract_strided_slice %189 {offsets = [0, 5], sizes = [64, 1], strides = [1, 1]} : vector<64x16xf32> to vector<64x1xf32>
    %c5 = arith.constant 5 : index
    %c0_121 = arith.constant 0 : index
    %c0_122 = arith.constant 0 : index
    %226 = vector.load %arg1[%c5, %c0_121, %c0_122] : memref<16x64x64xf32, #tpu.memory_space<vmem>>, vector<1x64x64xf32>
    %227 = vector.shape_cast %226 : vector<1x64x64xf32> to vector<64x64xf32>
    %228 = vector.broadcast %225 : vector<64x1xf32> to vector<64x64xf32>
    %229 = arith.mulf %228, %227 : vector<64x64xf32>
    %230 = arith.addf %224, %229 : vector<64x64xf32>
    %231 = vector.extract_strided_slice %189 {offsets = [0, 6], sizes = [64, 1], strides = [1, 1]} : vector<64x16xf32> to vector<64x1xf32>
    %c6 = arith.constant 6 : index
    %c0_123 = arith.constant 0 : index
    %c0_124 = arith.constant 0 : index
    %232 = vector.load %arg1[%c6, %c0_123, %c0_124] : memref<16x64x64xf32, #tpu.memory_space<vmem>>, vector<1x64x64xf32>
    %233 = vector.shape_cast %232 : vector<1x64x64xf32> to vector<64x64xf32>
    %234 = vector.broadcast %231 : vector<64x1xf32> to vector<64x64xf32>
    %235 = arith.mulf %234, %233 : vector<64x64xf32>
    %236 = arith.addf %230, %235 : vector<64x64xf32>
    %237 = vector.extract_strided_slice %189 {offsets = [0, 7], sizes = [64, 1], strides = [1, 1]} : vector<64x16xf32> to vector<64x1xf32>
    %c7 = arith.constant 7 : index
    %c0_125 = arith.constant 0 : index
    %c0_126 = arith.constant 0 : index
    %238 = vector.load %arg1[%c7, %c0_125, %c0_126] : memref<16x64x64xf32, #tpu.memory_space<vmem>>, vector<1x64x64xf32>
    %239 = vector.shape_cast %238 : vector<1x64x64xf32> to vector<64x64xf32>
    %240 = vector.broadcast %237 : vector<64x1xf32> to vector<64x64xf32>
    %241 = arith.mulf %240, %239 : vector<64x64xf32>
    %242 = arith.addf %236, %241 : vector<64x64xf32>
    %243 = vector.extract_strided_slice %189 {offsets = [0, 8], sizes = [64, 1], strides = [1, 1]} : vector<64x16xf32> to vector<64x1xf32>
    %c8 = arith.constant 8 : index
    %c0_127 = arith.constant 0 : index
    %c0_128 = arith.constant 0 : index
    %244 = vector.load %arg1[%c8, %c0_127, %c0_128] : memref<16x64x64xf32, #tpu.memory_space<vmem>>, vector<1x64x64xf32>
    %245 = vector.shape_cast %244 : vector<1x64x64xf32> to vector<64x64xf32>
    %246 = vector.broadcast %243 : vector<64x1xf32> to vector<64x64xf32>
    %247 = arith.mulf %246, %245 : vector<64x64xf32>
    %248 = arith.addf %242, %247 : vector<64x64xf32>
    %249 = vector.extract_strided_slice %189 {offsets = [0, 9], sizes = [64, 1], strides = [1, 1]} : vector<64x16xf32> to vector<64x1xf32>
    %c9 = arith.constant 9 : index
    %c0_129 = arith.constant 0 : index
    %c0_130 = arith.constant 0 : index
    %250 = vector.load %arg1[%c9, %c0_129, %c0_130] : memref<16x64x64xf32, #tpu.memory_space<vmem>>, vector<1x64x64xf32>
    %251 = vector.shape_cast %250 : vector<1x64x64xf32> to vector<64x64xf32>
    %252 = vector.broadcast %249 : vector<64x1xf32> to vector<64x64xf32>
    %253 = arith.mulf %252, %251 : vector<64x64xf32>
    %254 = arith.addf %248, %253 : vector<64x64xf32>
    %255 = vector.extract_strided_slice %189 {offsets = [0, 10], sizes = [64, 1], strides = [1, 1]} : vector<64x16xf32> to vector<64x1xf32>
    %c10 = arith.constant 10 : index
    %c0_131 = arith.constant 0 : index
    %c0_132 = arith.constant 0 : index
    %256 = vector.load %arg1[%c10, %c0_131, %c0_132] : memref<16x64x64xf32, #tpu.memory_space<vmem>>, vector<1x64x64xf32>
    %257 = vector.shape_cast %256 : vector<1x64x64xf32> to vector<64x64xf32>
    %258 = vector.broadcast %255 : vector<64x1xf32> to vector<64x64xf32>
    %259 = arith.mulf %258, %257 : vector<64x64xf32>
    %260 = arith.addf %254, %259 : vector<64x64xf32>
    %261 = vector.extract_strided_slice %189 {offsets = [0, 11], sizes = [64, 1], strides = [1, 1]} : vector<64x16xf32> to vector<64x1xf32>
    %c11 = arith.constant 11 : index
    %c0_133 = arith.constant 0 : index
    %c0_134 = arith.constant 0 : index
    %262 = vector.load %arg1[%c11, %c0_133, %c0_134] : memref<16x64x64xf32, #tpu.memory_space<vmem>>, vector<1x64x64xf32>
    %263 = vector.shape_cast %262 : vector<1x64x64xf32> to vector<64x64xf32>
    %264 = vector.broadcast %261 : vector<64x1xf32> to vector<64x64xf32>
    %265 = arith.mulf %264, %263 : vector<64x64xf32>
    %266 = arith.addf %260, %265 : vector<64x64xf32>
    %267 = vector.extract_strided_slice %189 {offsets = [0, 12], sizes = [64, 1], strides = [1, 1]} : vector<64x16xf32> to vector<64x1xf32>
    %c12 = arith.constant 12 : index
    %c0_135 = arith.constant 0 : index
    %c0_136 = arith.constant 0 : index
    %268 = vector.load %arg1[%c12, %c0_135, %c0_136] : memref<16x64x64xf32, #tpu.memory_space<vmem>>, vector<1x64x64xf32>
    %269 = vector.shape_cast %268 : vector<1x64x64xf32> to vector<64x64xf32>
    %270 = vector.broadcast %267 : vector<64x1xf32> to vector<64x64xf32>
    %271 = arith.mulf %270, %269 : vector<64x64xf32>
    %272 = arith.addf %266, %271 : vector<64x64xf32>
    %273 = vector.extract_strided_slice %189 {offsets = [0, 13], sizes = [64, 1], strides = [1, 1]} : vector<64x16xf32> to vector<64x1xf32>
    %c13 = arith.constant 13 : index
    %c0_137 = arith.constant 0 : index
    %c0_138 = arith.constant 0 : index
    %274 = vector.load %arg1[%c13, %c0_137, %c0_138] : memref<16x64x64xf32, #tpu.memory_space<vmem>>, vector<1x64x64xf32>
    %275 = vector.shape_cast %274 : vector<1x64x64xf32> to vector<64x64xf32>
    %276 = vector.broadcast %273 : vector<64x1xf32> to vector<64x64xf32>
    %277 = arith.mulf %276, %275 : vector<64x64xf32>
    %278 = arith.addf %272, %277 : vector<64x64xf32>
    %279 = vector.extract_strided_slice %189 {offsets = [0, 14], sizes = [64, 1], strides = [1, 1]} : vector<64x16xf32> to vector<64x1xf32>
    %c14 = arith.constant 14 : index
    %c0_139 = arith.constant 0 : index
    %c0_140 = arith.constant 0 : index
    %280 = vector.load %arg1[%c14, %c0_139, %c0_140] : memref<16x64x64xf32, #tpu.memory_space<vmem>>, vector<1x64x64xf32>
    %281 = vector.shape_cast %280 : vector<1x64x64xf32> to vector<64x64xf32>
    %282 = vector.broadcast %279 : vector<64x1xf32> to vector<64x64xf32>
    %283 = arith.mulf %282, %281 : vector<64x64xf32>
    %284 = arith.addf %278, %283 : vector<64x64xf32>
    %285 = vector.extract_strided_slice %189 {offsets = [0, 15], sizes = [64, 1], strides = [1, 1]} : vector<64x16xf32> to vector<64x1xf32>
    %c15 = arith.constant 15 : index
    %c0_141 = arith.constant 0 : index
    %c0_142 = arith.constant 0 : index
    %286 = vector.load %arg1[%c15, %c0_141, %c0_142] : memref<16x64x64xf32, #tpu.memory_space<vmem>>, vector<1x64x64xf32>
    %287 = vector.shape_cast %286 : vector<1x64x64xf32> to vector<64x64xf32>
    %288 = vector.broadcast %285 : vector<64x1xf32> to vector<64x64xf32>
    %289 = arith.mulf %288, %287 : vector<64x64xf32>
    %290 = arith.addf %284, %289 : vector<64x64xf32>
    %cst_143 = arith.constant dense<0xFF800000> : vector<64xf32>
    %291 = vector.multi_reduction <maximumf>, %290, %cst_143 [1] : vector<64x64xf32> to vector<64xf32>
    %292 = vector.shape_cast %291 : vector<64xf32> to vector<64x1xf32>
    %293 = vector.broadcast %292 : vector<64x1xf32> to vector<64x64xf32>
    %294 = arith.subf %290, %293 : vector<64x64xf32>
    %295 = math.exp %294 : vector<64x64xf32>
    %cst_144 = arith.constant dense<0.000000e+00> : vector<64xf32>
    %296 = vector.multi_reduction <add>, %295, %cst_144 [1] : vector<64x64xf32> to vector<64xf32>
    %297 = vector.shape_cast %296 : vector<64xf32> to vector<64x1xf32>
    %298 = tpu.reciprocal %297 {approx = true} : vector<64x1xf32> -> vector<64x1xf32>
    %299 = vector.broadcast %298 : vector<64x1xf32> to vector<64x64xf32>
    %300 = arith.mulf %295, %299 : vector<64x64xf32>
    %301 = arith.truncf %300 : vector<64x64xf32> to vector<64x64xbf16>
    %302 = arith.truncf %191 : vector<64x16xf32> to vector<64x16xbf16>
    %cst_145 = arith.constant dense<0.000000e+00> : vector<64x16xf32>
    %303 = tpu.matmul %301, %302, %cst_145 {dimension_numbers = #tpu.dot_dimension_numbers<[1], [0], [0], [1], [0, 0, 1, 1], [], []>} : vector<64x64xbf16>, vector<64x16xbf16>, vector<64x16xf32> -> vector<64x16xf32>
    %c0_146 = arith.constant 0 : index
    %c0_147 = arith.constant 0 : index
    %304 = vector.load %arg15[%c0_146, %c0_147] : memref<128x16xf32, #tpu.memory_space<vmem>>, vector<64x16xf32>
    tpu.vector_store %arg15[%c0_146, %c0_147], %303 {strides = array<i32>} : memref<128x16xf32, #tpu.memory_space<vmem>>, vector<64x16xf32>,
    %c64_148 = arith.constant 64 : index
    %c0_149 = arith.constant 0 : index
    %305 = vector.load %arg12[%c64_148, %c0_149] : memref<128x16xf32, #tpu.memory_space<vmem>>, vector<64x16xf32>
    %c0_150 = arith.constant 0 : index
    %c64_151 = arith.constant 64 : index
    %306 = vector.load %arg13[%c0_150, %c64_151] : memref<16x128xf32, #tpu.memory_space<vmem>>, vector<16x64xf32>
    %c64_152 = arith.constant 64 : index
    %c0_153 = arith.constant 0 : index
    %307 = vector.load %arg14[%c64_152, %c0_153] : memref<128x16xf32, #tpu.memory_space<vmem>>, vector<64x16xf32>
    %308 = arith.truncf %305 : vector<64x16xf32> to vector<64x16xbf16>
    %309 = arith.truncf %306 : vector<16x64xf32> to vector<16x64xbf16>
    %cst_154 = arith.constant dense<0.000000e+00> : vector<64x64xf32>
    %310 = tpu.matmul %308, %309, %cst_154 {dimension_numbers = #tpu.dot_dimension_numbers<[1], [0], [0], [1], [0, 0, 1, 1], [], []>} : vector<64x16xbf16>, vector<16x64xbf16>, vector<64x64xf32> -> vector<64x64xf32>
    %311 = vector.extract_strided_slice %305 {offsets = [0, 0], sizes = [64, 1], strides = [1, 1]} : vector<64x16xf32> to vector<64x1xf32>
    %c0_155 = arith.constant 0 : index
    %c0_156 = arith.constant 0 : index
    %c0_157 = arith.constant 0 : index
    %312 = vector.load %arg1[%c0_155, %c0_156, %c0_157] : memref<16x64x64xf32, #tpu.memory_space<vmem>>, vector<1x64x64xf32>
    %313 = vector.shape_cast %312 : vector<1x64x64xf32> to vector<64x64xf32>
    %314 = vector.broadcast %311 : vector<64x1xf32> to vector<64x64xf32>
    %315 = arith.mulf %314, %313 : vector<64x64xf32>
    %316 = arith.addf %310, %315 : vector<64x64xf32>
    %317 = vector.extract_strided_slice %305 {offsets = [0, 1], sizes = [64, 1], strides = [1, 1]} : vector<64x16xf32> to vector<64x1xf32>
    %c1_158 = arith.constant 1 : index
    %c0_159 = arith.constant 0 : index
    %c0_160 = arith.constant 0 : index
    %318 = vector.load %arg1[%c1_158, %c0_159, %c0_160] : memref<16x64x64xf32, #tpu.memory_space<vmem>>, vector<1x64x64xf32>
    %319 = vector.shape_cast %318 : vector<1x64x64xf32> to vector<64x64xf32>
    %320 = vector.broadcast %317 : vector<64x1xf32> to vector<64x64xf32>
    %321 = arith.mulf %320, %319 : vector<64x64xf32>
    %322 = arith.addf %316, %321 : vector<64x64xf32>
    %323 = vector.extract_strided_slice %305 {offsets = [0, 2], sizes = [64, 1], strides = [1, 1]} : vector<64x16xf32> to vector<64x1xf32>
    %c2_161 = arith.constant 2 : index
    %c0_162 = arith.constant 0 : index
    %c0_163 = arith.constant 0 : index
    %324 = vector.load %arg1[%c2_161, %c0_162, %c0_163] : memref<16x64x64xf32, #tpu.memory_space<vmem>>, vector<1x64x64xf32>
    %325 = vector.shape_cast %324 : vector<1x64x64xf32> to vector<64x64xf32>
    %326 = vector.broadcast %323 : vector<64x1xf32> to vector<64x64xf32>
    %327 = arith.mulf %326, %325 : vector<64x64xf32>
    %328 = arith.addf %322, %327 : vector<64x64xf32>
    %329 = vector.extract_strided_slice %305 {offsets = [0, 3], sizes = [64, 1], strides = [1, 1]} : vector<64x16xf32> to vector<64x1xf32>
    %c3_164 = arith.constant 3 : index
    %c0_165 = arith.constant 0 : index
    %c0_166 = arith.constant 0 : index
    %330 = vector.load %arg1[%c3_164, %c0_165, %c0_166] : memref<16x64x64xf32, #tpu.memory_space<vmem>>, vector<1x64x64xf32>
    %331 = vector.shape_cast %330 : vector<1x64x64xf32> to vector<64x64xf32>
    %332 = vector.broadcast %329 : vector<64x1xf32> to vector<64x64xf32>
    %333 = arith.mulf %332, %331 : vector<64x64xf32>
    %334 = arith.addf %328, %333 : vector<64x64xf32>
    %335 = vector.extract_strided_slice %305 {offsets = [0, 4], sizes = [64, 1], strides = [1, 1]} : vector<64x16xf32> to vector<64x1xf32>
    %c4_167 = arith.constant 4 : index
    %c0_168 = arith.constant 0 : index
    %c0_169 = arith.constant 0 : index
    %336 = vector.load %arg1[%c4_167, %c0_168, %c0_169] : memref<16x64x64xf32, #tpu.memory_space<vmem>>, vector<1x64x64xf32>
    %337 = vector.shape_cast %336 : vector<1x64x64xf32> to vector<64x64xf32>
    %338 = vector.broadcast %335 : vector<64x1xf32> to vector<64x64xf32>
    %339 = arith.mulf %338, %337 : vector<64x64xf32>
    %340 = arith.addf %334, %339 : vector<64x64xf32>
    %341 = vector.extract_strided_slice %305 {offsets = [0, 5], sizes = [64, 1], strides = [1, 1]} : vector<64x16xf32> to vector<64x1xf32>
    %c5_170 = arith.constant 5 : index
    %c0_171 = arith.constant 0 : index
    %c0_172 = arith.constant 0 : index
    %342 = vector.load %arg1[%c5_170, %c0_171, %c0_172] : memref<16x64x64xf32, #tpu.memory_space<vmem>>, vector<1x64x64xf32>
    %343 = vector.shape_cast %342 : vector<1x64x64xf32> to vector<64x64xf32>
    %344 = vector.broadcast %341 : vector<64x1xf32> to vector<64x64xf32>
    %345 = arith.mulf %344, %343 : vector<64x64xf32>
    %346 = arith.addf %340, %345 : vector<64x64xf32>
    %347 = vector.extract_strided_slice %305 {offsets = [0, 6], sizes = [64, 1], strides = [1, 1]} : vector<64x16xf32> to vector<64x1xf32>
    %c6_173 = arith.constant 6 : index
    %c0_174 = arith.constant 0 : index
    %c0_175 = arith.constant 0 : index
    %348 = vector.load %arg1[%c6_173, %c0_174, %c0_175] : memref<16x64x64xf32, #tpu.memory_space<vmem>>, vector<1x64x64xf32>
    %349 = vector.shape_cast %348 : vector<1x64x64xf32> to vector<64x64xf32>
    %350 = vector.broadcast %347 : vector<64x1xf32> to vector<64x64xf32>
    %351 = arith.mulf %350, %349 : vector<64x64xf32>
    %352 = arith.addf %346, %351 : vector<64x64xf32>
    %353 = vector.extract_strided_slice %305 {offsets = [0, 7], sizes = [64, 1], strides = [1, 1]} : vector<64x16xf32> to vector<64x1xf32>
    %c7_176 = arith.constant 7 : index
    %c0_177 = arith.constant 0 : index
    %c0_178 = arith.constant 0 : index
    %354 = vector.load %arg1[%c7_176, %c0_177, %c0_178] : memref<16x64x64xf32, #tpu.memory_space<vmem>>, vector<1x64x64xf32>
    %355 = vector.shape_cast %354 : vector<1x64x64xf32> to vector<64x64xf32>
    %356 = vector.broadcast %353 : vector<64x1xf32> to vector<64x64xf32>
    %357 = arith.mulf %356, %355 : vector<64x64xf32>
    %358 = arith.addf %352, %357 : vector<64x64xf32>
    %359 = vector.extract_strided_slice %305 {offsets = [0, 8], sizes = [64, 1], strides = [1, 1]} : vector<64x16xf32> to vector<64x1xf32>
    %c8_179 = arith.constant 8 : index
    %c0_180 = arith.constant 0 : index
    %c0_181 = arith.constant 0 : index
    %360 = vector.load %arg1[%c8_179, %c0_180, %c0_181] : memref<16x64x64xf32, #tpu.memory_space<vmem>>, vector<1x64x64xf32>
    %361 = vector.shape_cast %360 : vector<1x64x64xf32> to vector<64x64xf32>
    %362 = vector.broadcast %359 : vector<64x1xf32> to vector<64x64xf32>
    %363 = arith.mulf %362, %361 : vector<64x64xf32>
    %364 = arith.addf %358, %363 : vector<64x64xf32>
    %365 = vector.extract_strided_slice %305 {offsets = [0, 9], sizes = [64, 1], strides = [1, 1]} : vector<64x16xf32> to vector<64x1xf32>
    %c9_182 = arith.constant 9 : index
    %c0_183 = arith.constant 0 : index
    %c0_184 = arith.constant 0 : index
    %366 = vector.load %arg1[%c9_182, %c0_183, %c0_184] : memref<16x64x64xf32, #tpu.memory_space<vmem>>, vector<1x64x64xf32>
    %367 = vector.shape_cast %366 : vector<1x64x64xf32> to vector<64x64xf32>
    %368 = vector.broadcast %365 : vector<64x1xf32> to vector<64x64xf32>
    %369 = arith.mulf %368, %367 : vector<64x64xf32>
    %370 = arith.addf %364, %369 : vector<64x64xf32>
    %371 = vector.extract_strided_slice %305 {offsets = [0, 10], sizes = [64, 1], strides = [1, 1]} : vector<64x16xf32> to vector<64x1xf32>
    %c10_185 = arith.constant 10 : index
    %c0_186 = arith.constant 0 : index
    %c0_187 = arith.constant 0 : index
    %372 = vector.load %arg1[%c10_185, %c0_186, %c0_187] : memref<16x64x64xf32, #tpu.memory_space<vmem>>, vector<1x64x64xf32>
    %373 = vector.shape_cast %372 : vector<1x64x64xf32> to vector<64x64xf32>
    %374 = vector.broadcast %371 : vector<64x1xf32> to vector<64x64xf32>
    %375 = arith.mulf %374, %373 : vector<64x64xf32>
    %376 = arith.addf %370, %375 : vector<64x64xf32>
    %377 = vector.extract_strided_slice %305 {offsets = [0, 11], sizes = [64, 1], strides = [1, 1]} : vector<64x16xf32> to vector<64x1xf32>
    %c11_188 = arith.constant 11 : index
    %c0_189 = arith.constant 0 : index
    %c0_190 = arith.constant 0 : index
    %378 = vector.load %arg1[%c11_188, %c0_189, %c0_190] : memref<16x64x64xf32, #tpu.memory_space<vmem>>, vector<1x64x64xf32>
    %379 = vector.shape_cast %378 : vector<1x64x64xf32> to vector<64x64xf32>
    %380 = vector.broadcast %377 : vector<64x1xf32> to vector<64x64xf32>
    %381 = arith.mulf %380, %379 : vector<64x64xf32>
    %382 = arith.addf %376, %381 : vector<64x64xf32>
    %383 = vector.extract_strided_slice %305 {offsets = [0, 12], sizes = [64, 1], strides = [1, 1]} : vector<64x16xf32> to vector<64x1xf32>
    %c12_191 = arith.constant 12 : index
    %c0_192 = arith.constant 0 : index
    %c0_193 = arith.constant 0 : index
    %384 = vector.load %arg1[%c12_191, %c0_192, %c0_193] : memref<16x64x64xf32, #tpu.memory_space<vmem>>, vector<1x64x64xf32>
    %385 = vector.shape_cast %384 : vector<1x64x64xf32> to vector<64x64xf32>
    %386 = vector.broadcast %383 : vector<64x1xf32> to vector<64x64xf32>
    %387 = arith.mulf %386, %385 : vector<64x64xf32>
    %388 = arith.addf %382, %387 : vector<64x64xf32>
    %389 = vector.extract_strided_slice %305 {offsets = [0, 13], sizes = [64, 1], strides = [1, 1]} : vector<64x16xf32> to vector<64x1xf32>
    %c13_194 = arith.constant 13 : index
    %c0_195 = arith.constant 0 : index
    %c0_196 = arith.constant 0 : index
    %390 = vector.load %arg1[%c13_194, %c0_195, %c0_196] : memref<16x64x64xf32, #tpu.memory_space<vmem>>, vector<1x64x64xf32>
    %391 = vector.shape_cast %390 : vector<1x64x64xf32> to vector<64x64xf32>
    %392 = vector.broadcast %389 : vector<64x1xf32> to vector<64x64xf32>
    %393 = arith.mulf %392, %391 : vector<64x64xf32>
    %394 = arith.addf %388, %393 : vector<64x64xf32>
    %395 = vector.extract_strided_slice %305 {offsets = [0, 14], sizes = [64, 1], strides = [1, 1]} : vector<64x16xf32> to vector<64x1xf32>
    %c14_197 = arith.constant 14 : index
    %c0_198 = arith.constant 0 : index
    %c0_199 = arith.constant 0 : index
    %396 = vector.load %arg1[%c14_197, %c0_198, %c0_199] : memref<16x64x64xf32, #tpu.memory_space<vmem>>, vector<1x64x64xf32>
    %397 = vector.shape_cast %396 : vector<1x64x64xf32> to vector<64x64xf32>
    %398 = vector.broadcast %395 : vector<64x1xf32> to vector<64x64xf32>
    %399 = arith.mulf %398, %397 : vector<64x64xf32>
    %400 = arith.addf %394, %399 : vector<64x64xf32>
    %401 = vector.extract_strided_slice %305 {offsets = [0, 15], sizes = [64, 1], strides = [1, 1]} : vector<64x16xf32> to vector<64x1xf32>
    %c15_200 = arith.constant 15 : index
    %c0_201 = arith.constant 0 : index
    %c0_202 = arith.constant 0 : index
    %402 = vector.load %arg1[%c15_200, %c0_201, %c0_202] : memref<16x64x64xf32, #tpu.memory_space<vmem>>, vector<1x64x64xf32>
    %403 = vector.shape_cast %402 : vector<1x64x64xf32> to vector<64x64xf32>
    %404 = vector.broadcast %401 : vector<64x1xf32> to vector<64x64xf32>
    %405 = arith.mulf %404, %403 : vector<64x64xf32>
    %406 = arith.addf %400, %405 : vector<64x64xf32>
    %cst_203 = arith.constant dense<0xFF800000> : vector<64xf32>
    %407 = vector.multi_reduction <maximumf>, %406, %cst_203 [1] : vector<64x64xf32> to vector<64xf32>
    %408 = vector.shape_cast %407 : vector<64xf32> to vector<64x1xf32>
    %409 = vector.broadcast %408 : vector<64x1xf32> to vector<64x64xf32>
    %410 = arith.subf %406, %409 : vector<64x64xf32>
    %411 = math.exp %410 : vector<64x64xf32>
    %cst_204 = arith.constant dense<0.000000e+00> : vector<64xf32>
    %412 = vector.multi_reduction <add>, %411, %cst_204 [1] : vector<64x64xf32> to vector<64xf32>
    %413 = vector.shape_cast %412 : vector<64xf32> to vector<64x1xf32>
    %414 = tpu.reciprocal %413 {approx = true} : vector<64x1xf32> -> vector<64x1xf32>
    %415 = vector.broadcast %414 : vector<64x1xf32> to vector<64x64xf32>
    %416 = arith.mulf %411, %415 : vector<64x64xf32>
    %417 = arith.truncf %416 : vector<64x64xf32> to vector<64x64xbf16>
    %418 = arith.truncf %307 : vector<64x16xf32> to vector<64x16xbf16>
    %cst_205 = arith.constant dense<0.000000e+00> : vector<64x16xf32>
    %419 = tpu.matmul %417, %418, %cst_205 {dimension_numbers = #tpu.dot_dimension_numbers<[1], [0], [0], [1], [0, 0, 1, 1], [], []>} : vector<64x64xbf16>, vector<64x16xbf16>, vector<64x16xf32> -> vector<64x16xf32>
    %c64_206 = arith.constant 64 : index
    %c0_207 = arith.constant 0 : index
    %420 = vector.load %arg15[%c64_206, %c0_207] : memref<128x16xf32, #tpu.memory_space<vmem>>, vector<64x16xf32>
    tpu.vector_store %arg15[%c64_206, %c0_207], %419 {strides = array<i32>} : memref<128x16xf32, #tpu.memory_space<vmem>>, vector<64x16xf32>,
    %c0_208 = arith.constant 0 : index
    %c0_209 = arith.constant 0 : index
    %421 = vector.load %arg15[%c0_208, %c0_209] : memref<128x16xf32, #tpu.memory_space<vmem>>, vector<128x16xf32>
    %422 = arith.truncf %421 : vector<128x16xf32> to vector<128x16xbf16>
    %c0_210 = arith.constant 0 : index
    %c0_211 = arith.constant 0 : index
    %423 = vector.load %arg9[%c0_210, %c0_211] : memref<16x32xf32, #tpu.memory_space<vmem>>, vector<16x32xf32>
    %424 = arith.truncf %423 : vector<16x32xf32> to vector<16x32xbf16>
    %cst_212 = arith.constant dense<0.000000e+00> : vector<128x32xf32>
    %425 = tpu.matmul %422, %424, %cst_212 {dimension_numbers = #tpu.dot_dimension_numbers<[1], [0], [0], [1], [0, 0, 1, 1], [], []>} : vector<128x16xbf16>, vector<16x32xbf16>, vector<128x32xf32> -> vector<128x32xf32>
    %cst_213 = arith.constant dense<0.000000e+00> : vector<32xf32>
    %426 = vector.multi_reduction <add>, %425, %cst_213 [0] : vector<128x32xf32> to vector<32xf32>
    %427 = vector.shape_cast %426 : vector<32xf32> to vector<1x32xf32>
    %cst_214 = arith.constant 1.280000e+02 : f32
    %428 = vector.broadcast %cst_214 : f32 to vector<1x32xf32>
    %429 = arith.divf %427, %428 : vector<1x32xf32>
    %430 = vector.broadcast %429 : vector<1x32xf32> to vector<128x32xf32>
    %431 = arith.subf %425, %430 : vector<128x32xf32>
    %432 = arith.mulf %431, %431 : vector<128x32xf32>
    %cst_215 = arith.constant dense<0.000000e+00> : vector<32xf32>
    %433 = vector.multi_reduction <add>, %432, %cst_215 [0] : vector<128x32xf32> to vector<32xf32>
    %434 = vector.shape_cast %433 : vector<32xf32> to vector<1x32xf32>
    %cst_216 = arith.constant 1.280000e+02 : f32
    %435 = vector.broadcast %cst_216 : f32 to vector<1x32xf32>
    %436 = arith.divf %434, %435 : vector<1x32xf32>
    %437 = vector.broadcast %429 : vector<1x32xf32> to vector<128x32xf32>
    %438 = arith.subf %425, %437 : vector<128x32xf32>
    %cst_217 = arith.constant 9.99999974E-6 : f32
    %439 = vector.broadcast %cst_217 : f32 to vector<1x32xf32>
    %440 = arith.addf %436, %439 : vector<1x32xf32>
    %441 = math.rsqrt %440 : vector<1x32xf32>
    %442 = vector.broadcast %441 : vector<1x32xf32> to vector<128x32xf32>
    %443 = arith.mulf %438, %442 : vector<128x32xf32>
    %cst_218 = arith.constant 0.000000e+00 : f32
    %444 = vector.broadcast %cst_218 : f32 to vector<128x32xf32>
    %445 = arith.maximumf %443, %444 : vector<128x32xf32>
    %446 = tpu.transpose %445, [1, 0] : vector<128x32xf32> -> vector<32x128xf32>
    %447 = vector.extract_strided_slice %446 {offsets = [0, 0], sizes = [32, 64], strides = [1, 1]} : vector<32x128xf32> to vector<32x64xf32>
    %c0_219 = arith.constant 0 : index
    %c0_220 = arith.constant 0 : index
    %c0_221 = arith.constant 0 : index
    %448 = vector.load %arg10[%c0_219, %c0_220, %c0_221] : memref<2x32x64xf32, #tpu.memory_space<vmem>>, vector<1x32x64xf32>
    %449 = vector.shape_cast %448 : vector<1x32x64xf32> to vector<32x64xf32>
    %450 = vector.shape_cast %447 : vector<32x64xf32> to vector<1x32x64xf32>
    tpu.vector_store %arg10[%c0_219, %c0_220, %c0_221], %450 {strides = array<i32>} : memref<2x32x64xf32, #tpu.memory_space<vmem>>, vector<1x32x64xf32>,
    %451 = vector.extract_strided_slice %446 {offsets = [0, 64], sizes = [32, 64], strides = [1, 1]} : vector<32x128xf32> to vector<32x64xf32>
    %c1_222 = arith.constant 1 : index
    %c0_223 = arith.constant 0 : index
    %c0_224 = arith.constant 0 : index
    %452 = vector.load %arg10[%c1_222, %c0_223, %c0_224] : memref<2x32x64xf32, #tpu.memory_space<vmem>>, vector<1x32x64xf32>
    %453 = vector.shape_cast %452 : vector<1x32x64xf32> to vector<32x64xf32>
    %454 = vector.shape_cast %451 : vector<32x64xf32> to vector<1x32x64xf32>
    tpu.vector_store %arg10[%c1_222, %c0_223, %c0_224], %454 {strides = array<i32>} : memref<2x32x64xf32, #tpu.memory_space<vmem>>, vector<1x32x64xf32>,
    return
  }
}

</mosaic_0001>

<llo_original>
// kernel: sub.10
$region0: #{sub.10}
  %s0 = inlined_call_operand.vmem [shape: s32[2,8,8], index: 0, kind: input, shape index: {}]
  %s1 = inlined_call_operand.vmem [shape: s32[2,64], index: 1, kind: output, shape index: {}]
  $region1: #{sub.10} parent=0
    #allocation0 [shape = 'u8[4096]{0}', space=vmem, size = 0x1000, scoped, tag = 'scoped mem for output reshape']
    %s2 = smov 3
    %v3 = vld [vmem:[%s0] ss:$8 sm:%s2]
    %vm4 = vcmask 64512
    %5 = vst.msk [vmem:[#allocation0] sm:$0x3] %vm4, %v3
    %s6 = scalar_lea.vmem %s0, 7
    %s7 = smov 3
    %v8 = vld [vmem:[%s6] ss:$8 sm:%s7]
    %9 = vrot.lane.b32.xlu0 %v8, 56
    %v10 = vpop.permute.xlu0 %9
    %vm11 = vcmask 523712
    %12 = vst.msk [vmem:[#allocation0] sm:$0x3] %vm11, %v10
    %s13 = scalar_lea.vmem %s0, 6
    %s14 = smov 3
    %v15 = vld [vmem:[%s13] ss:$8 sm:%s14]
    %16 = vrot.lane.b32.xlu0 %v15, 48
    %v17 = vpop.permute.xlu0 %16
    %vm18 = vcmask 458112
    %19 = vst.msk [vmem:[#allocation0] sm:$0x3] %vm18, %v17
    %s20 = scalar_lea.vmem %s0, 5
    %s21 = smov 3
    %v22 = vld [vmem:[%s20] ss:$8 sm:%s21]
    %23 = vrot.lane.b32.xlu0 %v22, 40
    %v24 = vpop.permute.xlu0 %23
    %vm25 = vcmask 392512
    %26 = vst.msk [vmem:[#allocation0] sm:$0x3] %vm25, %v24
    %s27 = scalar_lea.vmem %s0, 4
    %s28 = smov 3
    %v29 = vld [vmem:[%s27] ss:$8 sm:%s28]
    %30 = vrot.lane.b32.xlu0 %v29, 32
    %v31 = vpop.permute.xlu0 %30
    %vm32 = vcmask 326912
    %33 = vst.msk [vmem:[#allocation0] sm:$0x3] %vm32, %v31
    %s34 = scalar_lea.vmem %s0, 3
    %s35 = smov 3
    %v36 = vld [vmem:[%s34] ss:$8 sm:%s35]
    %37 = vrot.lane.b32.xlu0 %v36, 24
    %v38 = vpop.permute.xlu0 %37
    %vm39 = vcmask 261312
    %40 = vst.msk [vmem:[#allocation0] sm:$0x3] %vm39, %v38
    %s41 = scalar_lea.vmem %s0, 2
    %s42 = smov 3
    %v43 = vld [vmem:[%s41] ss:$8 sm:%s42]
    %44 = vrot.lane.b32.xlu0 %v43, 16
    %v45 = vpop.permute.xlu0 %44
    %vm46 = vcmask 195712
    %47 = vst.msk [vmem:[#allocation0] sm:$0x3] %vm46, %v45
    %s48 = scalar_lea.vmem %s0, 1
    %s49 = smov 3
    %v50 = vld [vmem:[%s48] ss:$8 sm:%s49]
    %51 = vrot.lane.b32.xlu0 %v50, 8
    %v52 = vpop.permute.xlu0 %51
    %vm53 = vcmask 130112
    %54 = vst.msk [vmem:[#allocation0] sm:$0x3] %vm53, %v52
    %s56 = ssub.s32 4, 1
    %v57 = vld [vmem:[#allocation0] sm:%s56]
    %s59 = ssub.s32 4, 1
    %60 = vst [vmem:[%s1] sm:%s59] %v57

// kernel: self_attention_block2.1
$region0: #{self_attention_block2.1}
  #allocation0 [shape = 'u32[]', space=smem, size = 0x4, offset = 0x4, fixed_abs, tag = 'smem constant byte address 0x4 - core index']
  #allocation1 [shape = 'u32[72,128]{1,0:T(1,128)}', space=vmem, size = 0x9000, scoped, tag = 'internal scratch']
  #allocation2 [shape = 'f32[128,32]{1,0:T(8,128)}', space=vmem, size = 0x10000, scoped, tag = 'scratch operand']
  #allocation3 [shape = 'f32[128,16]{1,0:T(8,128)}', space=vmem, size = 0x10000, scoped, tag = 'scratch operand']
  #allocation4 [shape = 'f32[16,128]{1,0:T(8,128)}', space=vmem, size = 0x2000, scoped, tag = 'scratch operand']
  #allocation5 [shape = 'f32[128,16]{1,0:T(8,128)}', space=vmem, size = 0x10000, scoped, tag = 'scratch operand']
  #allocation6 [shape = 'f32[128,16]{1,0:T(8,128)}', space=vmem, size = 0x10000, scoped, tag = 'scratch operand']
  %s0 = inlined_call_operand.vmem [shape: f32[128,32], index: 0, kind: input, shape index: {}]
  %s1 = inlined_call_operand.vmem [shape: f32[16,64,64], index: 1, kind: input, shape index: {}]
  %s2 = inlined_call_operand.vmem [shape: f32[32,8], index: 2, kind: input, shape index: {}]
  %s3 = inlined_call_operand.vmem [shape: f32[8,32], index: 3, kind: input, shape index: {}]
  %s4 = inlined_call_operand.vmem [shape: f32[32,16], index: 4, kind: input, shape index: {}]
  %s5 = inlined_call_operand.vmem [shape: f32[16,16], index: 5, kind: input, shape index: {}]
  %s6 = inlined_call_operand.vmem [shape: f32[32,16], index: 6, kind: input, shape index: {}]
  %s7 = inlined_call_operand.vmem [shape: f32[16,16], index: 7, kind: input, shape index: {}]
  %s8 = inlined_call_operand.vmem [shape: f32[32,16], index: 8, kind: input, shape index: {}]
  %s9 = inlined_call_operand.vmem [shape: f32[16,32], index: 9, kind: input, shape index: {}]
  %s10 = inlined_call_operand.vmem [shape: f32[2,32,64], index: 10, kind: output, shape index: {}]
  %s11 = sld [smem:[#allocation0]]
  $region50: #{self_attention_block2.1} parent=0
    _
  %s13 = ssub.s32 1, %s11
  %s14 = scalar_select 0, %s13, %s11
  // Predicated region
  $region2: #{self_attention_block2.1} parent=0 // pred_check
    _
  $region3: #{self_attention_block2.1} parent=0 // pred_check_branch
    %16 = sbr.rel (0) target = $region5
  $region4: #{self_attention_block2.1} parent=0 // pred_region
    _
  $region5: #{self_attention_block2.1} parent=0 // pred_fallthru
    _
  // Predicated region
  $region6: #{self_attention_block2.1} parent=0 // pred_check
    _
  $region7: #{self_attention_block2.1} parent=0 // pred_check_branch
    %18 = sbr.rel (0) target = $region9
  $region8: #{self_attention_block2.1} parent=0 // pred_region
    _
  $region9: #{self_attention_block2.1} parent=0 // pred_fallthru
    _
  // Predicated region
  $region10: #{self_attention_block2.1} parent=0 // pred_check
    _
  $region11: #{self_attention_block2.1} parent=0 // pred_check_branch
    %20 = sbr.rel (0) target = $region13
  $region12: #{self_attention_block2.1} parent=0 // pred_region
    _
  $region13: #{self_attention_block2.1} parent=0 // pred_fallthru
    _
  // Predicated region
  $region14: #{self_attention_block2.1} parent=0 // pred_check
    _
  $region15: #{self_attention_block2.1} parent=0 // pred_check_branch
    %22 = sbr.rel (0) target = $region17
  $region16: #{self_attention_block2.1} parent=0 // pred_region
    _
  $region17: #{self_attention_block2.1} parent=0 // pred_fallthru
    _
  // Predicated region
  $region18: #{self_attention_block2.1} parent=0 // pred_check
    _
  $region19: #{self_attention_block2.1} parent=0 // pred_check_branch
    %24 = sbr.rel (0) target = $region21
  $region20: #{self_attention_block2.1} parent=0 // pred_region
    _
  $region21: #{self_attention_block2.1} parent=0 // pred_fallthru
    _
  // Predicated region
  $region22: #{self_attention_block2.1} parent=0 // pred_check
    _
  $region23: #{self_attention_block2.1} parent=0 // pred_check_branch
    %26 = sbr.rel (0) target = $region25
  $region24: #{self_attention_block2.1} parent=0 // pred_region
    _
  $region25: #{self_attention_block2.1} parent=0 // pred_fallthru
    _
  // Predicated region
  $region26: #{self_attention_block2.1} parent=0 // pred_check
    _
  $region27: #{self_attention_block2.1} parent=0 // pred_check_branch
    %28 = sbr.rel (0) target = $region29
  $region28: #{self_attention_block2.1} parent=0 // pred_region
    _
  $region29: #{self_attention_block2.1} parent=0 // pred_fallthru
    _
  // Predicated region
  $region30: #{self_attention_block2.1} parent=0 // pred_check
    _
  $region31: #{self_attention_block2.1} parent=0 // pred_check_branch
    %30 = sbr.rel (0) target = $region33
  $region32: #{self_attention_block2.1} parent=0 // pred_region
    _
  $region33: #{self_attention_block2.1} parent=0 // pred_fallthru
    _
  // Predicated region
  $region34: #{self_attention_block2.1} parent=0 // pred_check
    _
  $region35: #{self_attention_block2.1} parent=0 // pred_check_branch
    %32 = sbr.rel (0) target = $region37
  $region36: #{self_attention_block2.1} parent=0 // pred_region
    _
  $region37: #{self_attention_block2.1} parent=0 // pred_fallthru
    _
  // Predicated region
  $region38: #{self_attention_block2.1} parent=0 // pred_check
    _
  $region39: #{self_attention_block2.1} parent=0 // pred_check_branch
    %34 = sbr.rel (0) target = $region41
  $region40: #{self_attention_block2.1} parent=0 // pred_region
    _
  $region41: #{self_attention_block2.1} parent=0 // pred_fallthru
    _
  %v36 = vld [vmem:[%s0] sm:$0xff]
  %v37 = vld [vmem:[%s0 + $0x8] sm:$0xff]
  %v38 = vld [vmem:[%s0 + $0x10] sm:$0xff]
  %v39 = vld [vmem:[%s0 + $0x18] sm:$0xff]
  %v40 = vld [vmem:[%s0 + $0x20] sm:$0xff]
  %v41 = vld [vmem:[%s0 + $0x28] sm:$0xff]
  %v42 = vld [vmem:[%s0 + $0x30] sm:$0xff]
  %v43 = vld [vmem:[%s0 + $0x38] sm:$0xff]
  %vm44 = vcmask 261120
  %v45 = vsel %vm44, %v36, 0.0
  %v46 = vsel %vm44, %v37, 0.0
  %v47 = vadd.f32 %v45, %v46
  %v48 = vsel %vm44, %v38, 0.0
  %v49 = vadd.f32 %v47, %v48
  %v50 = vsel %vm44, %v39, 0.0
  %v51 = vadd.f32 %v49, %v50
  %v52 = vsel %vm44, %v40, 0.0
  %v53 = vadd.f32 %v51, %v52
  %v54 = vsel %vm44, %v41, 0.0
  %v55 = vadd.f32 %v53, %v54
  %v56 = vsel %vm44, %v42, 0.0
  %v57 = vadd.f32 %v55, %v56
  %v58 = vsel %vm44, %v43, 0.0
  %v59 = vadd.f32 %v57, %v58
  %v60 = vrot.slane %v59, 4
  %v61 = vadd.f32 %v59, %v60
  %v62 = vrot.slane %v61, 2
  %v63 = vadd.f32 %v61, %v62
  %v64 = vrot.slane %v63, 1
  %v65 = vadd.f32 %v63, %v64
  %v66 = vrcp.pop 64.0
  %v67 = vmul.f32 64.0, %v66
  %v68 = vsub.f32 1.0, %v67
  %v69 = vmul.f32 %v66, %v68
  %v70 = vadd.f32 %v66, %v69
  %vm71 = vweird.f32 %v66
  %v72 = vsel %vm71, %v66, %v70
  %v73 = vmul.f32 %v65, %v72
  %v74 = vsel %vm44, %v36, -inf
  %v75 = vsel %vm44, %v37, -inf
  %v76 = vsel %vm44, %v38, -inf
  %v77 = vsel %vm44, %v39, -inf
  %v78 = vsel %vm44, %v40, -inf
  %v79 = vmax.f32 %v74, %v78
  %v80 = vsel %vm44, %v41, -inf
  %v81 = vmax.f32 %v75, %v80
  %v82 = vsel %vm44, %v42, -inf
  %v83 = vmax.f32 %v76, %v82
  %v84 = vsel %vm44, %v43, -inf
  %v85 = vmax.f32 %v77, %v84
  %v86 = vmax.f32 %v79, %v81
  %v87 = vmax.f32 %v83, %v85
  %v88 = vmax.f32 %v86, %v87
  %v89 = vrot.slane %v88, 4
  %v90 = vmax.f32 %v88, %v89
  %v91 = vrot.slane %v90, 2
  %v92 = vmax.f32 %v90, %v91
  %v93 = vrot.slane %v92, 1
  %v94 = vmax.f32 %v92, %v93
  %v95 = vld [vmem:[%s2] sm:$0xff]
  %v96 = vld [vmem:[%s2 + $0x8] sm:$0xff]
  %v97 = vld [vmem:[%s2 + $0x10] sm:$0xff]
  %v98 = vld [vmem:[%s2 + $0x18] sm:$0xff]
  %v100 = vsel %vm44, %v73, 0
  %102 = vmatpush.msra.mxu0 0.0
  %103 = vmatpush.msra.mxu0 0.0
  %104 = vmatpush.msra.mxu0 0.0
  %105 = vmatpush.msra.mxu0 0.0
  %106 = vmatpush.msra.mxu0 0.0
  %107 = vmatpush.msra.mxu0 0.0
  %108 = vmatpush.msra.mxu0 0.0
  %109 = vmatpush.msra.mxu0 0.0
  %110 = vmatpush.msra.mxu0 0.0
  %111 = vmatpush.msra.mxu0 0.0
  %112 = vmatpush.msra.mxu0 0.0
  %113 = vmatpush.msra.mxu0 0.0
  %114 = vmatpush.msra.mxu0 %v98
  %115 = vmatpush.msra.mxu0 %v97
  %116 = vmatpush.msra.mxu0 %v96
  %117 = vmatpush.msra.mxu0 %v95
  %118 = vmatmul.f32.gmra.mxu0 %v100
  %v119 = vpop.f32.mrf.mxu0
  %v120 = vadd.f32 0.0, %v119
  %121 = vdwg.mxu0
  %v122 = vmax.f32 %v120, 0.0
  %v123 = vld [vmem:[%s3] sm:$0xff]
  %v125 = vsel %vm44, %v94, 0
  %127 = vmatpush.msra.mxu0 0.0
  %128 = vmatpush.msra.mxu0 0.0
  %129 = vmatpush.msra.mxu0 0.0
  %130 = vmatpush.msra.mxu0 0.0
  %131 = vmatpush.msra.mxu0 0.0
  %132 = vmatpush.msra.mxu0 0.0
  %133 = vmatpush.msra.mxu0 0.0
  %134 = vmatpush.msra.mxu0 0.0
  %135 = vmatpush.msra.mxu0 0.0
  %136 = vmatpush.msra.mxu0 0.0
  %137 = vmatpush.msra.mxu0 0.0
  %138 = vmatpush.msra.mxu0 0.0
  %139 = vmatpush.msra.mxu0 %v98
  %140 = vmatpush.msra.mxu0 %v97
  %141 = vmatpush.msra.mxu0 %v96
  %142 = vmatpush.msra.mxu0 %v95
  %143 = vmatmul.f32.gmra.mxu0 %v125
  %v144 = vpop.f32.mrf.mxu0
  %v145 = vadd.f32 0.0, %v144
  %146 = vdwg.mxu0
  %v147 = vmax.f32 %v145, 0.0
  %vm148 = vcmask 64512
  %v150 = vsel %vm148, %v147, 0
  %152 = vmatpush.msra.mxu0 0.0
  %153 = vmatpush.msra.mxu0 0.0
  %154 = vmatpush.msra.mxu0 0.0
  %155 = vmatpush.msra.mxu0 0.0
  %156 = vmatpush.msra.mxu0 0.0
  %157 = vmatpush.msra.mxu0 0.0
  %158 = vmatpush.msra.mxu0 0.0
  %159 = vmatpush.msra.mxu0 0.0
  %160 = vmatpush.msra.mxu0 0.0
  %161 = vmatpush.msra.mxu0 0.0
  %162 = vmatpush.msra.mxu0 0.0
  %163 = vmatpush.msra.mxu0 0.0
  %164 = vmatpush.msra.mxu0 0.0
  %165 = vmatpush.msra.mxu0 0.0
  %166 = vmatpush.msra.mxu0 0.0
  %167 = vmatpush.msra.mxu0 %v123
  %168 = vmatmul.f32.gmra.mxu0 %v150
  %v169 = vpop.f32.mrf.mxu0
  %v170 = vadd.f32 0.0, %v169
  %171 = vdwg.mxu0
  %v173 = vsel %vm148, %v122, 0
  %175 = vmatpush.msra.mxu0 0.0
  %176 = vmatpush.msra.mxu0 0.0
  %177 = vmatpush.msra.mxu0 0.0
  %178 = vmatpush.msra.mxu0 0.0
  %179 = vmatpush.msra.mxu0 0.0
  %180 = vmatpush.msra.mxu0 0.0
  %181 = vmatpush.msra.mxu0 0.0
  %182 = vmatpush.msra.mxu0 0.0
  %183 = vmatpush.msra.mxu0 0.0
  %184 = vmatpush.msra.mxu0 0.0
  %185 = vmatpush.msra.mxu0 0.0
  %186 = vmatpush.msra.mxu0 0.0
  %187 = vmatpush.msra.mxu0 0.0
  %188 = vmatpush.msra.mxu0 0.0
  %189 = vmatpush.msra.mxu0 0.0
  %190 = vmatpush.msra.mxu0 %v123
  %191 = vmatmul.f32.gmra.mxu0 %v173
  %v192 = vpop.f32.mrf.mxu0
  %v193 = vadd.f32 %v170, %v192
  %194 = vdwg.mxu0
  %v195 = vsub.f32 0.0, %v193
  %v196 = vmul.f32 %v195, 1.442695
  %v197 = vpow.pop %v196
  %v198 = vadd.f32 %v197, 1.0
  %v199 = vrcp.pop %v198
  %v200 = vmul.f32 %v198, %v199
  %v201 = vsub.f32 1.0, %v200
  %v202 = vmul.f32 %v199, %v201
  %v203 = vadd.f32 %v199, %v202
  %vm204 = vweird.f32 %v198
  %vm205 = vweird.f32 %v199
  %vm206 = vmor %vm204, %vm205
  %v207 = vsel %vm206, %v199, %v203
  %v208 = vand.u32 2147483647, %v198
  %vm209 = vcmp.eq.f32.partialorder %v208, 8.507059e+37
  %v210 = vand.u32 %v198, 2147483648
  %v211 = vor.u32 1.1754944e-38, %v210
  %v212 = vsel %vm209, %v211, %v207
  %v213 = vmul.f32 1.0, %v212
  %v214 = vperm.slane %v213, 0
  %v215 = vmul.f32 %v36, %v214
  %v216 = vmul.f32 %v37, %v214
  %v217 = vmul.f32 %v38, %v214
  %v218 = vmul.f32 %v39, %v214
  %v219 = vmul.f32 %v40, %v214
  %v220 = vmul.f32 %v41, %v214
  %v221 = vmul.f32 %v42, %v214
  %v222 = vmul.f32 %v43, %v214
  %223 = vst.msk [vmem:[#allocation2] sm:$0xff] %vm44, %v215
  %224 = vst.msk [vmem:[#allocation2 + $0x8] sm:$0xff] %vm44, %v216
  %225 = vst.msk [vmem:[#allocation2 + $0x10] sm:$0xff] %vm44, %v217
  %226 = vst.msk [vmem:[#allocation2 + $0x18] sm:$0xff] %vm44, %v218
  %227 = vst.msk [vmem:[#allocation2 + $0x20] sm:$0xff] %vm44, %v219
  %228 = vst.msk [vmem:[#allocation2 + $0x28] sm:$0xff] %vm44, %v220
  %229 = vst.msk [vmem:[#allocation2 + $0x30] sm:$0xff] %vm44, %v221
  %230 = vst.msk [vmem:[#allocation2 + $0x38] sm:$0xff] %vm44, %v222
  %v231 = vld [vmem:[%s0 + $0x40] sm:$0xff]
  %v232 = vld [vmem:[%s0 + $0x48] sm:$0xff]
  %v233 = vld [vmem:[%s0 + $0x50] sm:$0xff]
  %v234 = vld [vmem:[%s0 + $0x58] sm:$0xff]
  %v235 = vld [vmem:[%s0 + $0x60] sm:$0xff]
  %v236 = vld [vmem:[%s0 + $0x68] sm:$0xff]
  %v237 = vld [vmem:[%s0 + $0x70] sm:$0xff]
  %v238 = vld [vmem:[%s0 + $0x78] sm:$0xff]
  %v239 = vsel %vm44, %v231, 0.0
  %v240 = vsel %vm44, %v232, 0.0
  %v241 = vadd.f32 %v239, %v240
  %v242 = vsel %vm44, %v233, 0.0
  %v243 = vadd.f32 %v241, %v242
  %v244 = vsel %vm44, %v234, 0.0
  %v245 = vadd.f32 %v243, %v244
  %v246 = vsel %vm44, %v235, 0.0
  %v247 = vadd.f32 %v245, %v246
  %v248 = vsel %vm44, %v236, 0.0
  %v249 = vadd.f32 %v247, %v248
  %v250 = vsel %vm44, %v237, 0.0
  %v251 = vadd.f32 %v249, %v250
  %v252 = vsel %vm44, %v238, 0.0
  %v253 = vadd.f32 %v251, %v252
  %v254 = vrot.slane %v253, 4
  %v255 = vadd.f32 %v253, %v254
  %v256 = vrot.slane %v255, 2
  %v257 = vadd.f32 %v255, %v256
  %v258 = vrot.slane %v257, 1
  %v259 = vadd.f32 %v257, %v258
  %v260 = vmul.f32 %v259, %v72
  %v261 = vsel %vm44, %v231, -inf
  %v262 = vsel %vm44, %v232, -inf
  %v263 = vsel %vm44, %v233, -inf
  %v264 = vsel %vm44, %v234, -inf
  %v265 = vsel %vm44, %v235, -inf
  %v266 = vmax.f32 %v261, %v265
  %v267 = vsel %vm44, %v236, -inf
  %v268 = vmax.f32 %v262, %v267
  %v269 = vsel %vm44, %v237, -inf
  %v270 = vmax.f32 %v263, %v269
  %v271 = vsel %vm44, %v238, -inf
  %v272 = vmax.f32 %v264, %v271
  %v273 = vmax.f32 %v266, %v268
  %v274 = vmax.f32 %v270, %v272
  %v275 = vmax.f32 %v273, %v274
  %v276 = vrot.slane %v275, 4
  %v277 = vmax.f32 %v275, %v276
  %v278 = vrot.slane %v277, 2
  %v279 = vmax.f32 %v277, %v278
  %v280 = vrot.slane %v279, 1
  %v281 = vmax.f32 %v279, %v280
  %v282 = vld [vmem:[%s2] sm:$0xff]
  %v283 = vld [vmem:[%s2 + $0x8] sm:$0xff]
  %v284 = vld [vmem:[%s2 + $0x10] sm:$0xff]
  %v285 = vld [vmem:[%s2 + $0x18] sm:$0xff]
  %v287 = vsel %vm44, %v260, 0
  %289 = vmatpush.msra.mxu0 0.0
  %290 = vmatpush.msra.mxu0 0.0
  %291 = vmatpush.msra.mxu0 0.0
  %292 = vmatpush.msra.mxu0 0.0
  %293 = vmatpush.msra.mxu0 0.0
  %294 = vmatpush.msra.mxu0 0.0
  %295 = vmatpush.msra.mxu0 0.0
  %296 = vmatpush.msra.mxu0 0.0
  %297 = vmatpush.msra.mxu0 0.0
  %298 = vmatpush.msra.mxu0 0.0
  %299 = vmatpush.msra.mxu0 0.0
  %300 = vmatpush.msra.mxu0 0.0
  %301 = vmatpush.msra.mxu0 %v285
  %302 = vmatpush.msra.mxu0 %v284
  %303 = vmatpush.msra.mxu0 %v283
  %304 = vmatpush.msra.mxu0 %v282
  %305 = vmatmul.f32.gmra.mxu0 %v287
  %v306 = vpop.f32.mrf.mxu0
  %v307 = vadd.f32 0.0, %v306
  %308 = vdwg.mxu0
  %v309 = vmax.f32 %v307, 0.0
  %v310 = vld [vmem:[%s3] sm:$0xff]
  %v312 = vsel %vm44, %v281, 0
  %314 = vmatpush.msra.mxu0 0.0
  %315 = vmatpush.msra.mxu0 0.0
  %316 = vmatpush.msra.mxu0 0.0
  %317 = vmatpush.msra.mxu0 0.0
  %318 = vmatpush.msra.mxu0 0.0
  %319 = vmatpush.msra.mxu0 0.0
  %320 = vmatpush.msra.mxu0 0.0
  %321 = vmatpush.msra.mxu0 0.0
  %322 = vmatpush.msra.mxu0 0.0
  %323 = vmatpush.msra.mxu0 0.0
  %324 = vmatpush.msra.mxu0 0.0
  %325 = vmatpush.msra.mxu0 0.0
  %326 = vmatpush.msra.mxu0 %v285
  %327 = vmatpush.msra.mxu0 %v284
  %328 = vmatpush.msra.mxu0 %v283
  %329 = vmatpush.msra.mxu0 %v282
  %330 = vmatmul.f32.gmra.mxu0 %v312
  %v331 = vpop.f32.mrf.mxu0
  %v332 = vadd.f32 0.0, %v331
  %333 = vdwg.mxu0
  %v334 = vmax.f32 %v332, 0.0
  %v336 = vsel %vm148, %v334, 0
  %338 = vmatpush.msra.mxu0 0.0
  %339 = vmatpush.msra.mxu0 0.0
  %340 = vmatpush.msra.mxu0 0.0
  %341 = vmatpush.msra.mxu0 0.0
  %342 = vmatpush.msra.mxu0 0.0
  %343 = vmatpush.msra.mxu0 0.0
  %344 = vmatpush.msra.mxu0 0.0
  %345 = vmatpush.msra.mxu0 0.0
  %346 = vmatpush.msra.mxu0 0.0
  %347 = vmatpush.msra.mxu0 0.0
  %348 = vmatpush.msra.mxu0 0.0
  %349 = vmatpush.msra.mxu0 0.0
  %350 = vmatpush.msra.mxu0 0.0
  %351 = vmatpush.msra.mxu0 0.0
  %352 = vmatpush.msra.mxu0 0.0
  %353 = vmatpush.msra.mxu0 %v310
  %354 = vmatmul.f32.gmra.mxu0 %v336
  %v355 = vpop.f32.mrf.mxu0
  %v356 = vadd.f32 0.0, %v355
  %357 = vdwg.mxu0
  %v359 = vsel %vm148, %v309, 0
  %361 = vmatpush.msra.mxu0 0.0
  %362 = vmatpush.msra.mxu0 0.0
  %363 = vmatpush.msra.mxu0 0.0
  %364 = vmatpush.msra.mxu0 0.0
  %365 = vmatpush.msra.mxu0 0.0
  %366 = vmatpush.msra.mxu0 0.0
  %367 = vmatpush.msra.mxu0 0.0
  %368 = vmatpush.msra.mxu0 0.0
  %369 = vmatpush.msra.mxu0 0.0
  %370 = vmatpush.msra.mxu0 0.0
  %371 = vmatpush.msra.mxu0 0.0
  %372 = vmatpush.msra.mxu0 0.0
  %373 = vmatpush.msra.mxu0 0.0
  %374 = vmatpush.msra.mxu0 0.0
  %375 = vmatpush.msra.mxu0 0.0
  %376 = vmatpush.msra.mxu0 %v310
  %377 = vmatmul.f32.gmra.mxu0 %v359
  %v378 = vpop.f32.mrf.mxu0
  %v379 = vadd.f32 %v356, %v378
  %380 = vdwg.mxu0
  %v381 = vsub.f32 0.0, %v379
  %v382 = vmul.f32 %v381, 1.442695
  %v383 = vpow.pop %v382
  %v384 = vadd.f32 %v383, 1.0
  %v385 = vrcp.pop %v384
  %v386 = vmul.f32 %v384, %v385
  %v387 = vsub.f32 1.0, %v386
  %v388 = vmul.f32 %v385, %v387
  %v389 = vadd.f32 %v385, %v388
  %vm390 = vweird.f32 %v384
  %vm391 = vweird.f32 %v385
  %vm392 = vmor %vm390, %vm391
  %v393 = vsel %vm392, %v385, %v389
  %v394 = vand.u32 2147483647, %v384
  %vm395 = vcmp.eq.f32.partialorder %v394, 8.507059e+37
  %v396 = vand.u32 %v384, 2147483648
  %v397 = vor.u32 1.1754944e-38, %v396
  %v398 = vsel %vm395, %v397, %v393
  %v399 = vmul.f32 1.0, %v398
  %v400 = vperm.slane %v399, 0
  %v401 = vmul.f32 %v231, %v400
  %v402 = vmul.f32 %v232, %v400
  %v403 = vmul.f32 %v233, %v400
  %v404 = vmul.f32 %v234, %v400
  %v405 = vmul.f32 %v235, %v400
  %v406 = vmul.f32 %v236, %v400
  %v407 = vmul.f32 %v237, %v400
  %v408 = vmul.f32 %v238, %v400
  %409 = vst.msk [vmem:[#allocation2 + $0x40] sm:$0xff] %vm44, %v401
  %410 = vst.msk [vmem:[#allocation2 + $0x48] sm:$0xff] %vm44, %v402
  %411 = vst.msk [vmem:[#allocation2 + $0x50] sm:$0xff] %vm44, %v403
  %412 = vst.msk [vmem:[#allocation2 + $0x58] sm:$0xff] %vm44, %v404
  %413 = vst.msk [vmem:[#allocation2 + $0x60] sm:$0xff] %vm44, %v405
  %414 = vst.msk [vmem:[#allocation2 + $0x68] sm:$0xff] %vm44, %v406
  %415 = vst.msk [vmem:[#allocation2 + $0x70] sm:$0xff] %vm44, %v407
  %416 = vst.msk [vmem:[#allocation2 + $0x78] sm:$0xff] %vm44, %v408
  %v417 = vld [vmem:[#allocation2] sm:$0xff]
  %v418 = vld [vmem:[#allocation2 + $0x8] sm:$0xff]
  %v419 = vld [vmem:[#allocation2 + $0x10] sm:$0xff]
  %v420 = vld [vmem:[#allocation2 + $0x18] sm:$0xff]
  %v421 = vld [vmem:[#allocation2 + $0x20] sm:$0xff]
  %v422 = vld [vmem:[#allocation2 + $0x28] sm:$0xff]
  %v423 = vld [vmem:[#allocation2 + $0x30] sm:$0xff]
  %v424 = vld [vmem:[#allocation2 + $0x38] sm:$0xff]
  %v425 = vld [vmem:[#allocation2 + $0x40] sm:$0xff]
  %v426 = vld [vmem:[#allocation2 + $0x48] sm:$0xff]
  %v427 = vld [vmem:[#allocation2 + $0x50] sm:$0xff]
  %v428 = vld [vmem:[#allocation2 + $0x58] sm:$0xff]
  %v429 = vld [vmem:[#allocation2 + $0x60] sm:$0xff]
  %v430 = vld [vmem:[#allocation2 + $0x68] sm:$0xff]
  %v431 = vld [vmem:[#allocation2 + $0x70] sm:$0xff]
  %v432 = vld [vmem:[#allocation2 + $0x78] sm:$0xff]
  %v433 = vpack.c.bf16 %v418, %v417
  %v434 = vpack.c.bf16 %v420, %v419
  %v435 = vpack.c.bf16 %v422, %v421
  %v436 = vpack.c.bf16 %v424, %v423
  %v437 = vpack.c.bf16 %v426, %v425
  %v438 = vpack.c.bf16 %v428, %v427
  %v439 = vpack.c.bf16 %v430, %v429
  %v440 = vpack.c.bf16 %v432, %v431
  %v441 = vld [vmem:[%s4] sm:$0xff]
  %v442 = vld [vmem:[%s4 + $0x8] sm:$0xff]
  %v443 = vld [vmem:[%s4 + $0x10] sm:$0xff]
  %v444 = vld [vmem:[%s4 + $0x18] sm:$0xff]
  %v445 = vpack.c.bf16 %v442, %v441
  %v446 = vpack.c.bf16 %v444, %v443
  %v448 = vsel %vm44, %v433, 0
  %v451 = vsel %vm44, %v434, 0
  %v454 = vsel %vm44, %v435, 0
  %v457 = vsel %vm44, %v436, 0
  %v460 = vsel %vm44, %v437, 0
  %v463 = vsel %vm44, %v438, 0
  %v466 = vsel %vm44, %v439, 0
  %v469 = vsel %vm44, %v440, 0
  %471 = vmatpush.bf16.msra.mxu0 0
  %472 = vmatpush.bf16.msra.mxu0 0
  %473 = vmatpush.bf16.msra.mxu0 0
  %474 = vmatpush.bf16.msra.mxu0 0
  %475 = vmatpush.bf16.msra.mxu0 0
  %476 = vmatpush.bf16.msra.mxu0 0
  %477 = vmatpush.bf16.msra.mxu0 %v446
  %478 = vmatpush.bf16.msra.mxu0 %v445
  %479 = vmatmul.bf16.gmra.mxu0 %v448
  %v480 = vpop.f32.mrf.mxu0
  %v481 = vadd.f32 0.0, %v480
  %v482 = vpop.f32.mrf.mxu0
  %v483 = vadd.f32 0.0, %v482
  %484 = vmatmul.bf16.gmra.mxu0 %v451
  %v485 = vpop.f32.mrf.mxu0
  %v486 = vadd.f32 0.0, %v485
  %v487 = vpop.f32.mrf.mxu0
  %v488 = vadd.f32 0.0, %v487
  %489 = vmatmul.bf16.gmra.mxu0 %v454
  %v490 = vpop.f32.mrf.mxu0
  %v491 = vadd.f32 0.0, %v490
  %v492 = vpop.f32.mrf.mxu0
  %v493 = vadd.f32 0.0, %v492
  %494 = vmatmul.bf16.gmra.mxu0 %v457
  %v495 = vpop.f32.mrf.mxu0
  %v496 = vadd.f32 0.0, %v495
  %v497 = vpop.f32.mrf.mxu0
  %v498 = vadd.f32 0.0, %v497
  %499 = vmatmul.bf16.gmra.mxu0 %v460
  %v500 = vpop.f32.mrf.mxu0
  %v501 = vadd.f32 0.0, %v500
  %v502 = vpop.f32.mrf.mxu0
  %v503 = vadd.f32 0.0, %v502
  %504 = vmatmul.bf16.gmra.mxu0 %v463
  %v505 = vpop.f32.mrf.mxu0
  %v506 = vadd.f32 0.0, %v505
  %v507 = vpop.f32.mrf.mxu0
  %v508 = vadd.f32 0.0, %v507
  %509 = vmatmul.bf16.gmra.mxu0 %v466
  %v510 = vpop.f32.mrf.mxu0
  %v511 = vadd.f32 0.0, %v510
  %v512 = vpop.f32.mrf.mxu0
  %v513 = vadd.f32 0.0, %v512
  %514 = vmatmul.bf16.gmra.mxu0 %v469
  %v515 = vpop.f32.mrf.mxu0
  %v516 = vadd.f32 0.0, %v515
  %v517 = vpop.f32.mrf.mxu0
  %v518 = vadd.f32 0.0, %v517
  %519 = vdwg.mxu0
  %vm520 = vcmask 130048
  %v521 = vsel %vm520, %v481, 0.0
  %v522 = vsel %vm520, %v483, 0.0
  %v523 = vadd.f32 %v521, %v522
  %v524 = vsel %vm520, %v486, 0.0
  %v525 = vadd.f32 %v523, %v524
  %v526 = vsel %vm520, %v488, 0.0
  %v527 = vadd.f32 %v525, %v526
  %v528 = vsel %vm520, %v491, 0.0
  %v529 = vadd.f32 %v527, %v528
  %v530 = vsel %vm520, %v493, 0.0
  %v531 = vadd.f32 %v529, %v530
  %v532 = vsel %vm520, %v496, 0.0
  %v533 = vadd.f32 %v531, %v532
  %v534 = vsel %vm520, %v498, 0.0
  %v535 = vadd.f32 %v533, %v534
  %v536 = vsel %vm520, %v501, 0.0
  %v537 = vadd.f32 %v535, %v536
  %v538 = vsel %vm520, %v503, 0.0
  %v539 = vadd.f32 %v537, %v538
  %v540 = vsel %vm520, %v506, 0.0
  %v541 = vadd.f32 %v539, %v540
  %v542 = vsel %vm520, %v508, 0.0
  %v543 = vadd.f32 %v541, %v542
  %v544 = vsel %vm520, %v511, 0.0
  %v545 = vadd.f32 %v543, %v544
  %v546 = vsel %vm520, %v513, 0.0
  %v547 = vadd.f32 %v545, %v546
  %v548 = vsel %vm520, %v516, 0.0
  %v549 = vadd.f32 %v547, %v548
  %v550 = vsel %vm520, %v518, 0.0
  %v551 = vadd.f32 %v549, %v550
  %v552 = vrot.slane %v551, 4
  %v553 = vadd.f32 %v551, %v552
  %v554 = vrot.slane %v553, 2
  %v555 = vadd.f32 %v553, %v554
  %v556 = vrot.slane %v555, 1
  %v557 = vadd.f32 %v555, %v556
  %v558 = vrcp.pop 128.0
  %v559 = vmul.f32 128.0, %v558
  %v560 = vsub.f32 1.0, %v559
  %v561 = vmul.f32 %v558, %v560
  %v562 = vadd.f32 %v558, %v561
  %vm563 = vweird.f32 %v558
  %v564 = vsel %vm563, %v558, %v562
  %v565 = vmul.f32 %v557, %v564
  %v566 = vsub.f32 %v481, %v565
  %v567 = vsub.f32 %v483, %v565
  %v568 = vsub.f32 %v486, %v565
  %v569 = vsub.f32 %v488, %v565
  %v570 = vsub.f32 %v491, %v565
  %v571 = vsub.f32 %v493, %v565
  %v572 = vsub.f32 %v496, %v565
  %v573 = vsub.f32 %v498, %v565
  %v574 = vsub.f32 %v501, %v565
  %v575 = vsub.f32 %v503, %v565
  %v576 = vsub.f32 %v506, %v565
  %v577 = vsub.f32 %v508, %v565
  %v578 = vsub.f32 %v511, %v565
  %v579 = vsub.f32 %v513, %v565
  %v580 = vsub.f32 %v516, %v565
  %v581 = vsub.f32 %v518, %v565
  %v582 = vmul.f32 %v566, %v566
  %v583 = vmul.f32 %v567, %v567
  %v584 = vmul.f32 %v568, %v568
  %v585 = vmul.f32 %v569, %v569
  %v586 = vmul.f32 %v570, %v570
  %v587 = vmul.f32 %v571, %v571
  %v588 = vmul.f32 %v572, %v572
  %v589 = vmul.f32 %v573, %v573
  %v590 = vmul.f32 %v574, %v574
  %v591 = vmul.f32 %v575, %v575
  %v592 = vmul.f32 %v576, %v576
  %v593 = vmul.f32 %v577, %v577
  %v594 = vmul.f32 %v578, %v578
  %v595 = vmul.f32 %v579, %v579
  %v596 = vmul.f32 %v580, %v580
  %v597 = vmul.f32 %v581, %v581
  %v598 = vsel %vm520, %v582, 0.0
  %v599 = vsel %vm520, %v583, 0.0
  %v600 = vadd.f32 %v598, %v599
  %v601 = vsel %vm520, %v584, 0.0
  %v602 = vadd.f32 %v600, %v601
  %v603 = vsel %vm520, %v585, 0.0
  %v604 = vadd.f32 %v602, %v603
  %v605 = vsel %vm520, %v586, 0.0
  %v606 = vadd.f32 %v604, %v605
  %v607 = vsel %vm520, %v587, 0.0
  %v608 = vadd.f32 %v606, %v607
  %v609 = vsel %vm520, %v588, 0.0
  %v610 = vadd.f32 %v608, %v609
  %v611 = vsel %vm520, %v589, 0.0
  %v612 = vadd.f32 %v610, %v611
  %v613 = vsel %vm520, %v590, 0.0
  %v614 = vadd.f32 %v612, %v613
  %v615 = vsel %vm520, %v591, 0.0
  %v616 = vadd.f32 %v614, %v615
  %v617 = vsel %vm520, %v592, 0.0
  %v618 = vadd.f32 %v616, %v617
  %v619 = vsel %vm520, %v593, 0.0
  %v620 = vadd.f32 %v618, %v619
  %v621 = vsel %vm520, %v594, 0.0
  %v622 = vadd.f32 %v620, %v621
  %v623 = vsel %vm520, %v595, 0.0
  %v624 = vadd.f32 %v622, %v623
  %v625 = vsel %vm520, %v596, 0.0
  %v626 = vadd.f32 %v624, %v625
  %v627 = vsel %vm520, %v597, 0.0
  %v628 = vadd.f32 %v626, %v627
  %v629 = vrot.slane %v628, 4
  %v630 = vadd.f32 %v628, %v629
  %v631 = vrot.slane %v630, 2
  %v632 = vadd.f32 %v630, %v631
  %v633 = vrot.slane %v632, 1
  %v634 = vadd.f32 %v632, %v633
  %v635 = vmul.f32 %v634, %v564
  %v636 = vadd.f32 %v635, 1e-05
  %v637 = vrsqrt.pop %v636
  %v638 = vmul.f32 %v637, %v636
  %v639 = vmul.f32 %v638, %v637
  %v640 = vmul.f32 0.5, %v639
  %v641 = vsub.f32 1.5, %v640
  %v642 = vmul.f32 %v637, %v641
  %vm643 = vweird.f32 %v636
  %vm644 = vweird.f32 %v637
  %vm645 = vmor %vm643, %vm644
  %v646 = vsel %vm645, %v637, %v642
  %v647 = vmul.f32 %v566, %v646
  %v648 = vmul.f32 %v567, %v646
  %v649 = vmul.f32 %v568, %v646
  %v650 = vmul.f32 %v569, %v646
  %v651 = vmul.f32 %v570, %v646
  %v652 = vmul.f32 %v571, %v646
  %v653 = vmul.f32 %v572, %v646
  %v654 = vmul.f32 %v573, %v646
  %v655 = vmul.f32 %v574, %v646
  %v656 = vmul.f32 %v575, %v646
  %v657 = vmul.f32 %v576, %v646
  %v658 = vmul.f32 %v577, %v646
  %v659 = vmul.f32 %v578, %v646
  %v660 = vmul.f32 %v579, %v646
  %v661 = vmul.f32 %v580, %v646
  %v662 = vmul.f32 %v581, %v646
  %v663 = vmax.f32 %v647, 0.0
  %v664 = vmax.f32 %v648, 0.0
  %v665 = vmax.f32 %v649, 0.0
  %v666 = vmax.f32 %v650, 0.0
  %v667 = vmax.f32 %v651, 0.0
  %v668 = vmax.f32 %v652, 0.0
  %v669 = vmax.f32 %v653, 0.0
  %v670 = vmax.f32 %v654, 0.0
  %v671 = vmax.f32 %v655, 0.0
  %v672 = vmax.f32 %v656, 0.0
  %v673 = vmax.f32 %v657, 0.0
  %v674 = vmax.f32 %v658, 0.0
  %v675 = vmax.f32 %v659, 0.0
  %v676 = vmax.f32 %v660, 0.0
  %v677 = vmax.f32 %v661, 0.0
  %v678 = vmax.f32 %v662, 0.0
  %v679 = vpack.c.bf16 %v664, %v663
  %v680 = vpack.c.bf16 %v666, %v665
  %v681 = vpack.c.bf16 %v668, %v667
  %v682 = vpack.c.bf16 %v670, %v669
  %v683 = vpack.c.bf16 %v672, %v671
  %v684 = vpack.c.bf16 %v674, %v673
  %v685 = vpack.c.bf16 %v676, %v675
  %v686 = vpack.c.bf16 %v678, %v677
  %v687 = vld [vmem:[%s5] sm:$0xff]
  %v688 = vld [vmem:[%s5 + $0x8] sm:$0xff]
  %v689 = vpack.c.bf16 %v688, %v687
  %v691 = vsel %vm520, %v679, 0
  %v694 = vsel %vm520, %v680, 0
  %v697 = vsel %vm520, %v681, 0
  %v700 = vsel %vm520, %v682, 0
  %v703 = vsel %vm520, %v683, 0
  %v706 = vsel %vm520, %v684, 0
  %v709 = vsel %vm520, %v685, 0
  %v712 = vsel %vm520, %v686, 0
  %714 = vmatpush.bf16.msra.mxu0 0
  %715 = vmatpush.bf16.msra.mxu0 0
  %716 = vmatpush.bf16.msra.mxu0 0
  %717 = vmatpush.bf16.msra.mxu0 0
  %718 = vmatpush.bf16.msra.mxu0 0
  %719 = vmatpush.bf16.msra.mxu0 0
  %720 = vmatpush.bf16.msra.mxu0 0
  %721 = vmatpush.bf16.msra.mxu0 %v689
  %722 = vmatmul.bf16.gmra.mxu0 %v691
  %v723 = vpop.f32.mrf.mxu0
  %v724 = vadd.f32 0.0, %v723
  %v725 = vpop.f32.mrf.mxu0
  %v726 = vadd.f32 0.0, %v725
  %727 = vmatmul.bf16.gmra.mxu0 %v694
  %v728 = vpop.f32.mrf.mxu0
  %v729 = vadd.f32 0.0, %v728
  %v730 = vpop.f32.mrf.mxu0
  %v731 = vadd.f32 0.0, %v730
  %732 = vmatmul.bf16.gmra.mxu0 %v697
  %v733 = vpop.f32.mrf.mxu0
  %v734 = vadd.f32 0.0, %v733
  %v735 = vpop.f32.mrf.mxu0
  %v736 = vadd.f32 0.0, %v735
  %737 = vmatmul.bf16.gmra.mxu0 %v700
  %v738 = vpop.f32.mrf.mxu0
  %v739 = vadd.f32 0.0, %v738
  %v740 = vpop.f32.mrf.mxu0
  %v741 = vadd.f32 0.0, %v740
  %742 = vmatmul.bf16.gmra.mxu0 %v703
  %v743 = vpop.f32.mrf.mxu0
  %v744 = vadd.f32 0.0, %v743
  %v745 = vpop.f32.mrf.mxu0
  %v746 = vadd.f32 0.0, %v745
  %747 = vmatmul.bf16.gmra.mxu0 %v706
  %v748 = vpop.f32.mrf.mxu0
  %v749 = vadd.f32 0.0, %v748
  %v750 = vpop.f32.mrf.mxu0
  %v751 = vadd.f32 0.0, %v750
  %752 = vmatmul.bf16.gmra.mxu0 %v709
  %v753 = vpop.f32.mrf.mxu0
  %v754 = vadd.f32 0.0, %v753
  %v755 = vpop.f32.mrf.mxu0
  %v756 = vadd.f32 0.0, %v755
  %757 = vmatmul.bf16.gmra.mxu0 %v712
  %v758 = vpop.f32.mrf.mxu0
  %v759 = vadd.f32 0.0, %v758
  %v760 = vpop.f32.mrf.mxu0
  %v761 = vadd.f32 0.0, %v760
  %762 = vdwg.mxu0
  %v763 = vsel %vm520, %v724, 0.0
  %v764 = vsel %vm520, %v726, 0.0
  %v765 = vadd.f32 %v763, %v764
  %v766 = vsel %vm520, %v729, 0.0
  %v767 = vadd.f32 %v765, %v766
  %v768 = vsel %vm520, %v731, 0.0
  %v769 = vadd.f32 %v767, %v768
  %v770 = vsel %vm520, %v734, 0.0
  %v771 = vadd.f32 %v769, %v770
  %v772 = vsel %vm520, %v736, 0.0
  %v773 = vadd.f32 %v771, %v772
  %v774 = vsel %vm520, %v739, 0.0
  %v775 = vadd.f32 %v773, %v774
  %v776 = vsel %vm520, %v741, 0.0
  %v777 = vadd.f32 %v775, %v776
  %v778 = vsel %vm520, %v744, 0.0
  %v779 = vadd.f32 %v777, %v778
  %v780 = vsel %vm520, %v746, 0.0
  %v781 = vadd.f32 %v779, %v780
  %v782 = vsel %vm520, %v749, 0.0
  %v783 = vadd.f32 %v781, %v782
  %v784 = vsel %vm520, %v751, 0.0
  %v785 = vadd.f32 %v783, %v784
  %v786 = vsel %vm520, %v754, 0.0
  %v787 = vadd.f32 %v785, %v786
  %v788 = vsel %vm520, %v756, 0.0
  %v789 = vadd.f32 %v787, %v788
  %v790 = vsel %vm520, %v759, 0.0
  %v791 = vadd.f32 %v789, %v790
  %v792 = vsel %vm520, %v761, 0.0
  %v793 = vadd.f32 %v791, %v792
  %v794 = vrot.slane %v793, 4
  %v795 = vadd.f32 %v793, %v794
  %v796 = vrot.slane %v795, 2
  %v797 = vadd.f32 %v795, %v796
  %v798 = vrot.slane %v797, 1
  %v799 = vadd.f32 %v797, %v798
  %v800 = vmul.f32 %v799, %v564
  %v801 = vsub.f32 %v724, %v800
  %v802 = vsub.f32 %v726, %v800
  %v803 = vsub.f32 %v729, %v800
  %v804 = vsub.f32 %v731, %v800
  %v805 = vsub.f32 %v734, %v800
  %v806 = vsub.f32 %v736, %v800
  %v807 = vsub.f32 %v739, %v800
  %v808 = vsub.f32 %v741, %v800
  %v809 = vsub.f32 %v744, %v800
  %v810 = vsub.f32 %v746, %v800
  %v811 = vsub.f32 %v749, %v800
  %v812 = vsub.f32 %v751, %v800
  %v813 = vsub.f32 %v754, %v800
  %v814 = vsub.f32 %v756, %v800
  %v815 = vsub.f32 %v759, %v800
  %v816 = vsub.f32 %v761, %v800
  %v817 = vmul.f32 %v801, %v801
  %v818 = vmul.f32 %v802, %v802
  %v819 = vmul.f32 %v803, %v803
  %v820 = vmul.f32 %v804, %v804
  %v821 = vmul.f32 %v805, %v805
  %v822 = vmul.f32 %v806, %v806
  %v823 = vmul.f32 %v807, %v807
  %v824 = vmul.f32 %v808, %v808
  %v825 = vmul.f32 %v809, %v809
  %v826 = vmul.f32 %v810, %v810
  %v827 = vmul.f32 %v811, %v811
  %v828 = vmul.f32 %v812, %v812
  %v829 = vmul.f32 %v813, %v813
  %v830 = vmul.f32 %v814, %v814
  %v831 = vmul.f32 %v815, %v815
  %v832 = vmul.f32 %v816, %v816
  %v833 = vsel %vm520, %v817, 0.0
  %v834 = vsel %vm520, %v818, 0.0
  %v835 = vadd.f32 %v833, %v834
  %v836 = vsel %vm520, %v819, 0.0
  %v837 = vadd.f32 %v835, %v836
  %v838 = vsel %vm520, %v820, 0.0
  %v839 = vadd.f32 %v837, %v838
  %v840 = vsel %vm520, %v821, 0.0
  %v841 = vadd.f32 %v839, %v840
  %v842 = vsel %vm520, %v822, 0.0
  %v843 = vadd.f32 %v841, %v842
  %v844 = vsel %vm520, %v823, 0.0
  %v845 = vadd.f32 %v843, %v844
  %v846 = vsel %vm520, %v824, 0.0
  %v847 = vadd.f32 %v845, %v846
  %v848 = vsel %vm520, %v825, 0.0
  %v849 = vadd.f32 %v847, %v848
  %v850 = vsel %vm520, %v826, 0.0
  %v851 = vadd.f32 %v849, %v850
  %v852 = vsel %vm520, %v827, 0.0
  %v853 = vadd.f32 %v851, %v852
  %v854 = vsel %vm520, %v828, 0.0
  %v855 = vadd.f32 %v853, %v854
  %v856 = vsel %vm520, %v829, 0.0
  %v857 = vadd.f32 %v855, %v856
  %v858 = vsel %vm520, %v830, 0.0
  %v859 = vadd.f32 %v857, %v858
  %v860 = vsel %vm520, %v831, 0.0
  %v861 = vadd.f32 %v859, %v860
  %v862 = vsel %vm520, %v832, 0.0
  %v863 = vadd.f32 %v861, %v862
  %v864 = vrot.slane %v863, 4
  %v865 = vadd.f32 %v863, %v864
  %v866 = vrot.slane %v865, 2
  %v867 = vadd.f32 %v865, %v866
  %v868 = vrot.slane %v867, 1
  %v869 = vadd.f32 %v867, %v868
  %v870 = vmul.f32 %v869, %v564
  %v871 = vadd.f32 %v870, 1e-05
  %v872 = vrsqrt.pop %v871
  %v873 = vmul.f32 %v872, %v871
  %v874 = vmul.f32 %v873, %v872
  %v875 = vmul.f32 0.5, %v874
  %v876 = vsub.f32 1.5, %v875
  %v877 = vmul.f32 %v872, %v876
  %vm878 = vweird.f32 %v871
  %vm879 = vweird.f32 %v872
  %vm880 = vmor %vm878, %vm879
  %v881 = vsel %vm880, %v872, %v877
  %v882 = vmul.f32 %v801, %v881
  %v883 = vmul.f32 %v802, %v881
  %v884 = vmul.f32 %v803, %v881
  %v885 = vmul.f32 %v804, %v881
  %v886 = vmul.f32 %v805, %v881
  %v887 = vmul.f32 %v806, %v881
  %v888 = vmul.f32 %v807, %v881
  %v889 = vmul.f32 %v808, %v881
  %v890 = vmul.f32 %v809, %v881
  %v891 = vmul.f32 %v810, %v881
  %v892 = vmul.f32 %v811, %v881
  %v893 = vmul.f32 %v812, %v881
  %v894 = vmul.f32 %v813, %v881
  %v895 = vmul.f32 %v814, %v881
  %v896 = vmul.f32 %v815, %v881
  %v897 = vmul.f32 %v816, %v881
  %v898 = vmax.f32 %v882, 0.0
  %v899 = vmax.f32 %v883, 0.0
  %v900 = vmax.f32 %v884, 0.0
  %v901 = vmax.f32 %v885, 0.0
  %v902 = vmax.f32 %v886, 0.0
  %v903 = vmax.f32 %v887, 0.0
  %v904 = vmax.f32 %v888, 0.0
  %v905 = vmax.f32 %v889, 0.0
  %v906 = vmax.f32 %v890, 0.0
  %v907 = vmax.f32 %v891, 0.0
  %v908 = vmax.f32 %v892, 0.0
  %v909 = vmax.f32 %v893, 0.0
  %v910 = vmax.f32 %v894, 0.0
  %v911 = vmax.f32 %v895, 0.0
  %v912 = vmax.f32 %v896, 0.0
  %v913 = vmax.f32 %v897, 0.0
  %v914 = vmul.f32 %v898, 0.25
  %v915 = vmul.f32 %v899, 0.25
  %v916 = vmul.f32 %v900, 0.25
  %v917 = vmul.f32 %v901, 0.25
  %v918 = vmul.f32 %v902, 0.25
  %v919 = vmul.f32 %v903, 0.25
  %v920 = vmul.f32 %v904, 0.25
  %v921 = vmul.f32 %v905, 0.25
  %v922 = vmul.f32 %v906, 0.25
  %v923 = vmul.f32 %v907, 0.25
  %v924 = vmul.f32 %v908, 0.25
  %v925 = vmul.f32 %v909, 0.25
  %v926 = vmul.f32 %v910, 0.25
  %v927 = vmul.f32 %v911, 0.25
  %v928 = vmul.f32 %v912, 0.25
  %v929 = vmul.f32 %v913, 0.25
  %v930 = vld [vmem:[%s0] sm:$0xff]
  %v931 = vld [vmem:[%s0 + $0x8] sm:$0xff]
  %v932 = vld [vmem:[%s0 + $0x10] sm:$0xff]
  %v933 = vld [vmem:[%s0 + $0x18] sm:$0xff]
  %v934 = vld [vmem:[%s0 + $0x20] sm:$0xff]
  %v935 = vld [vmem:[%s0 + $0x28] sm:$0xff]
  %v936 = vld [vmem:[%s0 + $0x30] sm:$0xff]
  %v937 = vld [vmem:[%s0 + $0x38] sm:$0xff]
  %v938 = vld [vmem:[%s0 + $0x40] sm:$0xff]
  %v939 = vld [vmem:[%s0 + $0x48] sm:$0xff]
  %v940 = vld [vmem:[%s0 + $0x50] sm:$0xff]
  %v941 = vld [vmem:[%s0 + $0x58] sm:$0xff]
  %v942 = vld [vmem:[%s0 + $0x60] sm:$0xff]
  %v943 = vld [vmem:[%s0 + $0x68] sm:$0xff]
  %v944 = vld [vmem:[%s0 + $0x70] sm:$0xff]
  %v945 = vld [vmem:[%s0 + $0x78] sm:$0xff]
  %v946 = vpack.c.bf16 %v931, %v930
  %v947 = vpack.c.bf16 %v933, %v932
  %v948 = vpack.c.bf16 %v935, %v934
  %v949 = vpack.c.bf16 %v937, %v936
  %v950 = vpack.c.bf16 %v939, %v938
  %v951 = vpack.c.bf16 %v941, %v940
  %v952 = vpack.c.bf16 %v943, %v942
  %v953 = vpack.c.bf16 %v945, %v944
  %v954 = vld [vmem:[%s6] sm:$0xff]
  %v955 = vld [vmem:[%s6 + $0x8] sm:$0xff]
  %v956 = vld [vmem:[%s6 + $0x10] sm:$0xff]
  %v957 = vld [vmem:[%s6 + $0x18] sm:$0xff]
  %v958 = vpack.c.bf16 %v955, %v954
  %v959 = vpack.c.bf16 %v957, %v956
  %v961 = vsel %vm44, %v946, 0
  %v964 = vsel %vm44, %v947, 0
  %v967 = vsel %vm44, %v948, 0
  %v970 = vsel %vm44, %v949, 0
  %v973 = vsel %vm44, %v950, 0
  %v976 = vsel %vm44, %v951, 0
  %v979 = vsel %vm44, %v952, 0
  %v982 = vsel %vm44, %v953, 0
  %984 = vmatpush.bf16.msra.mxu0 0
  %985 = vmatpush.bf16.msra.mxu0 0
  %986 = vmatpush.bf16.msra.mxu0 0
  %987 = vmatpush.bf16.msra.mxu0 0
  %988 = vmatpush.bf16.msra.mxu0 0
  %989 = vmatpush.bf16.msra.mxu0 0
  %990 = vmatpush.bf16.msra.mxu0 %v959
  %991 = vmatpush.bf16.msra.mxu0 %v958
  %992 = vmatmul.bf16.gmra.mxu0 %v961
  %v993 = vpop.f32.mrf.mxu0
  %v994 = vadd.f32 0.0, %v993
  %v995 = vpop.f32.mrf.mxu0
  %v996 = vadd.f32 0.0, %v995
  %997 = vmatmul.bf16.gmra.mxu0 %v964
  %v998 = vpop.f32.mrf.mxu0
  %v999 = vadd.f32 0.0, %v998
  %v1000 = vpop.f32.mrf.mxu0
  %v1001 = vadd.f32 0.0, %v1000
  %1002 = vmatmul.bf16.gmra.mxu0 %v967
  %v1003 = vpop.f32.mrf.mxu0
  %v1004 = vadd.f32 0.0, %v1003
  %v1005 = vpop.f32.mrf.mxu0
  %v1006 = vadd.f32 0.0, %v1005
  %1007 = vmatmul.bf16.gmra.mxu0 %v970
  %v1008 = vpop.f32.mrf.mxu0
  %v1009 = vadd.f32 0.0, %v1008
  %v1010 = vpop.f32.mrf.mxu0
  %v1011 = vadd.f32 0.0, %v1010
  %1012 = vmatmul.bf16.gmra.mxu0 %v973
  %v1013 = vpop.f32.mrf.mxu0
  %v1014 = vadd.f32 0.0, %v1013
  %v1015 = vpop.f32.mrf.mxu0
  %v1016 = vadd.f32 0.0, %v1015
  %1017 = vmatmul.bf16.gmra.mxu0 %v976
  %v1018 = vpop.f32.mrf.mxu0
  %v1019 = vadd.f32 0.0, %v1018
  %v1020 = vpop.f32.mrf.mxu0
  %v1021 = vadd.f32 0.0, %v1020
  %1022 = vmatmul.bf16.gmra.mxu0 %v979
  %v1023 = vpop.f32.mrf.mxu0
  %v1024 = vadd.f32 0.0, %v1023
  %v1025 = vpop.f32.mrf.mxu0
  %v1026 = vadd.f32 0.0, %v1025
  %1027 = vmatmul.bf16.gmra.mxu0 %v982
  %v1028 = vpop.f32.mrf.mxu0
  %v1029 = vadd.f32 0.0, %v1028
  %v1030 = vpop.f32.mrf.mxu0
  %v1031 = vadd.f32 0.0, %v1030
  %1032 = vdwg.mxu0
  %v1033 = vsel %vm520, %v994, 0.0
  %v1034 = vsel %vm520, %v996, 0.0
  %v1035 = vadd.f32 %v1033, %v1034
  %v1036 = vsel %vm520, %v999, 0.0
  %v1037 = vadd.f32 %v1035, %v1036
  %v1038 = vsel %vm520, %v1001, 0.0
  %v1039 = vadd.f32 %v1037, %v1038
  %v1040 = vsel %vm520, %v1004, 0.0
  %v1041 = vadd.f32 %v1039, %v1040
  %v1042 = vsel %vm520, %v1006, 0.0
  %v1043 = vadd.f32 %v1041, %v1042
  %v1044 = vsel %vm520, %v1009, 0.0
  %v1045 = vadd.f32 %v1043, %v1044
  %v1046 = vsel %vm520, %v1011, 0.0
  %v1047 = vadd.f32 %v1045, %v1046
  %v1048 = vsel %vm520, %v1014, 0.0
  %v1049 = vadd.f32 %v1047, %v1048
  %v1050 = vsel %vm520, %v1016, 0.0
  %v1051 = vadd.f32 %v1049, %v1050
  %v1052 = vsel %vm520, %v1019, 0.0
  %v1053 = vadd.f32 %v1051, %v1052
  %v1054 = vsel %vm520, %v1021, 0.0
  %v1055 = vadd.f32 %v1053, %v1054
  %v1056 = vsel %vm520, %v1024, 0.0
  %v1057 = vadd.f32 %v1055, %v1056
  %v1058 = vsel %vm520, %v1026, 0.0
  %v1059 = vadd.f32 %v1057, %v1058
  %v1060 = vsel %vm520, %v1029, 0.0
  %v1061 = vadd.f32 %v1059, %v1060
  %v1062 = vsel %vm520, %v1031, 0.0
  %v1063 = vadd.f32 %v1061, %v1062
  %v1064 = vrot.slane %v1063, 4
  %v1065 = vadd.f32 %v1063, %v1064
  %v1066 = vrot.slane %v1065, 2
  %v1067 = vadd.f32 %v1065, %v1066
  %v1068 = vrot.slane %v1067, 1
  %v1069 = vadd.f32 %v1067, %v1068
  %v1070 = vmul.f32 %v1069, %v564
  %v1071 = vsub.f32 %v994, %v1070
  %v1072 = vsub.f32 %v996, %v1070
  %v1073 = vsub.f32 %v999, %v1070
  %v1074 = vsub.f32 %v1001, %v1070
  %v1075 = vsub.f32 %v1004, %v1070
  %v1076 = vsub.f32 %v1006, %v1070
  %v1077 = vsub.f32 %v1009, %v1070
  %v1078 = vsub.f32 %v1011, %v1070
  %v1079 = vsub.f32 %v1014, %v1070
  %v1080 = vsub.f32 %v1016, %v1070
  %v1081 = vsub.f32 %v1019, %v1070
  %v1082 = vsub.f32 %v1021, %v1070
  %v1083 = vsub.f32 %v1024, %v1070
  %v1084 = vsub.f32 %v1026, %v1070
  %v1085 = vsub.f32 %v1029, %v1070
  %v1086 = vsub.f32 %v1031, %v1070
  %v1087 = vmul.f32 %v1071, %v1071
  %v1088 = vmul.f32 %v1072, %v1072
  %v1089 = vmul.f32 %v1073, %v1073
  %v1090 = vmul.f32 %v1074, %v1074
  %v1091 = vmul.f32 %v1075, %v1075
  %v1092 = vmul.f32 %v1076, %v1076
  %v1093 = vmul.f32 %v1077, %v1077
  %v1094 = vmul.f32 %v1078, %v1078
  %v1095 = vmul.f32 %v1079, %v1079
  %v1096 = vmul.f32 %v1080, %v1080
  %v1097 = vmul.f32 %v1081, %v1081
  %v1098 = vmul.f32 %v1082, %v1082
  %v1099 = vmul.f32 %v1083, %v1083
  %v1100 = vmul.f32 %v1084, %v1084
  %v1101 = vmul.f32 %v1085, %v1085
  %v1102 = vmul.f32 %v1086, %v1086
  %v1103 = vsel %vm520, %v1087, 0.0
  %v1104 = vsel %vm520, %v1088, 0.0
  %v1105 = vadd.f32 %v1103, %v1104
  %v1106 = vsel %vm520, %v1089, 0.0
  %v1107 = vadd.f32 %v1105, %v1106
  %v1108 = vsel %vm520, %v1090, 0.0
  %v1109 = vadd.f32 %v1107, %v1108
  %v1110 = vsel %vm520, %v1091, 0.0
  %v1111 = vadd.f32 %v1109, %v1110
  %v1112 = vsel %vm520, %v1092, 0.0
  %v1113 = vadd.f32 %v1111, %v1112
  %v1114 = vsel %vm520, %v1093, 0.0
  %v1115 = vadd.f32 %v1113, %v1114
  %v1116 = vsel %vm520, %v1094, 0.0
  %v1117 = vadd.f32 %v1115, %v1116
  %v1118 = vsel %vm520, %v1095, 0.0
  %v1119 = vadd.f32 %v1117, %v1118
  %v1120 = vsel %vm520, %v1096, 0.0
  %v1121 = vadd.f32 %v1119, %v1120
  %v1122 = vsel %vm520, %v1097, 0.0
  %v1123 = vadd.f32 %v1121, %v1122
  %v1124 = vsel %vm520, %v1098, 0.0
  %v1125 = vadd.f32 %v1123, %v1124
  %v1126 = vsel %vm520, %v1099, 0.0
  %v1127 = vadd.f32 %v1125, %v1126
  %v1128 = vsel %vm520, %v1100, 0.0
  %v1129 = vadd.f32 %v1127, %v1128
  %v1130 = vsel %vm520, %v1101, 0.0
  %v1131 = vadd.f32 %v1129, %v1130
  %v1132 = vsel %vm520, %v1102, 0.0
  %v1133 = vadd.f32 %v1131, %v1132
  %v1134 = vrot.slane %v1133, 4
  %v1135 = vadd.f32 %v1133, %v1134
  %v1136 = vrot.slane %v1135, 2
  %v1137 = vadd.f32 %v1135, %v1136
  %v1138 = vrot.slane %v1137, 1
  %v1139 = vadd.f32 %v1137, %v1138
  %v1140 = vmul.f32 %v1139, %v564
  %v1141 = vadd.f32 %v1140, 1e-05
  %v1142 = vrsqrt.pop %v1141
  %v1143 = vmul.f32 %v1142, %v1141
  %v1144 = vmul.f32 %v1143, %v1142
  %v1145 = vmul.f32 0.5, %v1144
  %v1146 = vsub.f32 1.5, %v1145
  %v1147 = vmul.f32 %v1142, %v1146
  %vm1148 = vweird.f32 %v1141
  %vm1149 = vweird.f32 %v1142
  %vm1150 = vmor %vm1148, %vm1149
  %v1151 = vsel %vm1150, %v1142, %v1147
  %v1152 = vmul.f32 %v1071, %v1151
  %v1153 = vmul.f32 %v1072, %v1151
  %v1154 = vmul.f32 %v1073, %v1151
  %v1155 = vmul.f32 %v1074, %v1151
  %v1156 = vmul.f32 %v1075, %v1151
  %v1157 = vmul.f32 %v1076, %v1151
  %v1158 = vmul.f32 %v1077, %v1151
  %v1159 = vmul.f32 %v1078, %v1151
  %v1160 = vmul.f32 %v1079, %v1151
  %v1161 = vmul.f32 %v1080, %v1151
  %v1162 = vmul.f32 %v1081, %v1151
  %v1163 = vmul.f32 %v1082, %v1151
  %v1164 = vmul.f32 %v1083, %v1151
  %v1165 = vmul.f32 %v1084, %v1151
  %v1166 = vmul.f32 %v1085, %v1151
  %v1167 = vmul.f32 %v1086, %v1151
  %v1168 = vmax.f32 %v1152, 0.0
  %v1169 = vmax.f32 %v1153, 0.0
  %v1170 = vmax.f32 %v1154, 0.0
  %v1171 = vmax.f32 %v1155, 0.0
  %v1172 = vmax.f32 %v1156, 0.0
  %v1173 = vmax.f32 %v1157, 0.0
  %v1174 = vmax.f32 %v1158, 0.0
  %v1175 = vmax.f32 %v1159, 0.0
  %v1176 = vmax.f32 %v1160, 0.0
  %v1177 = vmax.f32 %v1161, 0.0
  %v1178 = vmax.f32 %v1162, 0.0
  %v1179 = vmax.f32 %v1163, 0.0
  %v1180 = vmax.f32 %v1164, 0.0
  %v1181 = vmax.f32 %v1165, 0.0
  %v1182 = vmax.f32 %v1166, 0.0
  %v1183 = vmax.f32 %v1167, 0.0
  %v1184 = vpack.c.bf16 %v1169, %v1168
  %v1185 = vpack.c.bf16 %v1171, %v1170
  %v1186 = vpack.c.bf16 %v1173, %v1172
  %v1187 = vpack.c.bf16 %v1175, %v1174
  %v1188 = vpack.c.bf16 %v1177, %v1176
  %v1189 = vpack.c.bf16 %v1179, %v1178
  %v1190 = vpack.c.bf16 %v1181, %v1180
  %v1191 = vpack.c.bf16 %v1183, %v1182
  %v1192 = vld [vmem:[%s7] sm:$0xff]
  %v1193 = vld [vmem:[%s7 + $0x8] sm:$0xff]
  %v1194 = vpack.c.bf16 %v1193, %v1192
  %v1196 = vsel %vm520, %v1184, 0
  %v1199 = vsel %vm520, %v1185, 0
  %v1202 = vsel %vm520, %v1186, 0
  %v1205 = vsel %vm520, %v1187, 0
  %v1208 = vsel %vm520, %v1188, 0
  %v1211 = vsel %vm520, %v1189, 0
  %v1214 = vsel %vm520, %v1190, 0
  %v1217 = vsel %vm520, %v1191, 0
  %1219 = vmatpush.bf16.msra.mxu0 0
  %1220 = vmatpush.bf16.msra.mxu0 0
  %1221 = vmatpush.bf16.msra.mxu0 0
  %1222 = vmatpush.bf16.msra.mxu0 0
  %1223 = vmatpush.bf16.msra.mxu0 0
  %1224 = vmatpush.bf16.msra.mxu0 0
  %1225 = vmatpush.bf16.msra.mxu0 0
  %1226 = vmatpush.bf16.msra.mxu0 %v1194
  %1227 = vmatmul.bf16.gmra.mxu0 %v1196
  %v1228 = vpop.f32.mrf.mxu0
  %v1229 = vadd.f32 0.0, %v1228
  %v1230 = vpop.f32.mrf.mxu0
  %v1231 = vadd.f32 0.0, %v1230
  %1232 = vmatmul.bf16.gmra.mxu0 %v1199
  %v1233 = vpop.f32.mrf.mxu0
  %v1234 = vadd.f32 0.0, %v1233
  %v1235 = vpop.f32.mrf.mxu0
  %v1236 = vadd.f32 0.0, %v1235
  %1237 = vmatmul.bf16.gmra.mxu0 %v1202
  %v1238 = vpop.f32.mrf.mxu0
  %v1239 = vadd.f32 0.0, %v1238
  %v1240 = vpop.f32.mrf.mxu0
  %v1241 = vadd.f32 0.0, %v1240
  %1242 = vmatmul.bf16.gmra.mxu0 %v1205
  %v1243 = vpop.f32.mrf.mxu0
  %v1244 = vadd.f32 0.0, %v1243
  %v1245 = vpop.f32.mrf.mxu0
  %v1246 = vadd.f32 0.0, %v1245
  %1247 = vmatmul.bf16.gmra.mxu0 %v1208
  %v1248 = vpop.f32.mrf.mxu0
  %v1249 = vadd.f32 0.0, %v1248
  %v1250 = vpop.f32.mrf.mxu0
  %v1251 = vadd.f32 0.0, %v1250
  %1252 = vmatmul.bf16.gmra.mxu0 %v1211
  %v1253 = vpop.f32.mrf.mxu0
  %v1254 = vadd.f32 0.0, %v1253
  %v1255 = vpop.f32.mrf.mxu0
  %v1256 = vadd.f32 0.0, %v1255
  %1257 = vmatmul.bf16.gmra.mxu0 %v1214
  %v1258 = vpop.f32.mrf.mxu0
  %v1259 = vadd.f32 0.0, %v1258
  %v1260 = vpop.f32.mrf.mxu0
  %v1261 = vadd.f32 0.0, %v1260
  %1262 = vmatmul.bf16.gmra.mxu0 %v1217
  %v1263 = vpop.f32.mrf.mxu0
  %v1264 = vadd.f32 0.0, %v1263
  %v1265 = vpop.f32.mrf.mxu0
  %v1266 = vadd.f32 0.0, %v1265
  %1267 = vdwg.mxu0
  %v1268 = vsel %vm520, %v1229, 0.0
  %v1269 = vsel %vm520, %v1231, 0.0
  %v1270 = vadd.f32 %v1268, %v1269
  %v1271 = vsel %vm520, %v1234, 0.0
  %v1272 = vadd.f32 %v1270, %v1271
  %v1273 = vsel %vm520, %v1236, 0.0
  %v1274 = vadd.f32 %v1272, %v1273
  %v1275 = vsel %vm520, %v1239, 0.0
  %v1276 = vadd.f32 %v1274, %v1275
  %v1277 = vsel %vm520, %v1241, 0.0
  %v1278 = vadd.f32 %v1276, %v1277
  %v1279 = vsel %vm520, %v1244, 0.0
  %v1280 = vadd.f32 %v1278, %v1279
  %v1281 = vsel %vm520, %v1246, 0.0
  %v1282 = vadd.f32 %v1280, %v1281
  %v1283 = vsel %vm520, %v1249, 0.0
  %v1284 = vadd.f32 %v1282, %v1283
  %v1285 = vsel %vm520, %v1251, 0.0
  %v1286 = vadd.f32 %v1284, %v1285
  %v1287 = vsel %vm520, %v1254, 0.0
  %v1288 = vadd.f32 %v1286, %v1287
  %v1289 = vsel %vm520, %v1256, 0.0
  %v1290 = vadd.f32 %v1288, %v1289
  %v1291 = vsel %vm520, %v1259, 0.0
  %v1292 = vadd.f32 %v1290, %v1291
  %v1293 = vsel %vm520, %v1261, 0.0
  %v1294 = vadd.f32 %v1292, %v1293
  %v1295 = vsel %vm520, %v1264, 0.0
  %v1296 = vadd.f32 %v1294, %v1295
  %v1297 = vsel %vm520, %v1266, 0.0
  %v1298 = vadd.f32 %v1296, %v1297
  %v1299 = vrot.slane %v1298, 4
  %v1300 = vadd.f32 %v1298, %v1299
  %v1301 = vrot.slane %v1300, 2
  %v1302 = vadd.f32 %v1300, %v1301
  %v1303 = vrot.slane %v1302, 1
  %v1304 = vadd.f32 %v1302, %v1303
  %v1305 = vmul.f32 %v1304, %v564
  %v1306 = vsub.f32 %v1229, %v1305
  %v1307 = vsub.f32 %v1231, %v1305
  %v1308 = vsub.f32 %v1234, %v1305
  %v1309 = vsub.f32 %v1236, %v1305
  %v1310 = vsub.f32 %v1239, %v1305
  %v1311 = vsub.f32 %v1241, %v1305
  %v1312 = vsub.f32 %v1244, %v1305
  %v1313 = vsub.f32 %v1246, %v1305
  %v1314 = vsub.f32 %v1249, %v1305
  %v1315 = vsub.f32 %v1251, %v1305
  %v1316 = vsub.f32 %v1254, %v1305
  %v1317 = vsub.f32 %v1256, %v1305
  %v1318 = vsub.f32 %v1259, %v1305
  %v1319 = vsub.f32 %v1261, %v1305
  %v1320 = vsub.f32 %v1264, %v1305
  %v1321 = vsub.f32 %v1266, %v1305
  %v1322 = vmul.f32 %v1306, %v1306
  %v1323 = vmul.f32 %v1307, %v1307
  %v1324 = vmul.f32 %v1308, %v1308
  %v1325 = vmul.f32 %v1309, %v1309
  %v1326 = vmul.f32 %v1310, %v1310
  %v1327 = vmul.f32 %v1311, %v1311
  %v1328 = vmul.f32 %v1312, %v1312
  %v1329 = vmul.f32 %v1313, %v1313
  %v1330 = vmul.f32 %v1314, %v1314
  %v1331 = vmul.f32 %v1315, %v1315
  %v1332 = vmul.f32 %v1316, %v1316
  %v1333 = vmul.f32 %v1317, %v1317
  %v1334 = vmul.f32 %v1318, %v1318
  %v1335 = vmul.f32 %v1319, %v1319
  %v1336 = vmul.f32 %v1320, %v1320
  %v1337 = vmul.f32 %v1321, %v1321
  %v1338 = vsel %vm520, %v1322, 0.0
  %v1339 = vsel %vm520, %v1323, 0.0
  %v1340 = vadd.f32 %v1338, %v1339
  %v1341 = vsel %vm520, %v1324, 0.0
  %v1342 = vadd.f32 %v1340, %v1341
  %v1343 = vsel %vm520, %v1325, 0.0
  %v1344 = vadd.f32 %v1342, %v1343
  %v1345 = vsel %vm520, %v1326, 0.0
  %v1346 = vadd.f32 %v1344, %v1345
  %v1347 = vsel %vm520, %v1327, 0.0
  %v1348 = vadd.f32 %v1346, %v1347
  %v1349 = vsel %vm520, %v1328, 0.0
  %v1350 = vadd.f32 %v1348, %v1349
  %v1351 = vsel %vm520, %v1329, 0.0
  %v1352 = vadd.f32 %v1350, %v1351
  %v1353 = vsel %vm520, %v1330, 0.0
  %v1354 = vadd.f32 %v1352, %v1353
  %v1355 = vsel %vm520, %v1331, 0.0
  %v1356 = vadd.f32 %v1354, %v1355
  %v1357 = vsel %vm520, %v1332, 0.0
  %v1358 = vadd.f32 %v1356, %v1357
  %v1359 = vsel %vm520, %v1333, 0.0
  %v1360 = vadd.f32 %v1358, %v1359
  %v1361 = vsel %vm520, %v1334, 0.0
  %v1362 = vadd.f32 %v1360, %v1361
  %v1363 = vsel %vm520, %v1335, 0.0
  %v1364 = vadd.f32 %v1362, %v1363
  %v1365 = vsel %vm520, %v1336, 0.0
  %v1366 = vadd.f32 %v1364, %v1365
  %v1367 = vsel %vm520, %v1337, 0.0
  %v1368 = vadd.f32 %v1366, %v1367
  %v1369 = vrot.slane %v1368, 4
  %v1370 = vadd.f32 %v1368, %v1369
  %v1371 = vrot.slane %v1370, 2
  %v1372 = vadd.f32 %v1370, %v1371
  %v1373 = vrot.slane %v1372, 1
  %v1374 = vadd.f32 %v1372, %v1373
  %v1375 = vmul.f32 %v1374, %v564
  %v1376 = vadd.f32 %v1375, 1e-05
  %v1377 = vrsqrt.pop %v1376
  %v1378 = vmul.f32 %v1377, %v1376
  %v1379 = vmul.f32 %v1378, %v1377
  %v1380 = vmul.f32 0.5, %v1379
  %v1381 = vsub.f32 1.5, %v1380
  %v1382 = vmul.f32 %v1377, %v1381
  %vm1383 = vweird.f32 %v1376
  %vm1384 = vweird.f32 %v1377
  %vm1385 = vmor %vm1383, %vm1384
  %v1386 = vsel %vm1385, %v1377, %v1382
  %v1387 = vmul.f32 %v1306, %v1386
  %v1388 = vmul.f32 %v1307, %v1386
  %v1389 = vmul.f32 %v1308, %v1386
  %v1390 = vmul.f32 %v1309, %v1386
  %v1391 = vmul.f32 %v1310, %v1386
  %v1392 = vmul.f32 %v1311, %v1386
  %v1393 = vmul.f32 %v1312, %v1386
  %v1394 = vmul.f32 %v1313, %v1386
  %v1395 = vmul.f32 %v1314, %v1386
  %v1396 = vmul.f32 %v1315, %v1386
  %v1397 = vmul.f32 %v1316, %v1386
  %v1398 = vmul.f32 %v1317, %v1386
  %v1399 = vmul.f32 %v1318, %v1386
  %v1400 = vmul.f32 %v1319, %v1386
  %v1401 = vmul.f32 %v1320, %v1386
  %v1402 = vmul.f32 %v1321, %v1386
  %v1403 = vmax.f32 %v1387, 0.0
  %v1404 = vmax.f32 %v1388, 0.0
  %v1405 = vmax.f32 %v1389, 0.0
  %v1406 = vmax.f32 %v1390, 0.0
  %v1407 = vmax.f32 %v1391, 0.0
  %v1408 = vmax.f32 %v1392, 0.0
  %v1409 = vmax.f32 %v1393, 0.0
  %v1410 = vmax.f32 %v1394, 0.0
  %v1411 = vmax.f32 %v1395, 0.0
  %v1412 = vmax.f32 %v1396, 0.0
  %v1413 = vmax.f32 %v1397, 0.0
  %v1414 = vmax.f32 %v1398, 0.0
  %v1415 = vmax.f32 %v1399, 0.0
  %v1416 = vmax.f32 %v1400, 0.0
  %v1417 = vmax.f32 %v1401, 0.0
  %v1418 = vmax.f32 %v1402, 0.0
  %v1419 = vld [vmem:[%s8] sm:$0xff]
  %v1420 = vld [vmem:[%s8 + $0x8] sm:$0xff]
  %v1421 = vld [vmem:[%s8 + $0x10] sm:$0xff]
  %v1422 = vld [vmem:[%s8 + $0x18] sm:$0xff]
  %v1423 = vpack.c.bf16 %v1420, %v1419
  %v1424 = vpack.c.bf16 %v1422, %v1421
  %1425 = vmatpush.bf16.msra.mxu0 0
  %1426 = vmatpush.bf16.msra.mxu0 0
  %1427 = vmatpush.bf16.msra.mxu0 0
  %1428 = vmatpush.bf16.msra.mxu0 0
  %1429 = vmatpush.bf16.msra.mxu0 0
  %1430 = vmatpush.bf16.msra.mxu0 0
  %1431 = vmatpush.bf16.msra.mxu0 %v1424
  %1432 = vmatpush.bf16.msra.mxu0 %v1423
  %1433 = vmatmul.bf16.gmra.mxu0 %v961
  %v1434 = vpop.f32.mrf.mxu0
  %v1435 = vadd.f32 0.0, %v1434
  %v1436 = vpop.f32.mrf.mxu0
  %v1437 = vadd.f32 0.0, %v1436
  %1438 = vmatmul.bf16.gmra.mxu0 %v964
  %v1439 = vpop.f32.mrf.mxu0
  %v1440 = vadd.f32 0.0, %v1439
  %v1441 = vpop.f32.mrf.mxu0
  %v1442 = vadd.f32 0.0, %v1441
  %1443 = vmatmul.bf16.gmra.mxu0 %v967
  %v1444 = vpop.f32.mrf.mxu0
  %v1445 = vadd.f32 0.0, %v1444
  %v1446 = vpop.f32.mrf.mxu0
  %v1447 = vadd.f32 0.0, %v1446
  %1448 = vmatmul.bf16.gmra.mxu0 %v970
  %v1449 = vpop.f32.mrf.mxu0
  %v1450 = vadd.f32 0.0, %v1449
  %v1451 = vpop.f32.mrf.mxu0
  %v1452 = vadd.f32 0.0, %v1451
  %1453 = vmatmul.bf16.gmra.mxu0 %v973
  %v1454 = vpop.f32.mrf.mxu0
  %v1455 = vadd.f32 0.0, %v1454
  %v1456 = vpop.f32.mrf.mxu0
  %v1457 = vadd.f32 0.0, %v1456
  %1458 = vmatmul.bf16.gmra.mxu0 %v976
  %v1459 = vpop.f32.mrf.mxu0
  %v1460 = vadd.f32 0.0, %v1459
  %v1461 = vpop.f32.mrf.mxu0
  %v1462 = vadd.f32 0.0, %v1461
  %1463 = vmatmul.bf16.gmra.mxu0 %v979
  %v1464 = vpop.f32.mrf.mxu0
  %v1465 = vadd.f32 0.0, %v1464
  %v1466 = vpop.f32.mrf.mxu0
  %v1467 = vadd.f32 0.0, %v1466
  %1468 = vmatmul.bf16.gmra.mxu0 %v982
  %v1469 = vpop.f32.mrf.mxu0
  %v1470 = vadd.f32 0.0, %v1469
  %v1471 = vpop.f32.mrf.mxu0
  %v1472 = vadd.f32 0.0, %v1471
  %1473 = vdwg.mxu0
  %v1474 = vsel %vm520, %v1435, 0.0
  %v1475 = vsel %vm520, %v1437, 0.0
  %v1476 = vadd.f32 %v1474, %v1475
  %v1477 = vsel %vm520, %v1440, 0.0
  %v1478 = vadd.f32 %v1476, %v1477
  %v1479 = vsel %vm520, %v1442, 0.0
  %v1480 = vadd.f32 %v1478, %v1479
  %v1481 = vsel %vm520, %v1445, 0.0
  %v1482 = vadd.f32 %v1480, %v1481
  %v1483 = vsel %vm520, %v1447, 0.0
  %v1484 = vadd.f32 %v1482, %v1483
  %v1485 = vsel %vm520, %v1450, 0.0
  %v1486 = vadd.f32 %v1484, %v1485
  %v1487 = vsel %vm520, %v1452, 0.0
  %v1488 = vadd.f32 %v1486, %v1487
  %v1489 = vsel %vm520, %v1455, 0.0
  %v1490 = vadd.f32 %v1488, %v1489
  %v1491 = vsel %vm520, %v1457, 0.0
  %v1492 = vadd.f32 %v1490, %v1491
  %v1493 = vsel %vm520, %v1460, 0.0
  %v1494 = vadd.f32 %v1492, %v1493
  %v1495 = vsel %vm520, %v1462, 0.0
  %v1496 = vadd.f32 %v1494, %v1495
  %v1497 = vsel %vm520, %v1465, 0.0
  %v1498 = vadd.f32 %v1496, %v1497
  %v1499 = vsel %vm520, %v1467, 0.0
  %v1500 = vadd.f32 %v1498, %v1499
  %v1501 = vsel %vm520, %v1470, 0.0
  %v1502 = vadd.f32 %v1500, %v1501
  %v1503 = vsel %vm520, %v1472, 0.0
  %v1504 = vadd.f32 %v1502, %v1503
  %v1505 = vrot.slane %v1504, 4
  %v1506 = vadd.f32 %v1504, %v1505
  %v1507 = vrot.slane %v1506, 2
  %v1508 = vadd.f32 %v1506, %v1507
  %v1509 = vrot.slane %v1508, 1
  %v1510 = vadd.f32 %v1508, %v1509
  %v1511 = vmul.f32 %v1510, %v564
  %v1512 = vsub.f32 %v1435, %v1511
  %v1513 = vsub.f32 %v1437, %v1511
  %v1514 = vsub.f32 %v1440, %v1511
  %v1515 = vsub.f32 %v1442, %v1511
  %v1516 = vsub.f32 %v1445, %v1511
  %v1517 = vsub.f32 %v1447, %v1511
  %v1518 = vsub.f32 %v1450, %v1511
  %v1519 = vsub.f32 %v1452, %v1511
  %v1520 = vsub.f32 %v1455, %v1511
  %v1521 = vsub.f32 %v1457, %v1511
  %v1522 = vsub.f32 %v1460, %v1511
  %v1523 = vsub.f32 %v1462, %v1511
  %v1524 = vsub.f32 %v1465, %v1511
  %v1525 = vsub.f32 %v1467, %v1511
  %v1526 = vsub.f32 %v1470, %v1511
  %v1527 = vsub.f32 %v1472, %v1511
  %v1528 = vmul.f32 %v1512, %v1512
  %v1529 = vmul.f32 %v1513, %v1513
  %v1530 = vmul.f32 %v1514, %v1514
  %v1531 = vmul.f32 %v1515, %v1515
  %v1532 = vmul.f32 %v1516, %v1516
  %v1533 = vmul.f32 %v1517, %v1517
  %v1534 = vmul.f32 %v1518, %v1518
  %v1535 = vmul.f32 %v1519, %v1519
  %v1536 = vmul.f32 %v1520, %v1520
  %v1537 = vmul.f32 %v1521, %v1521
  %v1538 = vmul.f32 %v1522, %v1522
  %v1539 = vmul.f32 %v1523, %v1523
  %v1540 = vmul.f32 %v1524, %v1524
  %v1541 = vmul.f32 %v1525, %v1525
  %v1542 = vmul.f32 %v1526, %v1526
  %v1543 = vmul.f32 %v1527, %v1527
  %v1544 = vsel %vm520, %v1528, 0.0
  %v1545 = vsel %vm520, %v1529, 0.0
  %v1546 = vadd.f32 %v1544, %v1545
  %v1547 = vsel %vm520, %v1530, 0.0
  %v1548 = vadd.f32 %v1546, %v1547
  %v1549 = vsel %vm520, %v1531, 0.0
  %v1550 = vadd.f32 %v1548, %v1549
  %v1551 = vsel %vm520, %v1532, 0.0
  %v1552 = vadd.f32 %v1550, %v1551
  %v1553 = vsel %vm520, %v1533, 0.0
  %v1554 = vadd.f32 %v1552, %v1553
  %v1555 = vsel %vm520, %v1534, 0.0
  %v1556 = vadd.f32 %v1554, %v1555
  %v1557 = vsel %vm520, %v1535, 0.0
  %v1558 = vadd.f32 %v1556, %v1557
  %v1559 = vsel %vm520, %v1536, 0.0
  %v1560 = vadd.f32 %v1558, %v1559
  %v1561 = vsel %vm520, %v1537, 0.0
  %v1562 = vadd.f32 %v1560, %v1561
  %v1563 = vsel %vm520, %v1538, 0.0
  %v1564 = vadd.f32 %v1562, %v1563
  %v1565 = vsel %vm520, %v1539, 0.0
  %v1566 = vadd.f32 %v1564, %v1565
  %v1567 = vsel %vm520, %v1540, 0.0
  %v1568 = vadd.f32 %v1566, %v1567
  %v1569 = vsel %vm520, %v1541, 0.0
  %v1570 = vadd.f32 %v1568, %v1569
  %v1571 = vsel %vm520, %v1542, 0.0
  %v1572 = vadd.f32 %v1570, %v1571
  %v1573 = vsel %vm520, %v1543, 0.0
  %v1574 = vadd.f32 %v1572, %v1573
  %v1575 = vrot.slane %v1574, 4
  %v1576 = vadd.f32 %v1574, %v1575
  %v1577 = vrot.slane %v1576, 2
  %v1578 = vadd.f32 %v1576, %v1577
  %v1579 = vrot.slane %v1578, 1
  %v1580 = vadd.f32 %v1578, %v1579
  %v1581 = vmul.f32 %v1580, %v564
  %v1582 = vadd.f32 %v1581, 1e-05
  %v1583 = vrsqrt.pop %v1582
  %v1584 = vmul.f32 %v1583, %v1582
  %v1585 = vmul.f32 %v1584, %v1583
  %v1586 = vmul.f32 0.5, %v1585
  %v1587 = vsub.f32 1.5, %v1586
  %v1588 = vmul.f32 %v1583, %v1587
  %vm1589 = vweird.f32 %v1582
  %vm1590 = vweird.f32 %v1583
  %vm1591 = vmor %vm1589, %vm1590
  %v1592 = vsel %vm1591, %v1583, %v1588
  %v1593 = vmul.f32 %v1512, %v1592
  %v1594 = vmul.f32 %v1513, %v1592
  %v1595 = vmul.f32 %v1514, %v1592
  %v1596 = vmul.f32 %v1515, %v1592
  %v1597 = vmul.f32 %v1516, %v1592
  %v1598 = vmul.f32 %v1517, %v1592
  %v1599 = vmul.f32 %v1518, %v1592
  %v1600 = vmul.f32 %v1519, %v1592
  %v1601 = vmul.f32 %v1520, %v1592
  %v1602 = vmul.f32 %v1521, %v1592
  %v1603 = vmul.f32 %v1522, %v1592
  %v1604 = vmul.f32 %v1523, %v1592
  %v1605 = vmul.f32 %v1524, %v1592
  %v1606 = vmul.f32 %v1525, %v1592
  %v1607 = vmul.f32 %v1526, %v1592
  %v1608 = vmul.f32 %v1527, %v1592
  %v1609 = vmax.f32 %v1593, 0.0
  %v1610 = vmax.f32 %v1594, 0.0
  %v1611 = vmax.f32 %v1595, 0.0
  %v1612 = vmax.f32 %v1596, 0.0
  %v1613 = vmax.f32 %v1597, 0.0
  %v1614 = vmax.f32 %v1598, 0.0
  %v1615 = vmax.f32 %v1599, 0.0
  %v1616 = vmax.f32 %v1600, 0.0
  %v1617 = vmax.f32 %v1601, 0.0
  %v1618 = vmax.f32 %v1602, 0.0
  %v1619 = vmax.f32 %v1603, 0.0
  %v1620 = vmax.f32 %v1604, 0.0
  %v1621 = vmax.f32 %v1605, 0.0
  %v1622 = vmax.f32 %v1606, 0.0
  %v1623 = vmax.f32 %v1607, 0.0
  %v1624 = vmax.f32 %v1608, 0.0
  %1625 = vst.msk [vmem:[#allocation3] sm:$0xff] %vm520, %v914
  %1626 = vst.msk [vmem:[#allocation3 + $0x8] sm:$0xff] %vm520, %v915
  %1627 = vst.msk [vmem:[#allocation3 + $0x10] sm:$0xff] %vm520, %v916
  %1628 = vst.msk [vmem:[#allocation3 + $0x18] sm:$0xff] %vm520, %v917
  %1629 = vst.msk [vmem:[#allocation3 + $0x20] sm:$0xff] %vm520, %v918
  %1630 = vst.msk [vmem:[#allocation3 + $0x28] sm:$0xff] %vm520, %v919
  %1631 = vst.msk [vmem:[#allocation3 + $0x30] sm:$0xff] %vm520, %v920
  %1632 = vst.msk [vmem:[#allocation3 + $0x38] sm:$0xff] %vm520, %v921
  %1633 = vst.msk [vmem:[#allocation3 + $0x40] sm:$0xff] %vm520, %v922
  %1634 = vst.msk [vmem:[#allocation3 + $0x48] sm:$0xff] %vm520, %v923
  %1635 = vst.msk [vmem:[#allocation3 + $0x50] sm:$0xff] %vm520, %v924
  %1636 = vst.msk [vmem:[#allocation3 + $0x58] sm:$0xff] %vm520, %v925
  %1637 = vst.msk [vmem:[#allocation3 + $0x60] sm:$0xff] %vm520, %v926
  %1638 = vst.msk [vmem:[#allocation3 + $0x68] sm:$0xff] %vm520, %v927
  %1639 = vst.msk [vmem:[#allocation3 + $0x70] sm:$0xff] %vm520, %v928
  %1640 = vst.msk [vmem:[#allocation3 + $0x78] sm:$0xff] %vm520, %v929
  %1641 = vxpose.xlu0.b32.start [1/16] %v1403, 128
  %1642 = vxpose.xlu0.b32.cont [2/16] %v1404, 128
  %1643 = vxpose.xlu0.b32.cont [3/16] %v1405, 128
  %1644 = vxpose.xlu0.b32.cont [4/16] %v1406, 128
  %1645 = vxpose.xlu0.b32.cont [5/16] %v1407, 128
  %1646 = vxpose.xlu0.b32.cont [6/16] %v1408, 128
  %1647 = vxpose.xlu0.b32.cont [7/16] %v1409, 128
  %1648 = vxpose.xlu0.b32.cont [8/16] %v1410, 128
  %1649 = vxpose.xlu0.b32.cont [9/16] %v1411, 128
  %1650 = vxpose.xlu0.b32.cont [10/16] %v1412, 128
  %1651 = vxpose.xlu0.b32.cont [11/16] %v1413, 128
  %1652 = vxpose.xlu0.b32.cont [12/16] %v1414, 128
  %1653 = vxpose.xlu0.b32.cont [13/16] %v1415, 128
  %1654 = vxpose.xlu0.b32.cont [14/16] %v1416, 128
  %1655 = vxpose.xlu0.b32.cont [15/16] %v1417, 128
  %1656 = vxpose.xlu0.b32.end [16/16] %v1418, 128
  %v1657 = vpop.trf.xlu0
  %v1658 = vpop.trf.xlu0
  %v1659 = vpop.trf.xlu0
  %v1660 = vpop.trf.xlu0
  %v1661 = vpop.trf.xlu0
  %v1662 = vpop.trf.xlu0
  %v1663 = vpop.trf.xlu0
  %v1664 = vpop.trf.xlu0
  %v1665 = vpop.trf.xlu0
  %v1666 = vpop.trf.xlu0
  %v1667 = vpop.trf.xlu0
  %v1668 = vpop.trf.xlu0
  %v1669 = vpop.trf.xlu0
  %v1670 = vpop.trf.xlu0
  %v1671 = vpop.trf.xlu0
  %v1672 = vpop.trf.xlu0
  %1673 = vst [vmem:[#allocation4] sm:$0xff] %v1657
  %1674 = vst [vmem:[#allocation4 + $0x8] sm:$0xff] %v1658
  %1675 = vst.msk [vmem:[#allocation5] sm:$0xff] %vm520, %v1609
  %1676 = vst.msk [vmem:[#allocation5 + $0x8] sm:$0xff] %vm520, %v1610
  %1677 = vst.msk [vmem:[#allocation5 + $0x10] sm:$0xff] %vm520, %v1611
  %1678 = vst.msk [vmem:[#allocation5 + $0x18] sm:$0xff] %vm520, %v1612
  %1679 = vst.msk [vmem:[#allocation5 + $0x20] sm:$0xff] %vm520, %v1613
  %1680 = vst.msk [vmem:[#allocation5 + $0x28] sm:$0xff] %vm520, %v1614
  %1681 = vst.msk [vmem:[#allocation5 + $0x30] sm:$0xff] %vm520, %v1615
  %1682 = vst.msk [vmem:[#allocation5 + $0x38] sm:$0xff] %vm520, %v1616
  %1683 = vst.msk [vmem:[#allocation5 + $0x40] sm:$0xff] %vm520, %v1617
  %1684 = vst.msk [vmem:[#allocation5 + $0x48] sm:$0xff] %vm520, %v1618
  %1685 = vst.msk [vmem:[#allocation5 + $0x50] sm:$0xff] %vm520, %v1619
  %1686 = vst.msk [vmem:[#allocation5 + $0x58] sm:$0xff] %vm520, %v1620
  %1687 = vst.msk [vmem:[#allocation5 + $0x60] sm:$0xff] %vm520, %v1621
  %1688 = vst.msk [vmem:[#allocation5 + $0x68] sm:$0xff] %vm520, %v1622
  %1689 = vst.msk [vmem:[#allocation5 + $0x70] sm:$0xff] %vm520, %v1623
  %1690 = vst.msk [vmem:[#allocation5 + $0x78] sm:$0xff] %vm520, %v1624
  %v1691 = vld [vmem:[#allocation3] sm:$0xff]
  %v1692 = vld [vmem:[#allocation3 + $0x8] sm:$0xff]
  %v1693 = vld [vmem:[#allocation3 + $0x10] sm:$0xff]
  %v1694 = vld [vmem:[#allocation3 + $0x18] sm:$0xff]
  %v1695 = vld [vmem:[#allocation3 + $0x20] sm:$0xff]
  %v1696 = vld [vmem:[#allocation3 + $0x28] sm:$0xff]
  %v1697 = vld [vmem:[#allocation3 + $0x30] sm:$0xff]
  %v1698 = vld [vmem:[#allocation3 + $0x38] sm:$0xff]
  %v1699 = vld [vmem:[#allocation4] sm:$0xff]
  %v1700 = vld [vmem:[#allocation4 + $0x8] sm:$0xff]
  %v1701 = vld [vmem:[#allocation5] sm:$0xff]
  %v1702 = vld [vmem:[#allocation5 + $0x8] sm:$0xff]
  %v1703 = vld [vmem:[#allocation5 + $0x10] sm:$0xff]
  %v1704 = vld [vmem:[#allocation5 + $0x18] sm:$0xff]
  %v1705 = vld [vmem:[#allocation5 + $0x20] sm:$0xff]
  %v1706 = vld [vmem:[#allocation5 + $0x28] sm:$0xff]
  %v1707 = vld [vmem:[#allocation5 + $0x30] sm:$0xff]
  %v1708 = vld [vmem:[#allocation5 + $0x38] sm:$0xff]
  %v1709 = vpack.c.bf16 %v1692, %v1691
  %v1710 = vpack.c.bf16 %v1694, %v1693
  %v1711 = vpack.c.bf16 %v1696, %v1695
  %v1712 = vpack.c.bf16 %v1698, %v1697
  %v1713 = vpack.c.bf16 %v1700, %v1699
  %v1714 = vld [vmem:[%s1] sm:$0xff]
  %v1715 = vld [vmem:[%s1 + $0x8] sm:$0xff]
  %v1716 = vld [vmem:[%s1 + $0x10] sm:$0xff]
  %v1717 = vld [vmem:[%s1 + $0x18] sm:$0xff]
  %v1718 = vld [vmem:[%s1 + $0x20] sm:$0xff]
  %v1719 = vld [vmem:[%s1 + $0x28] sm:$0xff]
  %v1720 = vld [vmem:[%s1 + $0x30] sm:$0xff]
  %v1721 = vld [vmem:[%s1 + $0x38] sm:$0xff]
  %1723 = vset.pattern.permute.xlu0 0
  %1724 = vperm.xlu0 %1723, %v1691
  %v1725 = vpop.permute.xlu0 %1724
  %1728 = vset.pattern.permute.xlu0 0
  %1729 = vperm.xlu0 %1728, %v1692
  %v1730 = vpop.permute.xlu0 %1729
  %1733 = vset.pattern.permute.xlu0 0
  %1734 = vperm.xlu0 %1733, %v1693
  %v1735 = vpop.permute.xlu0 %1734
  %1738 = vset.pattern.permute.xlu0 0
  %1739 = vperm.xlu0 %1738, %v1694
  %v1740 = vpop.permute.xlu0 %1739
  %1743 = vset.pattern.permute.xlu0 0
  %1744 = vperm.xlu0 %1743, %v1695
  %v1745 = vpop.permute.xlu0 %1744
  %1748 = vset.pattern.permute.xlu0 0
  %1749 = vperm.xlu0 %1748, %v1696
  %v1750 = vpop.permute.xlu0 %1749
  %1753 = vset.pattern.permute.xlu0 0
  %1754 = vperm.xlu0 %1753, %v1697
  %v1755 = vpop.permute.xlu0 %1754
  %1758 = vset.pattern.permute.xlu0 0
  %1759 = vperm.xlu0 %1758, %v1698
  %v1760 = vpop.permute.xlu0 %1759
  %v1762 = vmul.f32 %v1725, %v1714
  %v1763 = vmul.f32 %v1730, %v1715
  %v1764 = vmul.f32 %v1735, %v1716
  %v1765 = vmul.f32 %v1740, %v1717
  %v1766 = vmul.f32 %v1745, %v1718
  %v1767 = vmul.f32 %v1750, %v1719
  %v1768 = vmul.f32 %v1755, %v1720
  %v1769 = vmul.f32 %v1760, %v1721
  %v1771 = vsel %vm520, %v1709, 0
  %v1774 = vsel %vm520, %v1710, 0
  %v1777 = vsel %vm520, %v1711, 0
  %v1780 = vsel %vm520, %v1712, 0
  %1782 = vmatpush.bf16.msra.mxu0 0
  %1783 = vmatpush.bf16.msra.mxu0 0
  %1784 = vmatpush.bf16.msra.mxu0 0
  %1785 = vmatpush.bf16.msra.mxu0 0
  %1786 = vmatpush.bf16.msra.mxu0 0
  %1787 = vmatpush.bf16.msra.mxu0 0
  %1788 = vmatpush.bf16.msra.mxu0 0
  %1789 = vmatpush.bf16.msra.mxu0 %v1713
  %1790 = vmatmul.bf16.gmra.mxu0 %v1771
  %v1791 = vpop.f32.mrf.mxu0
  %v1792 = vadd.f32 %v1762, %v1791
  %v1793 = vpop.f32.mrf.mxu0
  %v1794 = vadd.f32 %v1763, %v1793
  %1795 = vmatmul.bf16.gmra.mxu0 %v1774
  %v1796 = vpop.f32.mrf.mxu0
  %v1797 = vadd.f32 %v1764, %v1796
  %v1798 = vpop.f32.mrf.mxu0
  %v1799 = vadd.f32 %v1765, %v1798
  %1800 = vmatmul.bf16.gmra.mxu0 %v1777
  %v1801 = vpop.f32.mrf.mxu0
  %v1802 = vadd.f32 %v1766, %v1801
  %v1803 = vpop.f32.mrf.mxu0
  %v1804 = vadd.f32 %v1767, %v1803
  %1805 = vmatmul.bf16.gmra.mxu0 %v1780
  %v1806 = vpop.f32.mrf.mxu0
  %v1807 = vadd.f32 %v1768, %v1806
  %v1808 = vpop.f32.mrf.mxu0
  %v1809 = vadd.f32 %v1769, %v1808
  %1810 = vdwg.mxu0
  %s1811 = scalar_lea.vmem %s1, 64
  %v1812 = vld [vmem:[%s1811] sm:$0xff]
  %v1813 = vld [vmem:[%s1811 + $0x8] sm:$0xff]
  %v1814 = vld [vmem:[%s1811 + $0x10] sm:$0xff]
  %v1815 = vld [vmem:[%s1811 + $0x18] sm:$0xff]
  %v1816 = vld [vmem:[%s1811 + $0x20] sm:$0xff]
  %v1817 = vld [vmem:[%s1811 + $0x28] sm:$0xff]
  %v1818 = vld [vmem:[%s1811 + $0x30] sm:$0xff]
  %v1819 = vld [vmem:[%s1811 + $0x38] sm:$0xff]
  %1820 = vset.pattern.permute.xlu0 1
  %1821 = vperm.xlu0 %1820, %v1691
  %v1822 = vpop.permute.xlu0 %1821
  %1824 = vset.pattern.permute.xlu0 1
  %1825 = vperm.xlu0 %1824, %v1692
  %v1826 = vpop.permute.xlu0 %1825
  %1828 = vset.pattern.permute.xlu0 1
  %1829 = vperm.xlu0 %1828, %v1693
  %v1830 = vpop.permute.xlu0 %1829
  %1832 = vset.pattern.permute.xlu0 1
  %1833 = vperm.xlu0 %1832, %v1694
  %v1834 = vpop.permute.xlu0 %1833
  %1836 = vset.pattern.permute.xlu0 1
  %1837 = vperm.xlu0 %1836, %v1695
  %v1838 = vpop.permute.xlu0 %1837
  %1840 = vset.pattern.permute.xlu0 1
  %1841 = vperm.xlu0 %1840, %v1696
  %v1842 = vpop.permute.xlu0 %1841
  %1844 = vset.pattern.permute.xlu0 1
  %1845 = vperm.xlu0 %1844, %v1697
  %v1846 = vpop.permute.xlu0 %1845
  %1848 = vset.pattern.permute.xlu0 1
  %1849 = vperm.xlu0 %1848, %v1698
  %v1850 = vpop.permute.xlu0 %1849
  %v1852 = vmul.f32 %v1822, %v1812
  %v1853 = vmul.f32 %v1826, %v1813
  %v1854 = vmul.f32 %v1830, %v1814
  %v1855 = vmul.f32 %v1834, %v1815
  %v1856 = vmul.f32 %v1838, %v1816
  %v1857 = vmul.f32 %v1842, %v1817
  %v1858 = vmul.f32 %v1846, %v1818
  %v1859 = vmul.f32 %v1850, %v1819
  %v1860 = vadd.f32 %v1792, %v1852
  %v1861 = vadd.f32 %v1794, %v1853
  %v1862 = vadd.f32 %v1797, %v1854
  %v1863 = vadd.f32 %v1799, %v1855
  %v1864 = vadd.f32 %v1802, %v1856
  %v1865 = vadd.f32 %v1804, %v1857
  %v1866 = vadd.f32 %v1807, %v1858
  %v1867 = vadd.f32 %v1809, %v1859
  %s1868 = scalar_lea.vmem %s1, 128
  %v1869 = vld [vmem:[%s1868] sm:$0xff]
  %v1870 = vld [vmem:[%s1868 + $0x8] sm:$0xff]
  %v1871 = vld [vmem:[%s1868 + $0x10] sm:$0xff]
  %v1872 = vld [vmem:[%s1868 + $0x18] sm:$0xff]
  %v1873 = vld [vmem:[%s1868 + $0x20] sm:$0xff]
  %v1874 = vld [vmem:[%s1868 + $0x28] sm:$0xff]
  %v1875 = vld [vmem:[%s1868 + $0x30] sm:$0xff]
  %v1876 = vld [vmem:[%s1868 + $0x38] sm:$0xff]
  %1877 = vset.pattern.permute.xlu0 2
  %1878 = vperm.xlu0 %1877, %v1691
  %v1879 = vpop.permute.xlu0 %1878
  %1881 = vset.pattern.permute.xlu0 2
  %1882 = vperm.xlu0 %1881, %v1692
  %v1883 = vpop.permute.xlu0 %1882
  %1885 = vset.pattern.permute.xlu0 2
  %1886 = vperm.xlu0 %1885, %v1693
  %v1887 = vpop.permute.xlu0 %1886
  %1889 = vset.pattern.permute.xlu0 2
  %1890 = vperm.xlu0 %1889, %v1694
  %v1891 = vpop.permute.xlu0 %1890
  %1893 = vset.pattern.permute.xlu0 2
  %1894 = vperm.xlu0 %1893, %v1695
  %v1895 = vpop.permute.xlu0 %1894
  %1897 = vset.pattern.permute.xlu0 2
  %1898 = vperm.xlu0 %1897, %v1696
  %v1899 = vpop.permute.xlu0 %1898
  %1901 = vset.pattern.permute.xlu0 2
  %1902 = vperm.xlu0 %1901, %v1697
  %v1903 = vpop.permute.xlu0 %1902
  %1905 = vset.pattern.permute.xlu0 2
  %1906 = vperm.xlu0 %1905, %v1698
  %v1907 = vpop.permute.xlu0 %1906
  %v1909 = vmul.f32 %v1879, %v1869
  %v1910 = vmul.f32 %v1883, %v1870
  %v1911 = vmul.f32 %v1887, %v1871
  %v1912 = vmul.f32 %v1891, %v1872
  %v1913 = vmul.f32 %v1895, %v1873
  %v1914 = vmul.f32 %v1899, %v1874
  %v1915 = vmul.f32 %v1903, %v1875
  %v1916 = vmul.f32 %v1907, %v1876
  %v1917 = vadd.f32 %v1860, %v1909
  %v1918 = vadd.f32 %v1861, %v1910
  %v1919 = vadd.f32 %v1862, %v1911
  %v1920 = vadd.f32 %v1863, %v1912
  %v1921 = vadd.f32 %v1864, %v1913
  %v1922 = vadd.f32 %v1865, %v1914
  %v1923 = vadd.f32 %v1866, %v1915
  %v1924 = vadd.f32 %v1867, %v1916
  %s1925 = scalar_lea.vmem %s1, 192
  %v1926 = vld [vmem:[%s1925] sm:$0xff]
  %v1927 = vld [vmem:[%s1925 + $0x8] sm:$0xff]
  %v1928 = vld [vmem:[%s1925 + $0x10] sm:$0xff]
  %v1929 = vld [vmem:[%s1925 + $0x18] sm:$0xff]
  %v1930 = vld [vmem:[%s1925 + $0x20] sm:$0xff]
  %v1931 = vld [vmem:[%s1925 + $0x28] sm:$0xff]
  %v1932 = vld [vmem:[%s1925 + $0x30] sm:$0xff]
  %v1933 = vld [vmem:[%s1925 + $0x38] sm:$0xff]
  %1934 = vset.pattern.permute.xlu0 3
  %1935 = vperm.xlu0 %1934, %v1691
  %v1936 = vpop.permute.xlu0 %1935
  %1938 = vset.pattern.permute.xlu0 3
  %1939 = vperm.xlu0 %1938, %v1692
  %v1940 = vpop.permute.xlu0 %1939
  %1942 = vset.pattern.permute.xlu0 3
  %1943 = vperm.xlu0 %1942, %v1693
  %v1944 = vpop.permute.xlu0 %1943
  %1946 = vset.pattern.permute.xlu0 3
  %1947 = vperm.xlu0 %1946, %v1694
  %v1948 = vpop.permute.xlu0 %1947
  %1950 = vset.pattern.permute.xlu0 3
  %1951 = vperm.xlu0 %1950, %v1695
  %v1952 = vpop.permute.xlu0 %1951
  %1954 = vset.pattern.permute.xlu0 3
  %1955 = vperm.xlu0 %1954, %v1696
  %v1956 = vpop.permute.xlu0 %1955
  %1958 = vset.pattern.permute.xlu0 3
  %1959 = vperm.xlu0 %1958, %v1697
  %v1960 = vpop.permute.xlu0 %1959
  %1962 = vset.pattern.permute.xlu0 3
  %1963 = vperm.xlu0 %1962, %v1698
  %v1964 = vpop.permute.xlu0 %1963
  %v1966 = vmul.f32 %v1936, %v1926
  %v1967 = vmul.f32 %v1940, %v1927
  %v1968 = vmul.f32 %v1944, %v1928
  %v1969 = vmul.f32 %v1948, %v1929
  %v1970 = vmul.f32 %v1952, %v1930
  %v1971 = vmul.f32 %v1956, %v1931
  %v1972 = vmul.f32 %v1960, %v1932
  %v1973 = vmul.f32 %v1964, %v1933
  %v1974 = vadd.f32 %v1917, %v1966
  %v1975 = vadd.f32 %v1918, %v1967
  %v1976 = vadd.f32 %v1919, %v1968
  %v1977 = vadd.f32 %v1920, %v1969
  %v1978 = vadd.f32 %v1921, %v1970
  %v1979 = vadd.f32 %v1922, %v1971
  %v1980 = vadd.f32 %v1923, %v1972
  %v1981 = vadd.f32 %v1924, %v1973
  %s1982 = scalar_lea.vmem %s1, 256
  %v1983 = vld [vmem:[%s1982] sm:$0xff]
  %v1984 = vld [vmem:[%s1982 + $0x8] sm:$0xff]
  %v1985 = vld [vmem:[%s1982 + $0x10] sm:$0xff]
  %v1986 = vld [vmem:[%s1982 + $0x18] sm:$0xff]
  %v1987 = vld [vmem:[%s1982 + $0x20] sm:$0xff]
  %v1988 = vld [vmem:[%s1982 + $0x28] sm:$0xff]
  %v1989 = vld [vmem:[%s1982 + $0x30] sm:$0xff]
  %v1990 = vld [vmem:[%s1982 + $0x38] sm:$0xff]
  %1991 = vset.pattern.permute.xlu0 4
  %1992 = vperm.xlu0 %1991, %v1691
  %v1993 = vpop.permute.xlu0 %1992
  %1995 = vset.pattern.permute.xlu0 4
  %1996 = vperm.xlu0 %1995, %v1692
  %v1997 = vpop.permute.xlu0 %1996
  %1999 = vset.pattern.permute.xlu0 4
  %2000 = vperm.xlu0 %1999, %v1693
  %v2001 = vpop.permute.xlu0 %2000
  %2003 = vset.pattern.permute.xlu0 4
  %2004 = vperm.xlu0 %2003, %v1694
  %v2005 = vpop.permute.xlu0 %2004
  %2007 = vset.pattern.permute.xlu0 4
  %2008 = vperm.xlu0 %2007, %v1695
  %v2009 = vpop.permute.xlu0 %2008
  %2011 = vset.pattern.permute.xlu0 4
  %2012 = vperm.xlu0 %2011, %v1696
  %v2013 = vpop.permute.xlu0 %2012
  %2015 = vset.pattern.permute.xlu0 4
  %2016 = vperm.xlu0 %2015, %v1697
  %v2017 = vpop.permute.xlu0 %2016
  %2019 = vset.pattern.permute.xlu0 4
  %2020 = vperm.xlu0 %2019, %v1698
  %v2021 = vpop.permute.xlu0 %2020
  %v2023 = vmul.f32 %v1993, %v1983
  %v2024 = vmul.f32 %v1997, %v1984
  %v2025 = vmul.f32 %v2001, %v1985
  %v2026 = vmul.f32 %v2005, %v1986
  %v2027 = vmul.f32 %v2009, %v1987
  %v2028 = vmul.f32 %v2013, %v1988
  %v2029 = vmul.f32 %v2017, %v1989
  %v2030 = vmul.f32 %v2021, %v1990
  %v2031 = vadd.f32 %v1974, %v2023
  %v2032 = vadd.f32 %v1975, %v2024
  %v2033 = vadd.f32 %v1976, %v2025
  %v2034 = vadd.f32 %v1977, %v2026
  %v2035 = vadd.f32 %v1978, %v2027
  %v2036 = vadd.f32 %v1979, %v2028
  %v2037 = vadd.f32 %v1980, %v2029
  %v2038 = vadd.f32 %v1981, %v2030
  %s2039 = scalar_lea.vmem %s1, 320
  %v2040 = vld [vmem:[%s2039] sm:$0xff]
  %v2041 = vld [vmem:[%s2039 + $0x8] sm:$0xff]
  %v2042 = vld [vmem:[%s2039 + $0x10] sm:$0xff]
  %v2043 = vld [vmem:[%s2039 + $0x18] sm:$0xff]
  %v2044 = vld [vmem:[%s2039 + $0x20] sm:$0xff]
  %v2045 = vld [vmem:[%s2039 + $0x28] sm:$0xff]
  %v2046 = vld [vmem:[%s2039 + $0x30] sm:$0xff]
  %v2047 = vld [vmem:[%s2039 + $0x38] sm:$0xff]
  %2048 = vset.pattern.permute.xlu0 5
  %2049 = vperm.xlu0 %2048, %v1691
  %v2050 = vpop.permute.xlu0 %2049
  %2052 = vset.pattern.permute.xlu0 5
  %2053 = vperm.xlu0 %2052, %v1692
  %v2054 = vpop.permute.xlu0 %2053
  %2056 = vset.pattern.permute.xlu0 5
  %2057 = vperm.xlu0 %2056, %v1693
  %v2058 = vpop.permute.xlu0 %2057
  %2060 = vset.pattern.permute.xlu0 5
  %2061 = vperm.xlu0 %2060, %v1694
  %v2062 = vpop.permute.xlu0 %2061
  %2064 = vset.pattern.permute.xlu0 5
  %2065 = vperm.xlu0 %2064, %v1695
  %v2066 = vpop.permute.xlu0 %2065
  %2068 = vset.pattern.permute.xlu0 5
  %2069 = vperm.xlu0 %2068, %v1696
  %v2070 = vpop.permute.xlu0 %2069
  %2072 = vset.pattern.permute.xlu0 5
  %2073 = vperm.xlu0 %2072, %v1697
  %v2074 = vpop.permute.xlu0 %2073
  %2076 = vset.pattern.permute.xlu0 5
  %2077 = vperm.xlu0 %2076, %v1698
  %v2078 = vpop.permute.xlu0 %2077
  %v2080 = vmul.f32 %v2050, %v2040
  %v2081 = vmul.f32 %v2054, %v2041
  %v2082 = vmul.f32 %v2058, %v2042
  %v2083 = vmul.f32 %v2062, %v2043
  %v2084 = vmul.f32 %v2066, %v2044
  %v2085 = vmul.f32 %v2070, %v2045
  %v2086 = vmul.f32 %v2074, %v2046
  %v2087 = vmul.f32 %v2078, %v2047
  %v2088 = vadd.f32 %v2031, %v2080
  %v2089 = vadd.f32 %v2032, %v2081
  %v2090 = vadd.f32 %v2033, %v2082
  %v2091 = vadd.f32 %v2034, %v2083
  %v2092 = vadd.f32 %v2035, %v2084
  %v2093 = vadd.f32 %v2036, %v2085
  %v2094 = vadd.f32 %v2037, %v2086
  %v2095 = vadd.f32 %v2038, %v2087
  %s2096 = scalar_lea.vmem %s1, 384
  %v2097 = vld [vmem:[%s2096] sm:$0xff]
  %v2098 = vld [vmem:[%s2096 + $0x8] sm:$0xff]
  %v2099 = vld [vmem:[%s2096 + $0x10] sm:$0xff]
  %v2100 = vld [vmem:[%s2096 + $0x18] sm:$0xff]
  %v2101 = vld [vmem:[%s2096 + $0x20] sm:$0xff]
  %v2102 = vld [vmem:[%s2096 + $0x28] sm:$0xff]
  %v2103 = vld [vmem:[%s2096 + $0x30] sm:$0xff]
  %v2104 = vld [vmem:[%s2096 + $0x38] sm:$0xff]
  %2105 = vset.pattern.permute.xlu0 6
  %2106 = vperm.xlu0 %2105, %v1691
  %v2107 = vpop.permute.xlu0 %2106
  %2109 = vset.pattern.permute.xlu0 6
  %2110 = vperm.xlu0 %2109, %v1692
  %v2111 = vpop.permute.xlu0 %2110
  %2113 = vset.pattern.permute.xlu0 6
  %2114 = vperm.xlu0 %2113, %v1693
  %v2115 = vpop.permute.xlu0 %2114
  %2117 = vset.pattern.permute.xlu0 6
  %2118 = vperm.xlu0 %2117, %v1694
  %v2119 = vpop.permute.xlu0 %2118
  %2121 = vset.pattern.permute.xlu0 6
  %2122 = vperm.xlu0 %2121, %v1695
  %v2123 = vpop.permute.xlu0 %2122
  %2125 = vset.pattern.permute.xlu0 6
  %2126 = vperm.xlu0 %2125, %v1696
  %v2127 = vpop.permute.xlu0 %2126
  %2129 = vset.pattern.permute.xlu0 6
  %2130 = vperm.xlu0 %2129, %v1697
  %v2131 = vpop.permute.xlu0 %2130
  %2133 = vset.pattern.permute.xlu0 6
  %2134 = vperm.xlu0 %2133, %v1698
  %v2135 = vpop.permute.xlu0 %2134
  %v2137 = vmul.f32 %v2107, %v2097
  %v2138 = vmul.f32 %v2111, %v2098
  %v2139 = vmul.f32 %v2115, %v2099
  %v2140 = vmul.f32 %v2119, %v2100
  %v2141 = vmul.f32 %v2123, %v2101
  %v2142 = vmul.f32 %v2127, %v2102
  %v2143 = vmul.f32 %v2131, %v2103
  %v2144 = vmul.f32 %v2135, %v2104
  %v2145 = vadd.f32 %v2088, %v2137
  %v2146 = vadd.f32 %v2089, %v2138
  %v2147 = vadd.f32 %v2090, %v2139
  %v2148 = vadd.f32 %v2091, %v2140
  %v2149 = vadd.f32 %v2092, %v2141
  %v2150 = vadd.f32 %v2093, %v2142
  %v2151 = vadd.f32 %v2094, %v2143
  %v2152 = vadd.f32 %v2095, %v2144
  %s2153 = scalar_lea.vmem %s1, 448
  %v2154 = vld [vmem:[%s2153] sm:$0xff]
  %v2155 = vld [vmem:[%s2153 + $0x8] sm:$0xff]
  %v2156 = vld [vmem:[%s2153 + $0x10] sm:$0xff]
  %v2157 = vld [vmem:[%s2153 + $0x18] sm:$0xff]
  %v2158 = vld [vmem:[%s2153 + $0x20] sm:$0xff]
  %v2159 = vld [vmem:[%s2153 + $0x28] sm:$0xff]
  %v2160 = vld [vmem:[%s2153 + $0x30] sm:$0xff]
  %v2161 = vld [vmem:[%s2153 + $0x38] sm:$0xff]
  %2162 = vset.pattern.permute.xlu0 7
  %2163 = vperm.xlu0 %2162, %v1691
  %v2164 = vpop.permute.xlu0 %2163
  %2166 = vset.pattern.permute.xlu0 7
  %2167 = vperm.xlu0 %2166, %v1692
  %v2168 = vpop.permute.xlu0 %2167
  %2170 = vset.pattern.permute.xlu0 7
  %2171 = vperm.xlu0 %2170, %v1693
  %v2172 = vpop.permute.xlu0 %2171
  %2174 = vset.pattern.permute.xlu0 7
  %2175 = vperm.xlu0 %2174, %v1694
  %v2176 = vpop.permute.xlu0 %2175
  %2178 = vset.pattern.permute.xlu0 7
  %2179 = vperm.xlu0 %2178, %v1695
  %v2180 = vpop.permute.xlu0 %2179
  %2182 = vset.pattern.permute.xlu0 7
  %2183 = vperm.xlu0 %2182, %v1696
  %v2184 = vpop.permute.xlu0 %2183
  %2186 = vset.pattern.permute.xlu0 7
  %2187 = vperm.xlu0 %2186, %v1697
  %v2188 = vpop.permute.xlu0 %2187
  %2190 = vset.pattern.permute.xlu0 7
  %2191 = vperm.xlu0 %2190, %v1698
  %v2192 = vpop.permute.xlu0 %2191
  %v2194 = vmul.f32 %v2164, %v2154
  %v2195 = vmul.f32 %v2168, %v2155
  %v2196 = vmul.f32 %v2172, %v2156
  %v2197 = vmul.f32 %v2176, %v2157
  %v2198 = vmul.f32 %v2180, %v2158
  %v2199 = vmul.f32 %v2184, %v2159
  %v2200 = vmul.f32 %v2188, %v2160
  %v2201 = vmul.f32 %v2192, %v2161
  %v2202 = vadd.f32 %v2145, %v2194
  %v2203 = vadd.f32 %v2146, %v2195
  %v2204 = vadd.f32 %v2147, %v2196
  %v2205 = vadd.f32 %v2148, %v2197
  %v2206 = vadd.f32 %v2149, %v2198
  %v2207 = vadd.f32 %v2150, %v2199
  %v2208 = vadd.f32 %v2151, %v2200
  %v2209 = vadd.f32 %v2152, %v2201
  %s2210 = scalar_lea.vmem %s1, 512
  %v2211 = vld [vmem:[%s2210] sm:$0xff]
  %v2212 = vld [vmem:[%s2210 + $0x8] sm:$0xff]
  %v2213 = vld [vmem:[%s2210 + $0x10] sm:$0xff]
  %v2214 = vld [vmem:[%s2210 + $0x18] sm:$0xff]
  %v2215 = vld [vmem:[%s2210 + $0x20] sm:$0xff]
  %v2216 = vld [vmem:[%s2210 + $0x28] sm:$0xff]
  %v2217 = vld [vmem:[%s2210 + $0x30] sm:$0xff]
  %v2218 = vld [vmem:[%s2210 + $0x38] sm:$0xff]
  %2219 = vset.pattern.permute.xlu0 8
  %2220 = vperm.xlu0 %2219, %v1691
  %v2221 = vpop.permute.xlu0 %2220
  %2223 = vset.pattern.permute.xlu0 8
  %2224 = vperm.xlu0 %2223, %v1692
  %v2225 = vpop.permute.xlu0 %2224
  %2227 = vset.pattern.permute.xlu0 8
  %2228 = vperm.xlu0 %2227, %v1693
  %v2229 = vpop.permute.xlu0 %2228
  %2231 = vset.pattern.permute.xlu0 8
  %2232 = vperm.xlu0 %2231, %v1694
  %v2233 = vpop.permute.xlu0 %2232
  %2235 = vset.pattern.permute.xlu0 8
  %2236 = vperm.xlu0 %2235, %v1695
  %v2237 = vpop.permute.xlu0 %2236
  %2239 = vset.pattern.permute.xlu0 8
  %2240 = vperm.xlu0 %2239, %v1696
  %v2241 = vpop.permute.xlu0 %2240
  %2243 = vset.pattern.permute.xlu0 8
  %2244 = vperm.xlu0 %2243, %v1697
  %v2245 = vpop.permute.xlu0 %2244
  %2247 = vset.pattern.permute.xlu0 8
  %2248 = vperm.xlu0 %2247, %v1698
  %v2249 = vpop.permute.xlu0 %2248
  %v2251 = vmul.f32 %v2221, %v2211
  %v2252 = vmul.f32 %v2225, %v2212
  %v2253 = vmul.f32 %v2229, %v2213
  %v2254 = vmul.f32 %v2233, %v2214
  %v2255 = vmul.f32 %v2237, %v2215
  %v2256 = vmul.f32 %v2241, %v2216
  %v2257 = vmul.f32 %v2245, %v2217
  %v2258 = vmul.f32 %v2249, %v2218
  %v2259 = vadd.f32 %v2202, %v2251
  %v2260 = vadd.f32 %v2203, %v2252
  %v2261 = vadd.f32 %v2204, %v2253
  %v2262 = vadd.f32 %v2205, %v2254
  %v2263 = vadd.f32 %v2206, %v2255
  %v2264 = vadd.f32 %v2207, %v2256
  %v2265 = vadd.f32 %v2208, %v2257
  %v2266 = vadd.f32 %v2209, %v2258
  %s2267 = scalar_lea.vmem %s1, 576
  %v2268 = vld [vmem:[%s2267] sm:$0xff]
  %v2269 = vld [vmem:[%s2267 + $0x8] sm:$0xff]
  %v2270 = vld [vmem:[%s2267 + $0x10] sm:$0xff]
  %v2271 = vld [vmem:[%s2267 + $0x18] sm:$0xff]
  %v2272 = vld [vmem:[%s2267 + $0x20] sm:$0xff]
  %v2273 = vld [vmem:[%s2267 + $0x28] sm:$0xff]
  %v2274 = vld [vmem:[%s2267 + $0x30] sm:$0xff]
  %v2275 = vld [vmem:[%s2267 + $0x38] sm:$0xff]
  %2276 = vset.pattern.permute.xlu0 9
  %2277 = vperm.xlu0 %2276, %v1691
  %v2278 = vpop.permute.xlu0 %2277
  %2280 = vset.pattern.permute.xlu0 9
  %2281 = vperm.xlu0 %2280, %v1692
  %v2282 = vpop.permute.xlu0 %2281
  %2284 = vset.pattern.permute.xlu0 9
  %2285 = vperm.xlu0 %2284, %v1693
  %v2286 = vpop.permute.xlu0 %2285
  %2288 = vset.pattern.permute.xlu0 9
  %2289 = vperm.xlu0 %2288, %v1694
  %v2290 = vpop.permute.xlu0 %2289
  %2292 = vset.pattern.permute.xlu0 9
  %2293 = vperm.xlu0 %2292, %v1695
  %v2294 = vpop.permute.xlu0 %2293
  %2296 = vset.pattern.permute.xlu0 9
  %2297 = vperm.xlu0 %2296, %v1696
  %v2298 = vpop.permute.xlu0 %2297
  %2300 = vset.pattern.permute.xlu0 9
  %2301 = vperm.xlu0 %2300, %v1697
  %v2302 = vpop.permute.xlu0 %2301
  %2304 = vset.pattern.permute.xlu0 9
  %2305 = vperm.xlu0 %2304, %v1698
  %v2306 = vpop.permute.xlu0 %2305
  %v2308 = vmul.f32 %v2278, %v2268
  %v2309 = vmul.f32 %v2282, %v2269
  %v2310 = vmul.f32 %v2286, %v2270
  %v2311 = vmul.f32 %v2290, %v2271
  %v2312 = vmul.f32 %v2294, %v2272
  %v2313 = vmul.f32 %v2298, %v2273
  %v2314 = vmul.f32 %v2302, %v2274
  %v2315 = vmul.f32 %v2306, %v2275
  %v2316 = vadd.f32 %v2259, %v2308
  %v2317 = vadd.f32 %v2260, %v2309
  %v2318 = vadd.f32 %v2261, %v2310
  %v2319 = vadd.f32 %v2262, %v2311
  %v2320 = vadd.f32 %v2263, %v2312
  %v2321 = vadd.f32 %v2264, %v2313
  %v2322 = vadd.f32 %v2265, %v2314
  %v2323 = vadd.f32 %v2266, %v2315
  %s2324 = scalar_lea.vmem %s1, 640
  %v2325 = vld [vmem:[%s2324] sm:$0xff]
  %v2326 = vld [vmem:[%s2324 + $0x8] sm:$0xff]
  %v2327 = vld [vmem:[%s2324 + $0x10] sm:$0xff]
  %v2328 = vld [vmem:[%s2324 + $0x18] sm:$0xff]
  %v2329 = vld [vmem:[%s2324 + $0x20] sm:$0xff]
  %v2330 = vld [vmem:[%s2324 + $0x28] sm:$0xff]
  %v2331 = vld [vmem:[%s2324 + $0x30] sm:$0xff]
  %v2332 = vld [vmem:[%s2324 + $0x38] sm:$0xff]
  %2333 = vset.pattern.permute.xlu0 10
  %2334 = vperm.xlu0 %2333, %v1691
  %v2335 = vpop.permute.xlu0 %2334
  %2337 = vset.pattern.permute.xlu0 10
  %2338 = vperm.xlu0 %2337, %v1692
  %v2339 = vpop.permute.xlu0 %2338
  %2341 = vset.pattern.permute.xlu0 10
  %2342 = vperm.xlu0 %2341, %v1693
  %v2343 = vpop.permute.xlu0 %2342
  %2345 = vset.pattern.permute.xlu0 10
  %2346 = vperm.xlu0 %2345, %v1694
  %v2347 = vpop.permute.xlu0 %2346
  %2349 = vset.pattern.permute.xlu0 10
  %2350 = vperm.xlu0 %2349, %v1695
  %v2351 = vpop.permute.xlu0 %2350
  %2353 = vset.pattern.permute.xlu0 10
  %2354 = vperm.xlu0 %2353, %v1696
  %v2355 = vpop.permute.xlu0 %2354
  %2357 = vset.pattern.permute.xlu0 10
  %2358 = vperm.xlu0 %2357, %v1697
  %v2359 = vpop.permute.xlu0 %2358
  %2361 = vset.pattern.permute.xlu0 10
  %2362 = vperm.xlu0 %2361, %v1698
  %v2363 = vpop.permute.xlu0 %2362
  %v2365 = vmul.f32 %v2335, %v2325
  %v2366 = vmul.f32 %v2339, %v2326
  %v2367 = vmul.f32 %v2343, %v2327
  %v2368 = vmul.f32 %v2347, %v2328
  %v2369 = vmul.f32 %v2351, %v2329
  %v2370 = vmul.f32 %v2355, %v2330
  %v2371 = vmul.f32 %v2359, %v2331
  %v2372 = vmul.f32 %v2363, %v2332
  %v2373 = vadd.f32 %v2316, %v2365
  %v2374 = vadd.f32 %v2317, %v2366
  %v2375 = vadd.f32 %v2318, %v2367
  %v2376 = vadd.f32 %v2319, %v2368
  %v2377 = vadd.f32 %v2320, %v2369
  %v2378 = vadd.f32 %v2321, %v2370
  %v2379 = vadd.f32 %v2322, %v2371
  %v2380 = vadd.f32 %v2323, %v2372
  %s2381 = scalar_lea.vmem %s1, 704
  %v2382 = vld [vmem:[%s2381] sm:$0xff]
  %v2383 = vld [vmem:[%s2381 + $0x8] sm:$0xff]
  %v2384 = vld [vmem:[%s2381 + $0x10] sm:$0xff]
  %v2385 = vld [vmem:[%s2381 + $0x18] sm:$0xff]
  %v2386 = vld [vmem:[%s2381 + $0x20] sm:$0xff]
  %v2387 = vld [vmem:[%s2381 + $0x28] sm:$0xff]
  %v2388 = vld [vmem:[%s2381 + $0x30] sm:$0xff]
  %v2389 = vld [vmem:[%s2381 + $0x38] sm:$0xff]
  %2390 = vset.pattern.permute.xlu0 11
  %2391 = vperm.xlu0 %2390, %v1691
  %v2392 = vpop.permute.xlu0 %2391
  %2394 = vset.pattern.permute.xlu0 11
  %2395 = vperm.xlu0 %2394, %v1692
  %v2396 = vpop.permute.xlu0 %2395
  %2398 = vset.pattern.permute.xlu0 11
  %2399 = vperm.xlu0 %2398, %v1693
  %v2400 = vpop.permute.xlu0 %2399
  %2402 = vset.pattern.permute.xlu0 11
  %2403 = vperm.xlu0 %2402, %v1694
  %v2404 = vpop.permute.xlu0 %2403
  %2406 = vset.pattern.permute.xlu0 11
  %2407 = vperm.xlu0 %2406, %v1695
  %v2408 = vpop.permute.xlu0 %2407
  %2410 = vset.pattern.permute.xlu0 11
  %2411 = vperm.xlu0 %2410, %v1696
  %v2412 = vpop.permute.xlu0 %2411
  %2414 = vset.pattern.permute.xlu0 11
  %2415 = vperm.xlu0 %2414, %v1697
  %v2416 = vpop.permute.xlu0 %2415
  %2418 = vset.pattern.permute.xlu0 11
  %2419 = vperm.xlu0 %2418, %v1698
  %v2420 = vpop.permute.xlu0 %2419
  %v2422 = vmul.f32 %v2392, %v2382
  %v2423 = vmul.f32 %v2396, %v2383
  %v2424 = vmul.f32 %v2400, %v2384
  %v2425 = vmul.f32 %v2404, %v2385
  %v2426 = vmul.f32 %v2408, %v2386
  %v2427 = vmul.f32 %v2412, %v2387
  %v2428 = vmul.f32 %v2416, %v2388
  %v2429 = vmul.f32 %v2420, %v2389
  %v2430 = vadd.f32 %v2373, %v2422
  %v2431 = vadd.f32 %v2374, %v2423
  %v2432 = vadd.f32 %v2375, %v2424
  %v2433 = vadd.f32 %v2376, %v2425
  %v2434 = vadd.f32 %v2377, %v2426
  %v2435 = vadd.f32 %v2378, %v2427
  %v2436 = vadd.f32 %v2379, %v2428
  %v2437 = vadd.f32 %v2380, %v2429
  %s2438 = scalar_lea.vmem %s1, 768
  %v2439 = vld [vmem:[%s2438] sm:$0xff]
  %v2440 = vld [vmem:[%s2438 + $0x8] sm:$0xff]
  %v2441 = vld [vmem:[%s2438 + $0x10] sm:$0xff]
  %v2442 = vld [vmem:[%s2438 + $0x18] sm:$0xff]
  %v2443 = vld [vmem:[%s2438 + $0x20] sm:$0xff]
  %v2444 = vld [vmem:[%s2438 + $0x28] sm:$0xff]
  %v2445 = vld [vmem:[%s2438 + $0x30] sm:$0xff]
  %v2446 = vld [vmem:[%s2438 + $0x38] sm:$0xff]
  %2447 = vset.pattern.permute.xlu0 12
  %2448 = vperm.xlu0 %2447, %v1691
  %v2449 = vpop.permute.xlu0 %2448
  %2451 = vset.pattern.permute.xlu0 12
  %2452 = vperm.xlu0 %2451, %v1692
  %v2453 = vpop.permute.xlu0 %2452
  %2455 = vset.pattern.permute.xlu0 12
  %2456 = vperm.xlu0 %2455, %v1693
  %v2457 = vpop.permute.xlu0 %2456
  %2459 = vset.pattern.permute.xlu0 12
  %2460 = vperm.xlu0 %2459, %v1694
  %v2461 = vpop.permute.xlu0 %2460
  %2463 = vset.pattern.permute.xlu0 12
  %2464 = vperm.xlu0 %2463, %v1695
  %v2465 = vpop.permute.xlu0 %2464
  %2467 = vset.pattern.permute.xlu0 12
  %2468 = vperm.xlu0 %2467, %v1696
  %v2469 = vpop.permute.xlu0 %2468
  %2471 = vset.pattern.permute.xlu0 12
  %2472 = vperm.xlu0 %2471, %v1697
  %v2473 = vpop.permute.xlu0 %2472
  %2475 = vset.pattern.permute.xlu0 12
  %2476 = vperm.xlu0 %2475, %v1698
  %v2477 = vpop.permute.xlu0 %2476
  %v2479 = vmul.f32 %v2449, %v2439
  %v2480 = vmul.f32 %v2453, %v2440
  %v2481 = vmul.f32 %v2457, %v2441
  %v2482 = vmul.f32 %v2461, %v2442
  %v2483 = vmul.f32 %v2465, %v2443
  %v2484 = vmul.f32 %v2469, %v2444
  %v2485 = vmul.f32 %v2473, %v2445
  %v2486 = vmul.f32 %v2477, %v2446
  %v2487 = vadd.f32 %v2430, %v2479
  %v2488 = vadd.f32 %v2431, %v2480
  %v2489 = vadd.f32 %v2432, %v2481
  %v2490 = vadd.f32 %v2433, %v2482
  %v2491 = vadd.f32 %v2434, %v2483
  %v2492 = vadd.f32 %v2435, %v2484
  %v2493 = vadd.f32 %v2436, %v2485
  %v2494 = vadd.f32 %v2437, %v2486
  %s2495 = scalar_lea.vmem %s1, 832
  %v2496 = vld [vmem:[%s2495] sm:$0xff]
  %v2497 = vld [vmem:[%s2495 + $0x8] sm:$0xff]
  %v2498 = vld [vmem:[%s2495 + $0x10] sm:$0xff]
  %v2499 = vld [vmem:[%s2495 + $0x18] sm:$0xff]
  %v2500 = vld [vmem:[%s2495 + $0x20] sm:$0xff]
  %v2501 = vld [vmem:[%s2495 + $0x28] sm:$0xff]
  %v2502 = vld [vmem:[%s2495 + $0x30] sm:$0xff]
  %v2503 = vld [vmem:[%s2495 + $0x38] sm:$0xff]
  %2504 = vset.pattern.permute.xlu0 13
  %2505 = vperm.xlu0 %2504, %v1691
  %v2506 = vpop.permute.xlu0 %2505
  %2508 = vset.pattern.permute.xlu0 13
  %2509 = vperm.xlu0 %2508, %v1692
  %v2510 = vpop.permute.xlu0 %2509
  %2512 = vset.pattern.permute.xlu0 13
  %2513 = vperm.xlu0 %2512, %v1693
  %v2514 = vpop.permute.xlu0 %2513
  %2516 = vset.pattern.permute.xlu0 13
  %2517 = vperm.xlu0 %2516, %v1694
  %v2518 = vpop.permute.xlu0 %2517
  %2520 = vset.pattern.permute.xlu0 13
  %2521 = vperm.xlu0 %2520, %v1695
  %v2522 = vpop.permute.xlu0 %2521
  %2524 = vset.pattern.permute.xlu0 13
  %2525 = vperm.xlu0 %2524, %v1696
  %v2526 = vpop.permute.xlu0 %2525
  %2528 = vset.pattern.permute.xlu0 13
  %2529 = vperm.xlu0 %2528, %v1697
  %v2530 = vpop.permute.xlu0 %2529
  %2532 = vset.pattern.permute.xlu0 13
  %2533 = vperm.xlu0 %2532, %v1698
  %v2534 = vpop.permute.xlu0 %2533
  %v2536 = vmul.f32 %v2506, %v2496
  %v2537 = vmul.f32 %v2510, %v2497
  %v2538 = vmul.f32 %v2514, %v2498
  %v2539 = vmul.f32 %v2518, %v2499
  %v2540 = vmul.f32 %v2522, %v2500
  %v2541 = vmul.f32 %v2526, %v2501
  %v2542 = vmul.f32 %v2530, %v2502
  %v2543 = vmul.f32 %v2534, %v2503
  %v2544 = vadd.f32 %v2487, %v2536
  %v2545 = vadd.f32 %v2488, %v2537
  %v2546 = vadd.f32 %v2489, %v2538
  %v2547 = vadd.f32 %v2490, %v2539
  %v2548 = vadd.f32 %v2491, %v2540
  %v2549 = vadd.f32 %v2492, %v2541
  %v2550 = vadd.f32 %v2493, %v2542
  %v2551 = vadd.f32 %v2494, %v2543
  %s2552 = scalar_lea.vmem %s1, 896
  %v2553 = vld [vmem:[%s2552] sm:$0xff]
  %v2554 = vld [vmem:[%s2552 + $0x8] sm:$0xff]
  %v2555 = vld [vmem:[%s2552 + $0x10] sm:$0xff]
  %v2556 = vld [vmem:[%s2552 + $0x18] sm:$0xff]
  %v2557 = vld [vmem:[%s2552 + $0x20] sm:$0xff]
  %v2558 = vld [vmem:[%s2552 + $0x28] sm:$0xff]
  %v2559 = vld [vmem:[%s2552 + $0x30] sm:$0xff]
  %v2560 = vld [vmem:[%s2552 + $0x38] sm:$0xff]
  %2561 = vset.pattern.permute.xlu0 14
  %2562 = vperm.xlu0 %2561, %v1691
  %v2563 = vpop.permute.xlu0 %2562
  %2565 = vset.pattern.permute.xlu0 14
  %2566 = vperm.xlu0 %2565, %v1692
  %v2567 = vpop.permute.xlu0 %2566
  %2569 = vset.pattern.permute.xlu0 14
  %2570 = vperm.xlu0 %2569, %v1693
  %v2571 = vpop.permute.xlu0 %2570
  %2573 = vset.pattern.permute.xlu0 14
  %2574 = vperm.xlu0 %2573, %v1694
  %v2575 = vpop.permute.xlu0 %2574
  %2577 = vset.pattern.permute.xlu0 14
  %2578 = vperm.xlu0 %2577, %v1695
  %v2579 = vpop.permute.xlu0 %2578
  %2581 = vset.pattern.permute.xlu0 14
  %2582 = vperm.xlu0 %2581, %v1696
  %v2583 = vpop.permute.xlu0 %2582
  %2585 = vset.pattern.permute.xlu0 14
  %2586 = vperm.xlu0 %2585, %v1697
  %v2587 = vpop.permute.xlu0 %2586
  %2589 = vset.pattern.permute.xlu0 14
  %2590 = vperm.xlu0 %2589, %v1698
  %v2591 = vpop.permute.xlu0 %2590
  %v2593 = vmul.f32 %v2563, %v2553
  %v2594 = vmul.f32 %v2567, %v2554
  %v2595 = vmul.f32 %v2571, %v2555
  %v2596 = vmul.f32 %v2575, %v2556
  %v2597 = vmul.f32 %v2579, %v2557
  %v2598 = vmul.f32 %v2583, %v2558
  %v2599 = vmul.f32 %v2587, %v2559
  %v2600 = vmul.f32 %v2591, %v2560
  %v2601 = vadd.f32 %v2544, %v2593
  %v2602 = vadd.f32 %v2545, %v2594
  %v2603 = vadd.f32 %v2546, %v2595
  %v2604 = vadd.f32 %v2547, %v2596
  %v2605 = vadd.f32 %v2548, %v2597
  %v2606 = vadd.f32 %v2549, %v2598
  %v2607 = vadd.f32 %v2550, %v2599
  %v2608 = vadd.f32 %v2551, %v2600
  %s2609 = scalar_lea.vmem %s1, 960
  %v2610 = vld [vmem:[%s2609] sm:$0xff]
  %v2611 = vld [vmem:[%s2609 + $0x8] sm:$0xff]
  %v2612 = vld [vmem:[%s2609 + $0x10] sm:$0xff]
  %v2613 = vld [vmem:[%s2609 + $0x18] sm:$0xff]
  %v2614 = vld [vmem:[%s2609 + $0x20] sm:$0xff]
  %v2615 = vld [vmem:[%s2609 + $0x28] sm:$0xff]
  %v2616 = vld [vmem:[%s2609 + $0x30] sm:$0xff]
  %v2617 = vld [vmem:[%s2609 + $0x38] sm:$0xff]
  %2618 = vset.pattern.permute.xlu0 15
  %2619 = vperm.xlu0 %2618, %v1691
  %v2620 = vpop.permute.xlu0 %2619
  %2622 = vset.pattern.permute.xlu0 15
  %2623 = vperm.xlu0 %2622, %v1692
  %v2624 = vpop.permute.xlu0 %2623
  %2626 = vset.pattern.permute.xlu0 15
  %2627 = vperm.xlu0 %2626, %v1693
  %v2628 = vpop.permute.xlu0 %2627
  %2630 = vset.pattern.permute.xlu0 15
  %2631 = vperm.xlu0 %2630, %v1694
  %v2632 = vpop.permute.xlu0 %2631
  %2634 = vset.pattern.permute.xlu0 15
  %2635 = vperm.xlu0 %2634, %v1695
  %v2636 = vpop.permute.xlu0 %2635
  %2638 = vset.pattern.permute.xlu0 15
  %2639 = vperm.xlu0 %2638, %v1696
  %v2640 = vpop.permute.xlu0 %2639
  %2642 = vset.pattern.permute.xlu0 15
  %2643 = vperm.xlu0 %2642, %v1697
  %v2644 = vpop.permute.xlu0 %2643
  %2646 = vset.pattern.permute.xlu0 15
  %2647 = vperm.xlu0 %2646, %v1698
  %v2648 = vpop.permute.xlu0 %2647
  %v2650 = vmul.f32 %v2620, %v2610
  %v2651 = vmul.f32 %v2624, %v2611
  %v2652 = vmul.f32 %v2628, %v2612
  %v2653 = vmul.f32 %v2632, %v2613
  %v2654 = vmul.f32 %v2636, %v2614
  %v2655 = vmul.f32 %v2640, %v2615
  %v2656 = vmul.f32 %v2644, %v2616
  %v2657 = vmul.f32 %v2648, %v2617
  %v2658 = vadd.f32 %v2601, %v2650
  %v2659 = vadd.f32 %v2602, %v2651
  %v2660 = vadd.f32 %v2603, %v2652
  %v2661 = vadd.f32 %v2604, %v2653
  %v2662 = vadd.f32 %v2605, %v2654
  %v2663 = vadd.f32 %v2606, %v2655
  %v2664 = vadd.f32 %v2607, %v2656
  %v2665 = vadd.f32 %v2608, %v2657
  %vm2666 = vcmask 523264
  %v2667 = vsel %vm2666, %v2658, -inf
  %2668 = vmax.xlane.f32.xlu0 %v2667
  %v2669 = vpop.xlane.xlu0 %2668
  %v2670 = vsel %vm2666, %v2659, -inf
  %2671 = vmax.xlane.f32.xlu0 %v2670
  %v2672 = vpop.xlane.xlu0 %2671
  %v2673 = vsel %vm2666, %v2660, -inf
  %2674 = vmax.xlane.f32.xlu0 %v2673
  %v2675 = vpop.xlane.xlu0 %2674
  %v2676 = vsel %vm2666, %v2661, -inf
  %2677 = vmax.xlane.f32.xlu0 %v2676
  %v2678 = vpop.xlane.xlu0 %2677
  %v2679 = vsel %vm2666, %v2662, -inf
  %2680 = vmax.xlane.f32.xlu0 %v2679
  %v2681 = vpop.xlane.xlu0 %2680
  %v2682 = vsel %vm2666, %v2663, -inf
  %2683 = vmax.xlane.f32.xlu0 %v2682
  %v2684 = vpop.xlane.xlu0 %2683
  %v2685 = vsel %vm2666, %v2664, -inf
  %2686 = vmax.xlane.f32.xlu0 %v2685
  %v2687 = vpop.xlane.xlu0 %2686
  %v2688 = vsel %vm2666, %v2665, -inf
  %2689 = vmax.xlane.f32.xlu0 %v2688
  %v2690 = vpop.xlane.xlu0 %2689
  %v2691 = vsub.f32 %v2658, %v2669
  %v2692 = vsub.f32 %v2659, %v2672
  %v2693 = vsub.f32 %v2660, %v2675
  %v2694 = vsub.f32 %v2661, %v2678
  %v2695 = vsub.f32 %v2662, %v2681
  %v2696 = vsub.f32 %v2663, %v2684
  %v2697 = vsub.f32 %v2664, %v2687
  %v2698 = vsub.f32 %v2665, %v2690
  %v2699 = vmul.f32 %v2691, 1.442695
  %v2700 = vpow.pop %v2699
  %v2701 = vmul.f32 %v2692, 1.442695
  %v2702 = vpow.pop %v2701
  %v2703 = vmul.f32 %v2693, 1.442695
  %v2704 = vpow.pop %v2703
  %v2705 = vmul.f32 %v2694, 1.442695
  %v2706 = vpow.pop %v2705
  %v2707 = vmul.f32 %v2695, 1.442695
  %v2708 = vpow.pop %v2707
  %v2709 = vmul.f32 %v2696, 1.442695
  %v2710 = vpow.pop %v2709
  %v2711 = vmul.f32 %v2697, 1.442695
  %v2712 = vpow.pop %v2711
  %v2713 = vmul.f32 %v2698, 1.442695
  %v2714 = vpow.pop %v2713
  %v2715 = vsel %vm2666, %v2700, 0.0
  %2716 = vadd.xlane.f32.xlu0 %v2715
  %v2717 = vpop.xlane.xlu0 %2716
  %v2718 = vsel %vm2666, %v2702, 0.0
  %2719 = vadd.xlane.f32.xlu0 %v2718
  %v2720 = vpop.xlane.xlu0 %2719
  %v2721 = vsel %vm2666, %v2704, 0.0
  %2722 = vadd.xlane.f32.xlu0 %v2721
  %v2723 = vpop.xlane.xlu0 %2722
  %v2724 = vsel %vm2666, %v2706, 0.0
  %2725 = vadd.xlane.f32.xlu0 %v2724
  %v2726 = vpop.xlane.xlu0 %2725
  %v2727 = vsel %vm2666, %v2708, 0.0
  %2728 = vadd.xlane.f32.xlu0 %v2727
  %v2729 = vpop.xlane.xlu0 %2728
  %v2730 = vsel %vm2666, %v2710, 0.0
  %2731 = vadd.xlane.f32.xlu0 %v2730
  %v2732 = vpop.xlane.xlu0 %2731
  %v2733 = vsel %vm2666, %v2712, 0.0
  %2734 = vadd.xlane.f32.xlu0 %v2733
  %v2735 = vpop.xlane.xlu0 %2734
  %v2736 = vsel %vm2666, %v2714, 0.0
  %2737 = vadd.xlane.f32.xlu0 %v2736
  %v2738 = vpop.xlane.xlu0 %2737
  %v2739 = vrcp.pop %v2717
  %v2740 = vrcp.pop %v2720
  %v2741 = vrcp.pop %v2723
  %v2742 = vrcp.pop %v2726
  %v2743 = vrcp.pop %v2729
  %v2744 = vrcp.pop %v2732
  %v2745 = vrcp.pop %v2735
  %v2746 = vrcp.pop %v2738
  %v2747 = vmul.f32 %v2700, %v2739
  %v2748 = vmul.f32 %v2702, %v2740
  %v2749 = vmul.f32 %v2704, %v2741
  %v2750 = vmul.f32 %v2706, %v2742
  %v2751 = vmul.f32 %v2708, %v2743
  %v2752 = vmul.f32 %v2710, %v2744
  %v2753 = vmul.f32 %v2712, %v2745
  %v2754 = vmul.f32 %v2714, %v2746
  %v2755 = vpack.c.bf16 %v2748, %v2747
  %v2756 = vpack.c.bf16 %v2750, %v2749
  %v2757 = vpack.c.bf16 %v2752, %v2751
  %v2758 = vpack.c.bf16 %v2754, %v2753
  %v2759 = vpack.c.bf16 %v1702, %v1701
  %v2760 = vpack.c.bf16 %v1704, %v1703
  %v2761 = vpack.c.bf16 %v1706, %v1705
  %v2762 = vpack.c.bf16 %v1708, %v1707
  %v2764 = vsel %vm2666, %v2755, 0
  %v2767 = vsel %vm2666, %v2756, 0
  %v2770 = vsel %vm2666, %v2757, 0
  %v2773 = vsel %vm2666, %v2758, 0
  %2775 = vmatpush.bf16.msra.mxu0 0
  %2776 = vmatpush.bf16.msra.mxu0 0
  %2777 = vmatpush.bf16.msra.mxu0 0
  %2778 = vmatpush.bf16.msra.mxu0 0
  %2779 = vmatpush.bf16.msra.mxu0 %v2762
  %2780 = vmatpush.bf16.msra.mxu0 %v2761
  %2781 = vmatpush.bf16.msra.mxu0 %v2760
  %2782 = vmatpush.bf16.msra.mxu0 %v2759
  %2783 = vmatmul.bf16.gmra.mxu0 %v2764
  %v2784 = vpop.f32.mrf.mxu0
  %v2785 = vadd.f32 0.0, %v2784
  %v2786 = vpop.f32.mrf.mxu0
  %v2787 = vadd.f32 0.0, %v2786
  %2788 = vmatmul.bf16.gmra.mxu0 %v2767
  %v2789 = vpop.f32.mrf.mxu0
  %v2790 = vadd.f32 0.0, %v2789
  %v2791 = vpop.f32.mrf.mxu0
  %v2792 = vadd.f32 0.0, %v2791
  %2793 = vmatmul.bf16.gmra.mxu0 %v2770
  %v2794 = vpop.f32.mrf.mxu0
  %v2795 = vadd.f32 0.0, %v2794
  %v2796 = vpop.f32.mrf.mxu0
  %v2797 = vadd.f32 0.0, %v2796
  %2798 = vmatmul.bf16.gmra.mxu0 %v2773
  %v2799 = vpop.f32.mrf.mxu0
  %v2800 = vadd.f32 0.0, %v2799
  %v2801 = vpop.f32.mrf.mxu0
  %v2802 = vadd.f32 0.0, %v2801
  %2803 = vdwg.mxu0
  %2804 = vst.msk [vmem:[#allocation6] sm:$0xff] %vm520, %v2785
  %2805 = vst.msk [vmem:[#allocation6 + $0x8] sm:$0xff] %vm520, %v2787
  %2806 = vst.msk [vmem:[#allocation6 + $0x10] sm:$0xff] %vm520, %v2790
  %2807 = vst.msk [vmem:[#allocation6 + $0x18] sm:$0xff] %vm520, %v2792
  %2808 = vst.msk [vmem:[#allocation6 + $0x20] sm:$0xff] %vm520, %v2795
  %2809 = vst.msk [vmem:[#allocation6 + $0x28] sm:$0xff] %vm520, %v2797
  %2810 = vst.msk [vmem:[#allocation6 + $0x30] sm:$0xff] %vm520, %v2800
  %2811 = vst.msk [vmem:[#allocation6 + $0x38] sm:$0xff] %vm520, %v2802
  %v2812 = vld [vmem:[#allocation3 + $0x40] sm:$0xff]
  %v2813 = vld [vmem:[#allocation3 + $0x48] sm:$0xff]
  %v2814 = vld [vmem:[#allocation3 + $0x50] sm:$0xff]
  %v2815 = vld [vmem:[#allocation3 + $0x58] sm:$0xff]
  %v2816 = vld [vmem:[#allocation3 + $0x60] sm:$0xff]
  %v2817 = vld [vmem:[#allocation3 + $0x68] sm:$0xff]
  %v2818 = vld [vmem:[#allocation3 + $0x70] sm:$0xff]
  %v2819 = vld [vmem:[#allocation3 + $0x78] sm:$0xff]
  %v2820 = vld [vmem:[#allocation4] sm:$0xff]
  %v2821 = vld [vmem:[#allocation4 + $0x8] sm:$0xff]
  %v2822 = vld [vmem:[#allocation5 + $0x40] sm:$0xff]
  %v2823 = vld [vmem:[#allocation5 + $0x48] sm:$0xff]
  %v2824 = vld [vmem:[#allocation5 + $0x50] sm:$0xff]
  %v2825 = vld [vmem:[#allocation5 + $0x58] sm:$0xff]
  %v2826 = vld [vmem:[#allocation5 + $0x60] sm:$0xff]
  %v2827 = vld [vmem:[#allocation5 + $0x68] sm:$0xff]
  %v2828 = vld [vmem:[#allocation5 + $0x70] sm:$0xff]
  %v2829 = vld [vmem:[#allocation5 + $0x78] sm:$0xff]
  %v2830 = vpack.c.bf16 %v2813, %v2812
  %v2831 = vpack.c.bf16 %v2815, %v2814
  %v2832 = vpack.c.bf16 %v2817, %v2816
  %v2833 = vpack.c.bf16 %v2819, %v2818
  %v2834 = vpack.c.bf16 %v2821, %v2820
  %v2835 = vld [vmem:[%s1] sm:$0xff]
  %v2836 = vld [vmem:[%s1 + $0x8] sm:$0xff]
  %v2837 = vld [vmem:[%s1 + $0x10] sm:$0xff]
  %v2838 = vld [vmem:[%s1 + $0x18] sm:$0xff]
  %v2839 = vld [vmem:[%s1 + $0x20] sm:$0xff]
  %v2840 = vld [vmem:[%s1 + $0x28] sm:$0xff]
  %v2841 = vld [vmem:[%s1 + $0x30] sm:$0xff]
  %v2842 = vld [vmem:[%s1 + $0x38] sm:$0xff]
  %2844 = vset.pattern.permute.xlu0 0
  %2845 = vperm.xlu0 %2844, %v2812
  %v2846 = vpop.permute.xlu0 %2845
  %2849 = vset.pattern.permute.xlu0 0
  %2850 = vperm.xlu0 %2849, %v2813
  %v2851 = vpop.permute.xlu0 %2850
  %2854 = vset.pattern.permute.xlu0 0
  %2855 = vperm.xlu0 %2854, %v2814
  %v2856 = vpop.permute.xlu0 %2855
  %2859 = vset.pattern.permute.xlu0 0
  %2860 = vperm.xlu0 %2859, %v2815
  %v2861 = vpop.permute.xlu0 %2860
  %2864 = vset.pattern.permute.xlu0 0
  %2865 = vperm.xlu0 %2864, %v2816
  %v2866 = vpop.permute.xlu0 %2865
  %2869 = vset.pattern.permute.xlu0 0
  %2870 = vperm.xlu0 %2869, %v2817
  %v2871 = vpop.permute.xlu0 %2870
  %2874 = vset.pattern.permute.xlu0 0
  %2875 = vperm.xlu0 %2874, %v2818
  %v2876 = vpop.permute.xlu0 %2875
  %2879 = vset.pattern.permute.xlu0 0
  %2880 = vperm.xlu0 %2879, %v2819
  %v2881 = vpop.permute.xlu0 %2880
  %v2883 = vmul.f32 %v2846, %v2835
  %v2884 = vmul.f32 %v2851, %v2836
  %v2885 = vmul.f32 %v2856, %v2837
  %v2886 = vmul.f32 %v2861, %v2838
  %v2887 = vmul.f32 %v2866, %v2839
  %v2888 = vmul.f32 %v2871, %v2840
  %v2889 = vmul.f32 %v2876, %v2841
  %v2890 = vmul.f32 %v2881, %v2842
  %2892 = vrot.lane.b32.xlu0 %v2834, 64
  %v2893 = vpop.permute.xlu0 %2892
  %v2896 = vsel %vm520, %v2830, 0
  %v2899 = vsel %vm520, %v2831, 0
  %v2902 = vsel %vm520, %v2832, 0
  %v2905 = vsel %vm520, %v2833, 0
  %2907 = vmatpush.bf16.msra.mxu0 0
  %2908 = vmatpush.bf16.msra.mxu0 0
  %2909 = vmatpush.bf16.msra.mxu0 0
  %2910 = vmatpush.bf16.msra.mxu0 0
  %2911 = vmatpush.bf16.msra.mxu0 0
  %2912 = vmatpush.bf16.msra.mxu0 0
  %2913 = vmatpush.bf16.msra.mxu0 0
  %2914 = vmatpush.bf16.msra.mxu0 %v2893
  %2915 = vmatmul.bf16.gmra.mxu0 %v2896
  %v2916 = vpop.f32.mrf.mxu0
  %v2917 = vadd.f32 %v2883, %v2916
  %v2918 = vpop.f32.mrf.mxu0
  %v2919 = vadd.f32 %v2884, %v2918
  %2920 = vmatmul.bf16.gmra.mxu0 %v2899
  %v2921 = vpop.f32.mrf.mxu0
  %v2922 = vadd.f32 %v2885, %v2921
  %v2923 = vpop.f32.mrf.mxu0
  %v2924 = vadd.f32 %v2886, %v2923
  %2925 = vmatmul.bf16.gmra.mxu0 %v2902
  %v2926 = vpop.f32.mrf.mxu0
  %v2927 = vadd.f32 %v2887, %v2926
  %v2928 = vpop.f32.mrf.mxu0
  %v2929 = vadd.f32 %v2888, %v2928
  %2930 = vmatmul.bf16.gmra.mxu0 %v2905
  %v2931 = vpop.f32.mrf.mxu0
  %v2932 = vadd.f32 %v2889, %v2931
  %v2933 = vpop.f32.mrf.mxu0
  %v2934 = vadd.f32 %v2890, %v2933
  %2935 = vdwg.mxu0
  %v2936 = vld [vmem:[%s1811] sm:$0xff]
  %v2937 = vld [vmem:[%s1811 + $0x8] sm:$0xff]
  %v2938 = vld [vmem:[%s1811 + $0x10] sm:$0xff]
  %v2939 = vld [vmem:[%s1811 + $0x18] sm:$0xff]
  %v2940 = vld [vmem:[%s1811 + $0x20] sm:$0xff]
  %v2941 = vld [vmem:[%s1811 + $0x28] sm:$0xff]
  %v2942 = vld [vmem:[%s1811 + $0x30] sm:$0xff]
  %v2943 = vld [vmem:[%s1811 + $0x38] sm:$0xff]
  %2944 = vset.pattern.permute.xlu0 1
  %2945 = vperm.xlu0 %2944, %v2812
  %v2946 = vpop.permute.xlu0 %2945
  %2948 = vset.pattern.permute.xlu0 1
  %2949 = vperm.xlu0 %2948, %v2813
  %v2950 = vpop.permute.xlu0 %2949
  %2952 = vset.pattern.permute.xlu0 1
  %2953 = vperm.xlu0 %2952, %v2814
  %v2954 = vpop.permute.xlu0 %2953
  %2956 = vset.pattern.permute.xlu0 1
  %2957 = vperm.xlu0 %2956, %v2815
  %v2958 = vpop.permute.xlu0 %2957
  %2960 = vset.pattern.permute.xlu0 1
  %2961 = vperm.xlu0 %2960, %v2816
  %v2962 = vpop.permute.xlu0 %2961
  %2964 = vset.pattern.permute.xlu0 1
  %2965 = vperm.xlu0 %2964, %v2817
  %v2966 = vpop.permute.xlu0 %2965
  %2968 = vset.pattern.permute.xlu0 1
  %2969 = vperm.xlu0 %2968, %v2818
  %v2970 = vpop.permute.xlu0 %2969
  %2972 = vset.pattern.permute.xlu0 1
  %2973 = vperm.xlu0 %2972, %v2819
  %v2974 = vpop.permute.xlu0 %2973
  %v2976 = vmul.f32 %v2946, %v2936
  %v2977 = vmul.f32 %v2950, %v2937
  %v2978 = vmul.f32 %v2954, %v2938
  %v2979 = vmul.f32 %v2958, %v2939
  %v2980 = vmul.f32 %v2962, %v2940
  %v2981 = vmul.f32 %v2966, %v2941
  %v2982 = vmul.f32 %v2970, %v2942
  %v2983 = vmul.f32 %v2974, %v2943
  %v2984 = vadd.f32 %v2917, %v2976
  %v2985 = vadd.f32 %v2919, %v2977
  %v2986 = vadd.f32 %v2922, %v2978
  %v2987 = vadd.f32 %v2924, %v2979
  %v2988 = vadd.f32 %v2927, %v2980
  %v2989 = vadd.f32 %v2929, %v2981
  %v2990 = vadd.f32 %v2932, %v2982
  %v2991 = vadd.f32 %v2934, %v2983
  %v2992 = vld [vmem:[%s1868] sm:$0xff]
  %v2993 = vld [vmem:[%s1868 + $0x8] sm:$0xff]
  %v2994 = vld [vmem:[%s1868 + $0x10] sm:$0xff]
  %v2995 = vld [vmem:[%s1868 + $0x18] sm:$0xff]
  %v2996 = vld [vmem:[%s1868 + $0x20] sm:$0xff]
  %v2997 = vld [vmem:[%s1868 + $0x28] sm:$0xff]
  %v2998 = vld [vmem:[%s1868 + $0x30] sm:$0xff]
  %v2999 = vld [vmem:[%s1868 + $0x38] sm:$0xff]
  %3000 = vset.pattern.permute.xlu0 2
  %3001 = vperm.xlu0 %3000, %v2812
  %v3002 = vpop.permute.xlu0 %3001
  %3004 = vset.pattern.permute.xlu0 2
  %3005 = vperm.xlu0 %3004, %v2813
  %v3006 = vpop.permute.xlu0 %3005
  %3008 = vset.pattern.permute.xlu0 2
  %3009 = vperm.xlu0 %3008, %v2814
  %v3010 = vpop.permute.xlu0 %3009
  %3012 = vset.pattern.permute.xlu0 2
  %3013 = vperm.xlu0 %3012, %v2815
  %v3014 = vpop.permute.xlu0 %3013
  %3016 = vset.pattern.permute.xlu0 2
  %3017 = vperm.xlu0 %3016, %v2816
  %v3018 = vpop.permute.xlu0 %3017
  %3020 = vset.pattern.permute.xlu0 2
  %3021 = vperm.xlu0 %3020, %v2817
  %v3022 = vpop.permute.xlu0 %3021
  %3024 = vset.pattern.permute.xlu0 2
  %3025 = vperm.xlu0 %3024, %v2818
  %v3026 = vpop.permute.xlu0 %3025
  %3028 = vset.pattern.permute.xlu0 2
  %3029 = vperm.xlu0 %3028, %v2819
  %v3030 = vpop.permute.xlu0 %3029
  %v3032 = vmul.f32 %v3002, %v2992
  %v3033 = vmul.f32 %v3006, %v2993
  %v3034 = vmul.f32 %v3010, %v2994
  %v3035 = vmul.f32 %v3014, %v2995
  %v3036 = vmul.f32 %v3018, %v2996
  %v3037 = vmul.f32 %v3022, %v2997
  %v3038 = vmul.f32 %v3026, %v2998
  %v3039 = vmul.f32 %v3030, %v2999
  %v3040 = vadd.f32 %v2984, %v3032
  %v3041 = vadd.f32 %v2985, %v3033
  %v3042 = vadd.f32 %v2986, %v3034
  %v3043 = vadd.f32 %v2987, %v3035
  %v3044 = vadd.f32 %v2988, %v3036
  %v3045 = vadd.f32 %v2989, %v3037
  %v3046 = vadd.f32 %v2990, %v3038
  %v3047 = vadd.f32 %v2991, %v3039
  %v3048 = vld [vmem:[%s1925] sm:$0xff]
  %v3049 = vld [vmem:[%s1925 + $0x8] sm:$0xff]
  %v3050 = vld [vmem:[%s1925 + $0x10] sm:$0xff]
  %v3051 = vld [vmem:[%s1925 + $0x18] sm:$0xff]
  %v3052 = vld [vmem:[%s1925 + $0x20] sm:$0xff]
  %v3053 = vld [vmem:[%s1925 + $0x28] sm:$0xff]
  %v3054 = vld [vmem:[%s1925 + $0x30] sm:$0xff]
  %v3055 = vld [vmem:[%s1925 + $0x38] sm:$0xff]
  %3056 = vset.pattern.permute.xlu0 3
  %3057 = vperm.xlu0 %3056, %v2812
  %v3058 = vpop.permute.xlu0 %3057
  %3060 = vset.pattern.permute.xlu0 3
  %3061 = vperm.xlu0 %3060, %v2813
  %v3062 = vpop.permute.xlu0 %3061
  %3064 = vset.pattern.permute.xlu0 3
  %3065 = vperm.xlu0 %3064, %v2814
  %v3066 = vpop.permute.xlu0 %3065
  %3068 = vset.pattern.permute.xlu0 3
  %3069 = vperm.xlu0 %3068, %v2815
  %v3070 = vpop.permute.xlu0 %3069
  %3072 = vset.pattern.permute.xlu0 3
  %3073 = vperm.xlu0 %3072, %v2816
  %v3074 = vpop.permute.xlu0 %3073
  %3076 = vset.pattern.permute.xlu0 3
  %3077 = vperm.xlu0 %3076, %v2817
  %v3078 = vpop.permute.xlu0 %3077
  %3080 = vset.pattern.permute.xlu0 3
  %3081 = vperm.xlu0 %3080, %v2818
  %v3082 = vpop.permute.xlu0 %3081
  %3084 = vset.pattern.permute.xlu0 3
  %3085 = vperm.xlu0 %3084, %v2819
  %v3086 = vpop.permute.xlu0 %3085
  %v3088 = vmul.f32 %v3058, %v3048
  %v3089 = vmul.f32 %v3062, %v3049
  %v3090 = vmul.f32 %v3066, %v3050
  %v3091 = vmul.f32 %v3070, %v3051
  %v3092 = vmul.f32 %v3074, %v3052
  %v3093 = vmul.f32 %v3078, %v3053
  %v3094 = vmul.f32 %v3082, %v3054
  %v3095 = vmul.f32 %v3086, %v3055
  %v3096 = vadd.f32 %v3040, %v3088
  %v3097 = vadd.f32 %v3041, %v3089
  %v3098 = vadd.f32 %v3042, %v3090
  %v3099 = vadd.f32 %v3043, %v3091
  %v3100 = vadd.f32 %v3044, %v3092
  %v3101 = vadd.f32 %v3045, %v3093
  %v3102 = vadd.f32 %v3046, %v3094
  %v3103 = vadd.f32 %v3047, %v3095
  %v3104 = vld [vmem:[%s1982] sm:$0xff]
  %v3105 = vld [vmem:[%s1982 + $0x8] sm:$0xff]
  %v3106 = vld [vmem:[%s1982 + $0x10] sm:$0xff]
  %v3107 = vld [vmem:[%s1982 + $0x18] sm:$0xff]
  %v3108 = vld [vmem:[%s1982 + $0x20] sm:$0xff]
  %v3109 = vld [vmem:[%s1982 + $0x28] sm:$0xff]
  %v3110 = vld [vmem:[%s1982 + $0x30] sm:$0xff]
  %v3111 = vld [vmem:[%s1982 + $0x38] sm:$0xff]
  %3112 = vset.pattern.permute.xlu0 4
  %3113 = vperm.xlu0 %3112, %v2812
  %v3114 = vpop.permute.xlu0 %3113
  %3116 = vset.pattern.permute.xlu0 4
  %3117 = vperm.xlu0 %3116, %v2813
  %v3118 = vpop.permute.xlu0 %3117
  %3120 = vset.pattern.permute.xlu0 4
  %3121 = vperm.xlu0 %3120, %v2814
  %v3122 = vpop.permute.xlu0 %3121
  %3124 = vset.pattern.permute.xlu0 4
  %3125 = vperm.xlu0 %3124, %v2815
  %v3126 = vpop.permute.xlu0 %3125
  %3128 = vset.pattern.permute.xlu0 4
  %3129 = vperm.xlu0 %3128, %v2816
  %v3130 = vpop.permute.xlu0 %3129
  %3132 = vset.pattern.permute.xlu0 4
  %3133 = vperm.xlu0 %3132, %v2817
  %v3134 = vpop.permute.xlu0 %3133
  %3136 = vset.pattern.permute.xlu0 4
  %3137 = vperm.xlu0 %3136, %v2818
  %v3138 = vpop.permute.xlu0 %3137
  %3140 = vset.pattern.permute.xlu0 4
  %3141 = vperm.xlu0 %3140, %v2819
  %v3142 = vpop.permute.xlu0 %3141
  %v3144 = vmul.f32 %v3114, %v3104
  %v3145 = vmul.f32 %v3118, %v3105
  %v3146 = vmul.f32 %v3122, %v3106
  %v3147 = vmul.f32 %v3126, %v3107
  %v3148 = vmul.f32 %v3130, %v3108
  %v3149 = vmul.f32 %v3134, %v3109
  %v3150 = vmul.f32 %v3138, %v3110
  %v3151 = vmul.f32 %v3142, %v3111
  %v3152 = vadd.f32 %v3096, %v3144
  %v3153 = vadd.f32 %v3097, %v3145
  %v3154 = vadd.f32 %v3098, %v3146
  %v3155 = vadd.f32 %v3099, %v3147
  %v3156 = vadd.f32 %v3100, %v3148
  %v3157 = vadd.f32 %v3101, %v3149
  %v3158 = vadd.f32 %v3102, %v3150
  %v3159 = vadd.f32 %v3103, %v3151
  %v3160 = vld [vmem:[%s2039] sm:$0xff]
  %v3161 = vld [vmem:[%s2039 + $0x8] sm:$0xff]
  %v3162 = vld [vmem:[%s2039 + $0x10] sm:$0xff]
  %v3163 = vld [vmem:[%s2039 + $0x18] sm:$0xff]
  %v3164 = vld [vmem:[%s2039 + $0x20] sm:$0xff]
  %v3165 = vld [vmem:[%s2039 + $0x28] sm:$0xff]
  %v3166 = vld [vmem:[%s2039 + $0x30] sm:$0xff]
  %v3167 = vld [vmem:[%s2039 + $0x38] sm:$0xff]
  %3168 = vset.pattern.permute.xlu0 5
  %3169 = vperm.xlu0 %3168, %v2812
  %v3170 = vpop.permute.xlu0 %3169
  %3172 = vset.pattern.permute.xlu0 5
  %3173 = vperm.xlu0 %3172, %v2813
  %v3174 = vpop.permute.xlu0 %3173
  %3176 = vset.pattern.permute.xlu0 5
  %3177 = vperm.xlu0 %3176, %v2814
  %v3178 = vpop.permute.xlu0 %3177
  %3180 = vset.pattern.permute.xlu0 5
  %3181 = vperm.xlu0 %3180, %v2815
  %v3182 = vpop.permute.xlu0 %3181
  %3184 = vset.pattern.permute.xlu0 5
  %3185 = vperm.xlu0 %3184, %v2816
  %v3186 = vpop.permute.xlu0 %3185
  %3188 = vset.pattern.permute.xlu0 5
  %3189 = vperm.xlu0 %3188, %v2817
  %v3190 = vpop.permute.xlu0 %3189
  %3192 = vset.pattern.permute.xlu0 5
  %3193 = vperm.xlu0 %3192, %v2818
  %v3194 = vpop.permute.xlu0 %3193
  %3196 = vset.pattern.permute.xlu0 5
  %3197 = vperm.xlu0 %3196, %v2819
  %v3198 = vpop.permute.xlu0 %3197
  %v3200 = vmul.f32 %v3170, %v3160
  %v3201 = vmul.f32 %v3174, %v3161
  %v3202 = vmul.f32 %v3178, %v3162
  %v3203 = vmul.f32 %v3182, %v3163
  %v3204 = vmul.f32 %v3186, %v3164
  %v3205 = vmul.f32 %v3190, %v3165
  %v3206 = vmul.f32 %v3194, %v3166
  %v3207 = vmul.f32 %v3198, %v3167
  %v3208 = vadd.f32 %v3152, %v3200
  %v3209 = vadd.f32 %v3153, %v3201
  %v3210 = vadd.f32 %v3154, %v3202
  %v3211 = vadd.f32 %v3155, %v3203
  %v3212 = vadd.f32 %v3156, %v3204
  %v3213 = vadd.f32 %v3157, %v3205
  %v3214 = vadd.f32 %v3158, %v3206
  %v3215 = vadd.f32 %v3159, %v3207
  %v3216 = vld [vmem:[%s2096] sm:$0xff]
  %v3217 = vld [vmem:[%s2096 + $0x8] sm:$0xff]
  %v3218 = vld [vmem:[%s2096 + $0x10] sm:$0xff]
  %v3219 = vld [vmem:[%s2096 + $0x18] sm:$0xff]
  %v3220 = vld [vmem:[%s2096 + $0x20] sm:$0xff]
  %v3221 = vld [vmem:[%s2096 + $0x28] sm:$0xff]
  %v3222 = vld [vmem:[%s2096 + $0x30] sm:$0xff]
  %v3223 = vld [vmem:[%s2096 + $0x38] sm:$0xff]
  %3224 = vset.pattern.permute.xlu0 6
  %3225 = vperm.xlu0 %3224, %v2812
  %v3226 = vpop.permute.xlu0 %3225
  %3228 = vset.pattern.permute.xlu0 6
  %3229 = vperm.xlu0 %3228, %v2813
  %v3230 = vpop.permute.xlu0 %3229
  %3232 = vset.pattern.permute.xlu0 6
  %3233 = vperm.xlu0 %3232, %v2814
  %v3234 = vpop.permute.xlu0 %3233
  %3236 = vset.pattern.permute.xlu0 6
  %3237 = vperm.xlu0 %3236, %v2815
  %v3238 = vpop.permute.xlu0 %3237
  %3240 = vset.pattern.permute.xlu0 6
  %3241 = vperm.xlu0 %3240, %v2816
  %v3242 = vpop.permute.xlu0 %3241
  %3244 = vset.pattern.permute.xlu0 6
  %3245 = vperm.xlu0 %3244, %v2817
  %v3246 = vpop.permute.xlu0 %3245
  %3248 = vset.pattern.permute.xlu0 6
  %3249 = vperm.xlu0 %3248, %v2818
  %v3250 = vpop.permute.xlu0 %3249
  %3252 = vset.pattern.permute.xlu0 6
  %3253 = vperm.xlu0 %3252, %v2819
  %v3254 = vpop.permute.xlu0 %3253
  %v3256 = vmul.f32 %v3226, %v3216
  %v3257 = vmul.f32 %v3230, %v3217
  %v3258 = vmul.f32 %v3234, %v3218
  %v3259 = vmul.f32 %v3238, %v3219
  %v3260 = vmul.f32 %v3242, %v3220
  %v3261 = vmul.f32 %v3246, %v3221
  %v3262 = vmul.f32 %v3250, %v3222
  %v3263 = vmul.f32 %v3254, %v3223
  %v3264 = vadd.f32 %v3208, %v3256
  %v3265 = vadd.f32 %v3209, %v3257
  %v3266 = vadd.f32 %v3210, %v3258
  %v3267 = vadd.f32 %v3211, %v3259
  %v3268 = vadd.f32 %v3212, %v3260
  %v3269 = vadd.f32 %v3213, %v3261
  %v3270 = vadd.f32 %v3214, %v3262
  %v3271 = vadd.f32 %v3215, %v3263
  %v3272 = vld [vmem:[%s2153] sm:$0xff]
  %v3273 = vld [vmem:[%s2153 + $0x8] sm:$0xff]
  %v3274 = vld [vmem:[%s2153 + $0x10] sm:$0xff]
  %v3275 = vld [vmem:[%s2153 + $0x18] sm:$0xff]
  %v3276 = vld [vmem:[%s2153 + $0x20] sm:$0xff]
  %v3277 = vld [vmem:[%s2153 + $0x28] sm:$0xff]
  %v3278 = vld [vmem:[%s2153 + $0x30] sm:$0xff]
  %v3279 = vld [vmem:[%s2153 + $0x38] sm:$0xff]
  %3280 = vset.pattern.permute.xlu0 7
  %3281 = vperm.xlu0 %3280, %v2812
  %v3282 = vpop.permute.xlu0 %3281
  %3284 = vset.pattern.permute.xlu0 7
  %3285 = vperm.xlu0 %3284, %v2813
  %v3286 = vpop.permute.xlu0 %3285
  %3288 = vset.pattern.permute.xlu0 7
  %3289 = vperm.xlu0 %3288, %v2814
  %v3290 = vpop.permute.xlu0 %3289
  %3292 = vset.pattern.permute.xlu0 7
  %3293 = vperm.xlu0 %3292, %v2815
  %v3294 = vpop.permute.xlu0 %3293
  %3296 = vset.pattern.permute.xlu0 7
  %3297 = vperm.xlu0 %3296, %v2816
  %v3298 = vpop.permute.xlu0 %3297
  %3300 = vset.pattern.permute.xlu0 7
  %3301 = vperm.xlu0 %3300, %v2817
  %v3302 = vpop.permute.xlu0 %3301
  %3304 = vset.pattern.permute.xlu0 7
  %3305 = vperm.xlu0 %3304, %v2818
  %v3306 = vpop.permute.xlu0 %3305
  %3308 = vset.pattern.permute.xlu0 7
  %3309 = vperm.xlu0 %3308, %v2819
  %v3310 = vpop.permute.xlu0 %3309
  %v3312 = vmul.f32 %v3282, %v3272
  %v3313 = vmul.f32 %v3286, %v3273
  %v3314 = vmul.f32 %v3290, %v3274
  %v3315 = vmul.f32 %v3294, %v3275
  %v3316 = vmul.f32 %v3298, %v3276
  %v3317 = vmul.f32 %v3302, %v3277
  %v3318 = vmul.f32 %v3306, %v3278
  %v3319 = vmul.f32 %v3310, %v3279
  %v3320 = vadd.f32 %v3264, %v3312
  %v3321 = vadd.f32 %v3265, %v3313
  %v3322 = vadd.f32 %v3266, %v3314
  %v3323 = vadd.f32 %v3267, %v3315
  %v3324 = vadd.f32 %v3268, %v3316
  %v3325 = vadd.f32 %v3269, %v3317
  %v3326 = vadd.f32 %v3270, %v3318
  %v3327 = vadd.f32 %v3271, %v3319
  %v3328 = vld [vmem:[%s2210] sm:$0xff]
  %v3329 = vld [vmem:[%s2210 + $0x8] sm:$0xff]
  %v3330 = vld [vmem:[%s2210 + $0x10] sm:$0xff]
  %v3331 = vld [vmem:[%s2210 + $0x18] sm:$0xff]
  %v3332 = vld [vmem:[%s2210 + $0x20] sm:$0xff]
  %v3333 = vld [vmem:[%s2210 + $0x28] sm:$0xff]
  %v3334 = vld [vmem:[%s2210 + $0x30] sm:$0xff]
  %v3335 = vld [vmem:[%s2210 + $0x38] sm:$0xff]
  %3336 = vset.pattern.permute.xlu0 8
  %3337 = vperm.xlu0 %3336, %v2812
  %v3338 = vpop.permute.xlu0 %3337
  %3340 = vset.pattern.permute.xlu0 8
  %3341 = vperm.xlu0 %3340, %v2813
  %v3342 = vpop.permute.xlu0 %3341
  %3344 = vset.pattern.permute.xlu0 8
  %3345 = vperm.xlu0 %3344, %v2814
  %v3346 = vpop.permute.xlu0 %3345
  %3348 = vset.pattern.permute.xlu0 8
  %3349 = vperm.xlu0 %3348, %v2815
  %v3350 = vpop.permute.xlu0 %3349
  %3352 = vset.pattern.permute.xlu0 8
  %3353 = vperm.xlu0 %3352, %v2816
  %v3354 = vpop.permute.xlu0 %3353
  %3356 = vset.pattern.permute.xlu0 8
  %3357 = vperm.xlu0 %3356, %v2817
  %v3358 = vpop.permute.xlu0 %3357
  %3360 = vset.pattern.permute.xlu0 8
  %3361 = vperm.xlu0 %3360, %v2818
  %v3362 = vpop.permute.xlu0 %3361
  %3364 = vset.pattern.permute.xlu0 8
  %3365 = vperm.xlu0 %3364, %v2819
  %v3366 = vpop.permute.xlu0 %3365
  %v3368 = vmul.f32 %v3338, %v3328
  %v3369 = vmul.f32 %v3342, %v3329
  %v3370 = vmul.f32 %v3346, %v3330
  %v3371 = vmul.f32 %v3350, %v3331
  %v3372 = vmul.f32 %v3354, %v3332
  %v3373 = vmul.f32 %v3358, %v3333
  %v3374 = vmul.f32 %v3362, %v3334
  %v3375 = vmul.f32 %v3366, %v3335
  %v3376 = vadd.f32 %v3320, %v3368
  %v3377 = vadd.f32 %v3321, %v3369
  %v3378 = vadd.f32 %v3322, %v3370
  %v3379 = vadd.f32 %v3323, %v3371
  %v3380 = vadd.f32 %v3324, %v3372
  %v3381 = vadd.f32 %v3325, %v3373
  %v3382 = vadd.f32 %v3326, %v3374
  %v3383 = vadd.f32 %v3327, %v3375
  %v3384 = vld [vmem:[%s2267] sm:$0xff]
  %v3385 = vld [vmem:[%s2267 + $0x8] sm:$0xff]
  %v3386 = vld [vmem:[%s2267 + $0x10] sm:$0xff]
  %v3387 = vld [vmem:[%s2267 + $0x18] sm:$0xff]
  %v3388 = vld [vmem:[%s2267 + $0x20] sm:$0xff]
  %v3389 = vld [vmem:[%s2267 + $0x28] sm:$0xff]
  %v3390 = vld [vmem:[%s2267 + $0x30] sm:$0xff]
  %v3391 = vld [vmem:[%s2267 + $0x38] sm:$0xff]
  %3392 = vset.pattern.permute.xlu0 9
  %3393 = vperm.xlu0 %3392, %v2812
  %v3394 = vpop.permute.xlu0 %3393
  %3396 = vset.pattern.permute.xlu0 9
  %3397 = vperm.xlu0 %3396, %v2813
  %v3398 = vpop.permute.xlu0 %3397
  %3400 = vset.pattern.permute.xlu0 9
  %3401 = vperm.xlu0 %3400, %v2814
  %v3402 = vpop.permute.xlu0 %3401
  %3404 = vset.pattern.permute.xlu0 9
  %3405 = vperm.xlu0 %3404, %v2815
  %v3406 = vpop.permute.xlu0 %3405
  %3408 = vset.pattern.permute.xlu0 9
  %3409 = vperm.xlu0 %3408, %v2816
  %v3410 = vpop.permute.xlu0 %3409
  %3412 = vset.pattern.permute.xlu0 9
  %3413 = vperm.xlu0 %3412, %v2817
  %v3414 = vpop.permute.xlu0 %3413
  %3416 = vset.pattern.permute.xlu0 9
  %3417 = vperm.xlu0 %3416, %v2818
  %v3418 = vpop.permute.xlu0 %3417
  %3420 = vset.pattern.permute.xlu0 9
  %3421 = vperm.xlu0 %3420, %v2819
  %v3422 = vpop.permute.xlu0 %3421
  %v3424 = vmul.f32 %v3394, %v3384
  %v3425 = vmul.f32 %v3398, %v3385
  %v3426 = vmul.f32 %v3402, %v3386
  %v3427 = vmul.f32 %v3406, %v3387
  %v3428 = vmul.f32 %v3410, %v3388
  %v3429 = vmul.f32 %v3414, %v3389
  %v3430 = vmul.f32 %v3418, %v3390
  %v3431 = vmul.f32 %v3422, %v3391
  %v3432 = vadd.f32 %v3376, %v3424
  %v3433 = vadd.f32 %v3377, %v3425
  %v3434 = vadd.f32 %v3378, %v3426
  %v3435 = vadd.f32 %v3379, %v3427
  %v3436 = vadd.f32 %v3380, %v3428
  %v3437 = vadd.f32 %v3381, %v3429
  %v3438 = vadd.f32 %v3382, %v3430
  %v3439 = vadd.f32 %v3383, %v3431
  %v3440 = vld [vmem:[%s2324] sm:$0xff]
  %v3441 = vld [vmem:[%s2324 + $0x8] sm:$0xff]
  %v3442 = vld [vmem:[%s2324 + $0x10] sm:$0xff]
  %v3443 = vld [vmem:[%s2324 + $0x18] sm:$0xff]
  %v3444 = vld [vmem:[%s2324 + $0x20] sm:$0xff]
  %v3445 = vld [vmem:[%s2324 + $0x28] sm:$0xff]
  %v3446 = vld [vmem:[%s2324 + $0x30] sm:$0xff]
  %v3447 = vld [vmem:[%s2324 + $0x38] sm:$0xff]
  %3448 = vset.pattern.permute.xlu0 10
  %3449 = vperm.xlu0 %3448, %v2812
  %v3450 = vpop.permute.xlu0 %3449
  %3452 = vset.pattern.permute.xlu0 10
  %3453 = vperm.xlu0 %3452, %v2813
  %v3454 = vpop.permute.xlu0 %3453
  %3456 = vset.pattern.permute.xlu0 10
  %3457 = vperm.xlu0 %3456, %v2814
  %v3458 = vpop.permute.xlu0 %3457
  %3460 = vset.pattern.permute.xlu0 10
  %3461 = vperm.xlu0 %3460, %v2815
  %v3462 = vpop.permute.xlu0 %3461
  %3464 = vset.pattern.permute.xlu0 10
  %3465 = vperm.xlu0 %3464, %v2816
  %v3466 = vpop.permute.xlu0 %3465
  %3468 = vset.pattern.permute.xlu0 10
  %3469 = vperm.xlu0 %3468, %v2817
  %v3470 = vpop.permute.xlu0 %3469
  %3472 = vset.pattern.permute.xlu0 10
  %3473 = vperm.xlu0 %3472, %v2818
  %v3474 = vpop.permute.xlu0 %3473
  %3476 = vset.pattern.permute.xlu0 10
  %3477 = vperm.xlu0 %3476, %v2819
  %v3478 = vpop.permute.xlu0 %3477
  %v3480 = vmul.f32 %v3450, %v3440
  %v3481 = vmul.f32 %v3454, %v3441
  %v3482 = vmul.f32 %v3458, %v3442
  %v3483 = vmul.f32 %v3462, %v3443
  %v3484 = vmul.f32 %v3466, %v3444
  %v3485 = vmul.f32 %v3470, %v3445
  %v3486 = vmul.f32 %v3474, %v3446
  %v3487 = vmul.f32 %v3478, %v3447
  %v3488 = vadd.f32 %v3432, %v3480
  %v3489 = vadd.f32 %v3433, %v3481
  %v3490 = vadd.f32 %v3434, %v3482
  %v3491 = vadd.f32 %v3435, %v3483
  %v3492 = vadd.f32 %v3436, %v3484
  %v3493 = vadd.f32 %v3437, %v3485
  %v3494 = vadd.f32 %v3438, %v3486
  %v3495 = vadd.f32 %v3439, %v3487
  %v3496 = vld [vmem:[%s2381] sm:$0xff]
  %v3497 = vld [vmem:[%s2381 + $0x8] sm:$0xff]
  %v3498 = vld [vmem:[%s2381 + $0x10] sm:$0xff]
  %v3499 = vld [vmem:[%s2381 + $0x18] sm:$0xff]
  %v3500 = vld [vmem:[%s2381 + $0x20] sm:$0xff]
  %v3501 = vld [vmem:[%s2381 + $0x28] sm:$0xff]
  %v3502 = vld [vmem:[%s2381 + $0x30] sm:$0xff]
  %v3503 = vld [vmem:[%s2381 + $0x38] sm:$0xff]
  %3504 = vset.pattern.permute.xlu0 11
  %3505 = vperm.xlu0 %3504, %v2812
  %v3506 = vpop.permute.xlu0 %3505
  %3508 = vset.pattern.permute.xlu0 11
  %3509 = vperm.xlu0 %3508, %v2813
  %v3510 = vpop.permute.xlu0 %3509
  %3512 = vset.pattern.permute.xlu0 11
  %3513 = vperm.xlu0 %3512, %v2814
  %v3514 = vpop.permute.xlu0 %3513
  %3516 = vset.pattern.permute.xlu0 11
  %3517 = vperm.xlu0 %3516, %v2815
  %v3518 = vpop.permute.xlu0 %3517
  %3520 = vset.pattern.permute.xlu0 11
  %3521 = vperm.xlu0 %3520, %v2816
  %v3522 = vpop.permute.xlu0 %3521
  %3524 = vset.pattern.permute.xlu0 11
  %3525 = vperm.xlu0 %3524, %v2817
  %v3526 = vpop.permute.xlu0 %3525
  %3528 = vset.pattern.permute.xlu0 11
  %3529 = vperm.xlu0 %3528, %v2818
  %v3530 = vpop.permute.xlu0 %3529
  %3532 = vset.pattern.permute.xlu0 11
  %3533 = vperm.xlu0 %3532, %v2819
  %v3534 = vpop.permute.xlu0 %3533
  %v3536 = vmul.f32 %v3506, %v3496
  %v3537 = vmul.f32 %v3510, %v3497
  %v3538 = vmul.f32 %v3514, %v3498
  %v3539 = vmul.f32 %v3518, %v3499
  %v3540 = vmul.f32 %v3522, %v3500
  %v3541 = vmul.f32 %v3526, %v3501
  %v3542 = vmul.f32 %v3530, %v3502
  %v3543 = vmul.f32 %v3534, %v3503
  %v3544 = vadd.f32 %v3488, %v3536
  %v3545 = vadd.f32 %v3489, %v3537
  %v3546 = vadd.f32 %v3490, %v3538
  %v3547 = vadd.f32 %v3491, %v3539
  %v3548 = vadd.f32 %v3492, %v3540
  %v3549 = vadd.f32 %v3493, %v3541
  %v3550 = vadd.f32 %v3494, %v3542
  %v3551 = vadd.f32 %v3495, %v3543
  %v3552 = vld [vmem:[%s2438] sm:$0xff]
  %v3553 = vld [vmem:[%s2438 + $0x8] sm:$0xff]
  %v3554 = vld [vmem:[%s2438 + $0x10] sm:$0xff]
  %v3555 = vld [vmem:[%s2438 + $0x18] sm:$0xff]
  %v3556 = vld [vmem:[%s2438 + $0x20] sm:$0xff]
  %v3557 = vld [vmem:[%s2438 + $0x28] sm:$0xff]
  %v3558 = vld [vmem:[%s2438 + $0x30] sm:$0xff]
  %v3559 = vld [vmem:[%s2438 + $0x38] sm:$0xff]
  %3560 = vset.pattern.permute.xlu0 12
  %3561 = vperm.xlu0 %3560, %v2812
  %v3562 = vpop.permute.xlu0 %3561
  %3564 = vset.pattern.permute.xlu0 12
  %3565 = vperm.xlu0 %3564, %v2813
  %v3566 = vpop.permute.xlu0 %3565
  %3568 = vset.pattern.permute.xlu0 12
  %3569 = vperm.xlu0 %3568, %v2814
  %v3570 = vpop.permute.xlu0 %3569
  %3572 = vset.pattern.permute.xlu0 12
  %3573 = vperm.xlu0 %3572, %v2815
  %v3574 = vpop.permute.xlu0 %3573
  %3576 = vset.pattern.permute.xlu0 12
  %3577 = vperm.xlu0 %3576, %v2816
  %v3578 = vpop.permute.xlu0 %3577
  %3580 = vset.pattern.permute.xlu0 12
  %3581 = vperm.xlu0 %3580, %v2817
  %v3582 = vpop.permute.xlu0 %3581
  %3584 = vset.pattern.permute.xlu0 12
  %3585 = vperm.xlu0 %3584, %v2818
  %v3586 = vpop.permute.xlu0 %3585
  %3588 = vset.pattern.permute.xlu0 12
  %3589 = vperm.xlu0 %3588, %v2819
  %v3590 = vpop.permute.xlu0 %3589
  %v3592 = vmul.f32 %v3562, %v3552
  %v3593 = vmul.f32 %v3566, %v3553
  %v3594 = vmul.f32 %v3570, %v3554
  %v3595 = vmul.f32 %v3574, %v3555
  %v3596 = vmul.f32 %v3578, %v3556
  %v3597 = vmul.f32 %v3582, %v3557
  %v3598 = vmul.f32 %v3586, %v3558
  %v3599 = vmul.f32 %v3590, %v3559
  %v3600 = vadd.f32 %v3544, %v3592
  %v3601 = vadd.f32 %v3545, %v3593
  %v3602 = vadd.f32 %v3546, %v3594
  %v3603 = vadd.f32 %v3547, %v3595
  %v3604 = vadd.f32 %v3548, %v3596
  %v3605 = vadd.f32 %v3549, %v3597
  %v3606 = vadd.f32 %v3550, %v3598
  %v3607 = vadd.f32 %v3551, %v3599
  %v3608 = vld [vmem:[%s2495] sm:$0xff]
  %v3609 = vld [vmem:[%s2495 + $0x8] sm:$0xff]
  %v3610 = vld [vmem:[%s2495 + $0x10] sm:$0xff]
  %v3611 = vld [vmem:[%s2495 + $0x18] sm:$0xff]
  %v3612 = vld [vmem:[%s2495 + $0x20] sm:$0xff]
  %v3613 = vld [vmem:[%s2495 + $0x28] sm:$0xff]
  %v3614 = vld [vmem:[%s2495 + $0x30] sm:$0xff]
  %v3615 = vld [vmem:[%s2495 + $0x38] sm:$0xff]
  %3616 = vset.pattern.permute.xlu0 13
  %3617 = vperm.xlu0 %3616, %v2812
  %v3618 = vpop.permute.xlu0 %3617
  %3620 = vset.pattern.permute.xlu0 13
  %3621 = vperm.xlu0 %3620, %v2813
  %v3622 = vpop.permute.xlu0 %3621
  %3624 = vset.pattern.permute.xlu0 13
  %3625 = vperm.xlu0 %3624, %v2814
  %v3626 = vpop.permute.xlu0 %3625
  %3628 = vset.pattern.permute.xlu0 13
  %3629 = vperm.xlu0 %3628, %v2815
  %v3630 = vpop.permute.xlu0 %3629
  %3632 = vset.pattern.permute.xlu0 13
  %3633 = vperm.xlu0 %3632, %v2816
  %v3634 = vpop.permute.xlu0 %3633
  %3636 = vset.pattern.permute.xlu0 13
  %3637 = vperm.xlu0 %3636, %v2817
  %v3638 = vpop.permute.xlu0 %3637
  %3640 = vset.pattern.permute.xlu0 13
  %3641 = vperm.xlu0 %3640, %v2818
  %v3642 = vpop.permute.xlu0 %3641
  %3644 = vset.pattern.permute.xlu0 13
  %3645 = vperm.xlu0 %3644, %v2819
  %v3646 = vpop.permute.xlu0 %3645
  %v3648 = vmul.f32 %v3618, %v3608
  %v3649 = vmul.f32 %v3622, %v3609
  %v3650 = vmul.f32 %v3626, %v3610
  %v3651 = vmul.f32 %v3630, %v3611
  %v3652 = vmul.f32 %v3634, %v3612
  %v3653 = vmul.f32 %v3638, %v3613
  %v3654 = vmul.f32 %v3642, %v3614
  %v3655 = vmul.f32 %v3646, %v3615
  %v3656 = vadd.f32 %v3600, %v3648
  %v3657 = vadd.f32 %v3601, %v3649
  %v3658 = vadd.f32 %v3602, %v3650
  %v3659 = vadd.f32 %v3603, %v3651
  %v3660 = vadd.f32 %v3604, %v3652
  %v3661 = vadd.f32 %v3605, %v3653
  %v3662 = vadd.f32 %v3606, %v3654
  %v3663 = vadd.f32 %v3607, %v3655
  %v3664 = vld [vmem:[%s2552] sm:$0xff]
  %v3665 = vld [vmem:[%s2552 + $0x8] sm:$0xff]
  %v3666 = vld [vmem:[%s2552 + $0x10] sm:$0xff]
  %v3667 = vld [vmem:[%s2552 + $0x18] sm:$0xff]
  %v3668 = vld [vmem:[%s2552 + $0x20] sm:$0xff]
  %v3669 = vld [vmem:[%s2552 + $0x28] sm:$0xff]
  %v3670 = vld [vmem:[%s2552 + $0x30] sm:$0xff]
  %v3671 = vld [vmem:[%s2552 + $0x38] sm:$0xff]
  %3672 = vset.pattern.permute.xlu0 14
  %3673 = vperm.xlu0 %3672, %v2812
  %v3674 = vpop.permute.xlu0 %3673
  %3676 = vset.pattern.permute.xlu0 14
  %3677 = vperm.xlu0 %3676, %v2813
  %v3678 = vpop.permute.xlu0 %3677
  %3680 = vset.pattern.permute.xlu0 14
  %3681 = vperm.xlu0 %3680, %v2814
  %v3682 = vpop.permute.xlu0 %3681
  %3684 = vset.pattern.permute.xlu0 14
  %3685 = vperm.xlu0 %3684, %v2815
  %v3686 = vpop.permute.xlu0 %3685
  %3688 = vset.pattern.permute.xlu0 14
  %3689 = vperm.xlu0 %3688, %v2816
  %v3690 = vpop.permute.xlu0 %3689
  %3692 = vset.pattern.permute.xlu0 14
  %3693 = vperm.xlu0 %3692, %v2817
  %v3694 = vpop.permute.xlu0 %3693
  %3696 = vset.pattern.permute.xlu0 14
  %3697 = vperm.xlu0 %3696, %v2818
  %v3698 = vpop.permute.xlu0 %3697
  %3700 = vset.pattern.permute.xlu0 14
  %3701 = vperm.xlu0 %3700, %v2819
  %v3702 = vpop.permute.xlu0 %3701
  %v3704 = vmul.f32 %v3674, %v3664
  %v3705 = vmul.f32 %v3678, %v3665
  %v3706 = vmul.f32 %v3682, %v3666
  %v3707 = vmul.f32 %v3686, %v3667
  %v3708 = vmul.f32 %v3690, %v3668
  %v3709 = vmul.f32 %v3694, %v3669
  %v3710 = vmul.f32 %v3698, %v3670
  %v3711 = vmul.f32 %v3702, %v3671
  %v3712 = vadd.f32 %v3656, %v3704
  %v3713 = vadd.f32 %v3657, %v3705
  %v3714 = vadd.f32 %v3658, %v3706
  %v3715 = vadd.f32 %v3659, %v3707
  %v3716 = vadd.f32 %v3660, %v3708
  %v3717 = vadd.f32 %v3661, %v3709
  %v3718 = vadd.f32 %v3662, %v3710
  %v3719 = vadd.f32 %v3663, %v3711
  %v3720 = vld [vmem:[%s2609] sm:$0xff]
  %v3721 = vld [vmem:[%s2609 + $0x8] sm:$0xff]
  %v3722 = vld [vmem:[%s2609 + $0x10] sm:$0xff]
  %v3723 = vld [vmem:[%s2609 + $0x18] sm:$0xff]
  %v3724 = vld [vmem:[%s2609 + $0x20] sm:$0xff]
  %v3725 = vld [vmem:[%s2609 + $0x28] sm:$0xff]
  %v3726 = vld [vmem:[%s2609 + $0x30] sm:$0xff]
  %v3727 = vld [vmem:[%s2609 + $0x38] sm:$0xff]
  %3728 = vset.pattern.permute.xlu0 15
  %3729 = vperm.xlu0 %3728, %v2812
  %v3730 = vpop.permute.xlu0 %3729
  %3732 = vset.pattern.permute.xlu0 15
  %3733 = vperm.xlu0 %3732, %v2813
  %v3734 = vpop.permute.xlu0 %3733
  %3736 = vset.pattern.permute.xlu0 15
  %3737 = vperm.xlu0 %3736, %v2814
  %v3738 = vpop.permute.xlu0 %3737
  %3740 = vset.pattern.permute.xlu0 15
  %3741 = vperm.xlu0 %3740, %v2815
  %v3742 = vpop.permute.xlu0 %3741
  %3744 = vset.pattern.permute.xlu0 15
  %3745 = vperm.xlu0 %3744, %v2816
  %v3746 = vpop.permute.xlu0 %3745
  %3748 = vset.pattern.permute.xlu0 15
  %3749 = vperm.xlu0 %3748, %v2817
  %v3750 = vpop.permute.xlu0 %3749
  %3752 = vset.pattern.permute.xlu0 15
  %3753 = vperm.xlu0 %3752, %v2818
  %v3754 = vpop.permute.xlu0 %3753
  %3756 = vset.pattern.permute.xlu0 15
  %3757 = vperm.xlu0 %3756, %v2819
  %v3758 = vpop.permute.xlu0 %3757
  %v3760 = vmul.f32 %v3730, %v3720
  %v3761 = vmul.f32 %v3734, %v3721
  %v3762 = vmul.f32 %v3738, %v3722
  %v3763 = vmul.f32 %v3742, %v3723
  %v3764 = vmul.f32 %v3746, %v3724
  %v3765 = vmul.f32 %v3750, %v3725
  %v3766 = vmul.f32 %v3754, %v3726
  %v3767 = vmul.f32 %v3758, %v3727
  %v3768 = vadd.f32 %v3712, %v3760
  %v3769 = vadd.f32 %v3713, %v3761
  %v3770 = vadd.f32 %v3714, %v3762
  %v3771 = vadd.f32 %v3715, %v3763
  %v3772 = vadd.f32 %v3716, %v3764
  %v3773 = vadd.f32 %v3717, %v3765
  %v3774 = vadd.f32 %v3718, %v3766
  %v3775 = vadd.f32 %v3719, %v3767
  %v3776 = vsel %vm2666, %v3768, -inf
  %3777 = vmax.xlane.f32.xlu0 %v3776
  %v3778 = vpop.xlane.xlu0 %3777
  %v3779 = vsel %vm2666, %v3769, -inf
  %3780 = vmax.xlane.f32.xlu0 %v3779
  %v3781 = vpop.xlane.xlu0 %3780
  %v3782 = vsel %vm2666, %v3770, -inf
  %3783 = vmax.xlane.f32.xlu0 %v3782
  %v3784 = vpop.xlane.xlu0 %3783
  %v3785 = vsel %vm2666, %v3771, -inf
  %3786 = vmax.xlane.f32.xlu0 %v3785
  %v3787 = vpop.xlane.xlu0 %3786
  %v3788 = vsel %vm2666, %v3772, -inf
  %3789 = vmax.xlane.f32.xlu0 %v3788
  %v3790 = vpop.xlane.xlu0 %3789
  %v3791 = vsel %vm2666, %v3773, -inf
  %3792 = vmax.xlane.f32.xlu0 %v3791
  %v3793 = vpop.xlane.xlu0 %3792
  %v3794 = vsel %vm2666, %v3774, -inf
  %3795 = vmax.xlane.f32.xlu0 %v3794
  %v3796 = vpop.xlane.xlu0 %3795
  %v3797 = vsel %vm2666, %v3775, -inf
  %3798 = vmax.xlane.f32.xlu0 %v3797
  %v3799 = vpop.xlane.xlu0 %3798
  %v3800 = vsub.f32 %v3768, %v3778
  %v3801 = vsub.f32 %v3769, %v3781
  %v3802 = vsub.f32 %v3770, %v3784
  %v3803 = vsub.f32 %v3771, %v3787
  %v3804 = vsub.f32 %v3772, %v3790
  %v3805 = vsub.f32 %v3773, %v3793
  %v3806 = vsub.f32 %v3774, %v3796
  %v3807 = vsub.f32 %v3775, %v3799
  %v3808 = vmul.f32 %v3800, 1.442695
  %v3809 = vpow.pop %v3808
  %v3810 = vmul.f32 %v3801, 1.442695
  %v3811 = vpow.pop %v3810
  %v3812 = vmul.f32 %v3802, 1.442695
  %v3813 = vpow.pop %v3812
  %v3814 = vmul.f32 %v3803, 1.442695
  %v3815 = vpow.pop %v3814
  %v3816 = vmul.f32 %v3804, 1.442695
  %v3817 = vpow.pop %v3816
  %v3818 = vmul.f32 %v3805, 1.442695
  %v3819 = vpow.pop %v3818
  %v3820 = vmul.f32 %v3806, 1.442695
  %v3821 = vpow.pop %v3820
  %v3822 = vmul.f32 %v3807, 1.442695
  %v3823 = vpow.pop %v3822
  %v3824 = vsel %vm2666, %v3809, 0.0
  %3825 = vadd.xlane.f32.xlu0 %v3824
  %v3826 = vpop.xlane.xlu0 %3825
  %v3827 = vsel %vm2666, %v3811, 0.0
  %3828 = vadd.xlane.f32.xlu0 %v3827
  %v3829 = vpop.xlane.xlu0 %3828
  %v3830 = vsel %vm2666, %v3813, 0.0
  %3831 = vadd.xlane.f32.xlu0 %v3830
  %v3832 = vpop.xlane.xlu0 %3831
  %v3833 = vsel %vm2666, %v3815, 0.0
  %3834 = vadd.xlane.f32.xlu0 %v3833
  %v3835 = vpop.xlane.xlu0 %3834
  %v3836 = vsel %vm2666, %v3817, 0.0
  %3837 = vadd.xlane.f32.xlu0 %v3836
  %v3838 = vpop.xlane.xlu0 %3837
  %v3839 = vsel %vm2666, %v3819, 0.0
  %3840 = vadd.xlane.f32.xlu0 %v3839
  %v3841 = vpop.xlane.xlu0 %3840
  %v3842 = vsel %vm2666, %v3821, 0.0
  %3843 = vadd.xlane.f32.xlu0 %v3842
  %v3844 = vpop.xlane.xlu0 %3843
  %v3845 = vsel %vm2666, %v3823, 0.0
  %3846 = vadd.xlane.f32.xlu0 %v3845
  %v3847 = vpop.xlane.xlu0 %3846
  %v3848 = vrcp.pop %v3826
  %v3849 = vrcp.pop %v3829
  %v3850 = vrcp.pop %v3832
  %v3851 = vrcp.pop %v3835
  %v3852 = vrcp.pop %v3838
  %v3853 = vrcp.pop %v3841
  %v3854 = vrcp.pop %v3844
  %v3855 = vrcp.pop %v3847
  %v3856 = vmul.f32 %v3809, %v3848
  %v3857 = vmul.f32 %v3811, %v3849
  %v3858 = vmul.f32 %v3813, %v3850
  %v3859 = vmul.f32 %v3815, %v3851
  %v3860 = vmul.f32 %v3817, %v3852
  %v3861 = vmul.f32 %v3819, %v3853
  %v3862 = vmul.f32 %v3821, %v3854
  %v3863 = vmul.f32 %v3823, %v3855
  %v3864 = vpack.c.bf16 %v3857, %v3856
  %v3865 = vpack.c.bf16 %v3859, %v3858
  %v3866 = vpack.c.bf16 %v3861, %v3860
  %v3867 = vpack.c.bf16 %v3863, %v3862
  %v3868 = vpack.c.bf16 %v2823, %v2822
  %v3869 = vpack.c.bf16 %v2825, %v2824
  %v3870 = vpack.c.bf16 %v2827, %v2826
  %v3871 = vpack.c.bf16 %v2829, %v2828
  %v3873 = vsel %vm2666, %v3864, 0
  %v3876 = vsel %vm2666, %v3865, 0
  %v3879 = vsel %vm2666, %v3866, 0
  %v3882 = vsel %vm2666, %v3867, 0
  %3884 = vmatpush.bf16.msra.mxu0 0
  %3885 = vmatpush.bf16.msra.mxu0 0
  %3886 = vmatpush.bf16.msra.mxu0 0
  %3887 = vmatpush.bf16.msra.mxu0 0
  %3888 = vmatpush.bf16.msra.mxu0 %v3871
  %3889 = vmatpush.bf16.msra.mxu0 %v3870
  %3890 = vmatpush.bf16.msra.mxu0 %v3869
  %3891 = vmatpush.bf16.msra.mxu0 %v3868
  %3892 = vmatmul.bf16.gmra.mxu0 %v3873
  %v3893 = vpop.f32.mrf.mxu0
  %v3894 = vadd.f32 0.0, %v3893
  %v3895 = vpop.f32.mrf.mxu0
  %v3896 = vadd.f32 0.0, %v3895
  %3897 = vmatmul.bf16.gmra.mxu0 %v3876
  %v3898 = vpop.f32.mrf.mxu0
  %v3899 = vadd.f32 0.0, %v3898
  %v3900 = vpop.f32.mrf.mxu0
  %v3901 = vadd.f32 0.0, %v3900
  %3902 = vmatmul.bf16.gmra.mxu0 %v3879
  %v3903 = vpop.f32.mrf.mxu0
  %v3904 = vadd.f32 0.0, %v3903
  %v3905 = vpop.f32.mrf.mxu0
  %v3906 = vadd.f32 0.0, %v3905
  %3907 = vmatmul.bf16.gmra.mxu0 %v3882
  %v3908 = vpop.f32.mrf.mxu0
  %v3909 = vadd.f32 0.0, %v3908
  %v3910 = vpop.f32.mrf.mxu0
  %v3911 = vadd.f32 0.0, %v3910
  %3912 = vdwg.mxu0
  %3913 = vst.msk [vmem:[#allocation6 + $0x40] sm:$0xff] %vm520, %v3894
  %3914 = vst.msk [vmem:[#allocation6 + $0x48] sm:$0xff] %vm520, %v3896
  %3915 = vst.msk [vmem:[#allocation6 + $0x50] sm:$0xff] %vm520, %v3899
  %3916 = vst.msk [vmem:[#allocation6 + $0x58] sm:$0xff] %vm520, %v3901
  %3917 = vst.msk [vmem:[#allocation6 + $0x60] sm:$0xff] %vm520, %v3904
  %3918 = vst.msk [vmem:[#allocation6 + $0x68] sm:$0xff] %vm520, %v3906
  %3919 = vst.msk [vmem:[#allocation6 + $0x70] sm:$0xff] %vm520, %v3909
  %3920 = vst.msk [vmem:[#allocation6 + $0x78] sm:$0xff] %vm520, %v3911
  %v3921 = vld [vmem:[#allocation6] sm:$0xff]
  %v3922 = vld [vmem:[#allocation6 + $0x8] sm:$0xff]
  %v3923 = vld [vmem:[#allocation6 + $0x10] sm:$0xff]
  %v3924 = vld [vmem:[#allocation6 + $0x18] sm:$0xff]
  %v3925 = vld [vmem:[#allocation6 + $0x20] sm:$0xff]
  %v3926 = vld [vmem:[#allocation6 + $0x28] sm:$0xff]
  %v3927 = vld [vmem:[#allocation6 + $0x30] sm:$0xff]
  %v3928 = vld [vmem:[#allocation6 + $0x38] sm:$0xff]
  %v3929 = vld [vmem:[#allocation6 + $0x40] sm:$0xff]
  %v3930 = vld [vmem:[#allocation6 + $0x48] sm:$0xff]
  %v3931 = vld [vmem:[#allocation6 + $0x50] sm:$0xff]
  %v3932 = vld [vmem:[#allocation6 + $0x58] sm:$0xff]
  %v3933 = vld [vmem:[#allocation6 + $0x60] sm:$0xff]
  %v3934 = vld [vmem:[#allocation6 + $0x68] sm:$0xff]
  %v3935 = vld [vmem:[#allocation6 + $0x70] sm:$0xff]
  %v3936 = vld [vmem:[#allocation6 + $0x78] sm:$0xff]
  %v3937 = vpack.c.bf16 %v3922, %v3921
  %v3938 = vpack.c.bf16 %v3924, %v3923
  %v3939 = vpack.c.bf16 %v3926, %v3925
  %v3940 = vpack.c.bf16 %v3928, %v3927
  %v3941 = vpack.c.bf16 %v3930, %v3929
  %v3942 = vpack.c.bf16 %v3932, %v3931
  %v3943 = vpack.c.bf16 %v3934, %v3933
  %v3944 = vpack.c.bf16 %v3936, %v3935
  %v3945 = vld [vmem:[%s9] sm:$0xff]
  %v3946 = vld [vmem:[%s9 + $0x8] sm:$0xff]
  %v3947 = vpack.c.bf16 %v3946, %v3945
  %v3949 = vsel %vm520, %v3937, 0
  %v3952 = vsel %vm520, %v3938, 0
  %v3955 = vsel %vm520, %v3939, 0
  %v3958 = vsel %vm520, %v3940, 0
  %v3961 = vsel %vm520, %v3941, 0
  %v3964 = vsel %vm520, %v3942, 0
  %v3967 = vsel %vm520, %v3943, 0
  %v3970 = vsel %vm520, %v3944, 0
  %3972 = vmatpush.bf16.msra.mxu0 0
  %3973 = vmatpush.bf16.msra.mxu0 0
  %3974 = vmatpush.bf16.msra.mxu0 0
  %3975 = vmatpush.bf16.msra.mxu0 0
  %3976 = vmatpush.bf16.msra.mxu0 0
  %3977 = vmatpush.bf16.msra.mxu0 0
  %3978 = vmatpush.bf16.msra.mxu0 0
  %3979 = vmatpush.bf16.msra.mxu0 %v3947
  %3980 = vmatmul.bf16.gmra.mxu0 %v3949
  %v3981 = vpop.f32.mrf.mxu0
  %v3982 = vadd.f32 0.0, %v3981
  %v3983 = vpop.f32.mrf.mxu0
  %v3984 = vadd.f32 0.0, %v3983
  %3985 = vmatmul.bf16.gmra.mxu0 %v3952
  %v3986 = vpop.f32.mrf.mxu0
  %v3987 = vadd.f32 0.0, %v3986
  %v3988 = vpop.f32.mrf.mxu0
  %v3989 = vadd.f32 0.0, %v3988
  %3990 = vmatmul.bf16.gmra.mxu0 %v3955
  %v3991 = vpop.f32.mrf.mxu0
  %v3992 = vadd.f32 0.0, %v3991
  %v3993 = vpop.f32.mrf.mxu0
  %v3994 = vadd.f32 0.0, %v3993
  %3995 = vmatmul.bf16.gmra.mxu0 %v3958
  %v3996 = vpop.f32.mrf.mxu0
  %v3997 = vadd.f32 0.0, %v3996
  %v3998 = vpop.f32.mrf.mxu0
  %v3999 = vadd.f32 0.0, %v3998
  %4000 = vmatmul.bf16.gmra.mxu0 %v3961
  %v4001 = vpop.f32.mrf.mxu0
  %v4002 = vadd.f32 0.0, %v4001
  %v4003 = vpop.f32.mrf.mxu0
  %v4004 = vadd.f32 0.0, %v4003
  %4005 = vmatmul.bf16.gmra.mxu0 %v3964
  %v4006 = vpop.f32.mrf.mxu0
  %v4007 = vadd.f32 0.0, %v4006
  %v4008 = vpop.f32.mrf.mxu0
  %v4009 = vadd.f32 0.0, %v4008
  %4010 = vmatmul.bf16.gmra.mxu0 %v3967
  %v4011 = vpop.f32.mrf.mxu0
  %v4012 = vadd.f32 0.0, %v4011
  %v4013 = vpop.f32.mrf.mxu0
  %v4014 = vadd.f32 0.0, %v4013
  %4015 = vmatmul.bf16.gmra.mxu0 %v3970
  %v4016 = vpop.f32.mrf.mxu0
  %v4017 = vadd.f32 0.0, %v4016
  %v4018 = vpop.f32.mrf.mxu0
  %v4019 = vadd.f32 0.0, %v4018
  %4020 = vdwg.mxu0
  %v4021 = vsel %vm44, %v3982, 0.0
  %v4022 = vsel %vm44, %v3984, 0.0
  %v4023 = vadd.f32 %v4021, %v4022
  %v4024 = vsel %vm44, %v3987, 0.0
  %v4025 = vadd.f32 %v4023, %v4024
  %v4026 = vsel %vm44, %v3989, 0.0
  %v4027 = vadd.f32 %v4025, %v4026
  %v4028 = vsel %vm44, %v3992, 0.0
  %v4029 = vadd.f32 %v4027, %v4028
  %v4030 = vsel %vm44, %v3994, 0.0
  %v4031 = vadd.f32 %v4029, %v4030
  %v4032 = vsel %vm44, %v3997, 0.0
  %v4033 = vadd.f32 %v4031, %v4032
  %v4034 = vsel %vm44, %v3999, 0.0
  %v4035 = vadd.f32 %v4033, %v4034
  %v4036 = vsel %vm44, %v4002, 0.0
  %v4037 = vadd.f32 %v4035, %v4036
  %v4038 = vsel %vm44, %v4004, 0.0
  %v4039 = vadd.f32 %v4037, %v4038
  %v4040 = vsel %vm44, %v4007, 0.0
  %v4041 = vadd.f32 %v4039, %v4040
  %v4042 = vsel %vm44, %v4009, 0.0
  %v4043 = vadd.f32 %v4041, %v4042
  %v4044 = vsel %vm44, %v4012, 0.0
  %v4045 = vadd.f32 %v4043, %v4044
  %v4046 = vsel %vm44, %v4014, 0.0
  %v4047 = vadd.f32 %v4045, %v4046
  %v4048 = vsel %vm44, %v4017, 0.0
  %v4049 = vadd.f32 %v4047, %v4048
  %v4050 = vsel %vm44, %v4019, 0.0
  %v4051 = vadd.f32 %v4049, %v4050
  %v4052 = vrot.slane %v4051, 4
  %v4053 = vadd.f32 %v4051, %v4052
  %v4054 = vrot.slane %v4053, 2
  %v4055 = vadd.f32 %v4053, %v4054
  %v4056 = vrot.slane %v4055, 1
  %v4057 = vadd.f32 %v4055, %v4056
  %v4058 = vmul.f32 %v4057, %v564
  %v4059 = vsub.f32 %v3982, %v4058
  %v4060 = vsub.f32 %v3984, %v4058
  %v4061 = vsub.f32 %v3987, %v4058
  %v4062 = vsub.f32 %v3989, %v4058
  %v4063 = vsub.f32 %v3992, %v4058
  %v4064 = vsub.f32 %v3994, %v4058
  %v4065 = vsub.f32 %v3997, %v4058
  %v4066 = vsub.f32 %v3999, %v4058
  %v4067 = vsub.f32 %v4002, %v4058
  %v4068 = vsub.f32 %v4004, %v4058
  %v4069 = vsub.f32 %v4007, %v4058
  %v4070 = vsub.f32 %v4009, %v4058
  %v4071 = vsub.f32 %v4012, %v4058
  %v4072 = vsub.f32 %v4014, %v4058
  %v4073 = vsub.f32 %v4017, %v4058
  %v4074 = vsub.f32 %v4019, %v4058
  %v4075 = vmul.f32 %v4059, %v4059
  %v4076 = vmul.f32 %v4060, %v4060
  %v4077 = vmul.f32 %v4061, %v4061
  %v4078 = vmul.f32 %v4062, %v4062
  %v4079 = vmul.f32 %v4063, %v4063
  %v4080 = vmul.f32 %v4064, %v4064
  %v4081 = vmul.f32 %v4065, %v4065
  %v4082 = vmul.f32 %v4066, %v4066
  %v4083 = vmul.f32 %v4067, %v4067
  %v4084 = vmul.f32 %v4068, %v4068
  %v4085 = vmul.f32 %v4069, %v4069
  %v4086 = vmul.f32 %v4070, %v4070
  %v4087 = vmul.f32 %v4071, %v4071
  %v4088 = vmul.f32 %v4072, %v4072
  %v4089 = vmul.f32 %v4073, %v4073
  %v4090 = vmul.f32 %v4074, %v4074
  %v4091 = vsel %vm44, %v4075, 0.0
  %v4092 = vsel %vm44, %v4076, 0.0
  %v4093 = vadd.f32 %v4091, %v4092
  %v4094 = vsel %vm44, %v4077, 0.0
  %v4095 = vadd.f32 %v4093, %v4094
  %v4096 = vsel %vm44, %v4078, 0.0
  %v4097 = vadd.f32 %v4095, %v4096
  %v4098 = vsel %vm44, %v4079, 0.0
  %v4099 = vadd.f32 %v4097, %v4098
  %v4100 = vsel %vm44, %v4080, 0.0
  %v4101 = vadd.f32 %v4099, %v4100
  %v4102 = vsel %vm44, %v4081, 0.0
  %v4103 = vadd.f32 %v4101, %v4102
  %v4104 = vsel %vm44, %v4082, 0.0
  %v4105 = vadd.f32 %v4103, %v4104
  %v4106 = vsel %vm44, %v4083, 0.0
  %v4107 = vadd.f32 %v4105, %v4106
  %v4108 = vsel %vm44, %v4084, 0.0
  %v4109 = vadd.f32 %v4107, %v4108
  %v4110 = vsel %vm44, %v4085, 0.0
  %v4111 = vadd.f32 %v4109, %v4110
  %v4112 = vsel %vm44, %v4086, 0.0
  %v4113 = vadd.f32 %v4111, %v4112
  %v4114 = vsel %vm44, %v4087, 0.0
  %v4115 = vadd.f32 %v4113, %v4114
  %v4116 = vsel %vm44, %v4088, 0.0
  %v4117 = vadd.f32 %v4115, %v4116
  %v4118 = vsel %vm44, %v4089, 0.0
  %v4119 = vadd.f32 %v4117, %v4118
  %v4120 = vsel %vm44, %v4090, 0.0
  %v4121 = vadd.f32 %v4119, %v4120
  %v4122 = vrot.slane %v4121, 4
  %v4123 = vadd.f32 %v4121, %v4122
  %v4124 = vrot.slane %v4123, 2
  %v4125 = vadd.f32 %v4123, %v4124
  %v4126 = vrot.slane %v4125, 1
  %v4127 = vadd.f32 %v4125, %v4126
  %v4128 = vmul.f32 %v4127, %v564
  %v4129 = vadd.f32 %v4128, 1e-05
  %v4130 = vrsqrt.pop %v4129
  %v4131 = vmul.f32 %v4130, %v4129
  %v4132 = vmul.f32 %v4131, %v4130
  %v4133 = vmul.f32 0.5, %v4132
  %v4134 = vsub.f32 1.5, %v4133
  %v4135 = vmul.f32 %v4130, %v4134
  %vm4136 = vweird.f32 %v4129
  %vm4137 = vweird.f32 %v4130
  %vm4138 = vmor %vm4136, %vm4137
  %v4139 = vsel %vm4138, %v4130, %v4135
  %v4140 = vmul.f32 %v4059, %v4139
  %v4141 = vmul.f32 %v4060, %v4139
  %v4142 = vmul.f32 %v4061, %v4139
  %v4143 = vmul.f32 %v4062, %v4139
  %v4144 = vmul.f32 %v4063, %v4139
  %v4145 = vmul.f32 %v4064, %v4139
  %v4146 = vmul.f32 %v4065, %v4139
  %v4147 = vmul.f32 %v4066, %v4139
  %v4148 = vmul.f32 %v4067, %v4139
  %v4149 = vmul.f32 %v4068, %v4139
  %v4150 = vmul.f32 %v4069, %v4139
  %v4151 = vmul.f32 %v4070, %v4139
  %v4152 = vmul.f32 %v4071, %v4139
  %v4153 = vmul.f32 %v4072, %v4139
  %v4154 = vmul.f32 %v4073, %v4139
  %v4155 = vmul.f32 %v4074, %v4139
  %v4156 = vmax.f32 %v4140, 0.0
  %v4157 = vmax.f32 %v4141, 0.0
  %v4158 = vmax.f32 %v4142, 0.0
  %v4159 = vmax.f32 %v4143, 0.0
  %v4160 = vmax.f32 %v4144, 0.0
  %v4161 = vmax.f32 %v4145, 0.0
  %v4162 = vmax.f32 %v4146, 0.0
  %v4163 = vmax.f32 %v4147, 0.0
  %v4164 = vmax.f32 %v4148, 0.0
  %v4165 = vmax.f32 %v4149, 0.0
  %v4166 = vmax.f32 %v4150, 0.0
  %v4167 = vmax.f32 %v4151, 0.0
  %v4168 = vmax.f32 %v4152, 0.0
  %v4169 = vmax.f32 %v4153, 0.0
  %v4170 = vmax.f32 %v4154, 0.0
  %v4171 = vmax.f32 %v4155, 0.0
  %4172 = vxpose.xlu0.b32.start [1/16] %v4156, 128
  %4173 = vxpose.xlu0.b32.cont [2/16] %v4157, 128
  %4174 = vxpose.xlu0.b32.cont [3/16] %v4158, 128
  %4175 = vxpose.xlu0.b32.cont [4/16] %v4159, 128
  %4176 = vxpose.xlu0.b32.cont [5/16] %v4160, 128
  %4177 = vxpose.xlu0.b32.cont [6/16] %v4161, 128
  %4178 = vxpose.xlu0.b32.cont [7/16] %v4162, 128
  %4179 = vxpose.xlu0.b32.cont [8/16] %v4163, 128
  %4180 = vxpose.xlu0.b32.cont [9/16] %v4164, 128
  %4181 = vxpose.xlu0.b32.cont [10/16] %v4165, 128
  %4182 = vxpose.xlu0.b32.cont [11/16] %v4166, 128
  %4183 = vxpose.xlu0.b32.cont [12/16] %v4167, 128
  %4184 = vxpose.xlu0.b32.cont [13/16] %v4168, 128
  %4185 = vxpose.xlu0.b32.cont [14/16] %v4169, 128
  %4186 = vxpose.xlu0.b32.cont [15/16] %v4170, 128
  %4187 = vxpose.xlu0.b32.end [16/16] %v4171, 128
  %v4188 = vpop.trf.xlu0
  %v4189 = vpop.trf.xlu0
  %v4190 = vpop.trf.xlu0
  %v4191 = vpop.trf.xlu0
  %v4192 = vpop.trf.xlu0
  %v4193 = vpop.trf.xlu0
  %v4194 = vpop.trf.xlu0
  %v4195 = vpop.trf.xlu0
  %v4196 = vpop.trf.xlu0
  %v4197 = vpop.trf.xlu0
  %v4198 = vpop.trf.xlu0
  %v4199 = vpop.trf.xlu0
  %v4200 = vpop.trf.xlu0
  %v4201 = vpop.trf.xlu0
  %v4202 = vpop.trf.xlu0
  %v4203 = vpop.trf.xlu0
  %4204 = vst.msk [vmem:[%s10] sm:$0xff] %vm2666, %v4188
  %4205 = vst.msk [vmem:[%s10 + $0x8] sm:$0xff] %vm2666, %v4189
  %4206 = vst.msk [vmem:[%s10 + $0x10] sm:$0xff] %vm2666, %v4190
  %4207 = vst.msk [vmem:[%s10 + $0x18] sm:$0xff] %vm2666, %v4191
  %4212 = vrot.lane.b32.xlu0 %v4188, 64
  %v4213 = vpop.permute.xlu0 %4212
  %4214 = vrot.lane.b32.xlu0 %v4189, 64
  %v4215 = vpop.permute.xlu0 %4214
  %4216 = vrot.lane.b32.xlu0 %v4190, 64
  %v4217 = vpop.permute.xlu0 %4216
  %4218 = vrot.lane.b32.xlu0 %v4191, 64
  %v4219 = vpop.permute.xlu0 %4218
  %s4224 = scalar_lea.vmem %s10, 32
  %4225 = vst.msk [vmem:[%s4224] sm:$0xff] %vm2666, %v4213
  %4226 = vst.msk [vmem:[%s4224 + $0x8] sm:$0xff] %vm2666, %v4215
  %4227 = vst.msk [vmem:[%s4224 + $0x10] sm:$0xff] %vm2666, %v4217
  %4228 = vst.msk [vmem:[%s4224 + $0x18] sm:$0xff] %vm2666, %v4219
  // Predicated region
  $region42: #{self_attention_block2.1} parent=0 // pred_check
    _
  $region43: #{self_attention_block2.1} parent=0 // pred_check_branch
    %4230 = sbr.rel (0) target = $region45
  $region44: #{self_attention_block2.1} parent=0 // pred_region
    _
  $region45: #{self_attention_block2.1} parent=0 // pred_fallthru
    _
  // Predicated region
  $region46: #{self_attention_block2.1} parent=0 // pred_check
    _
  $region47: #{self_attention_block2.1} parent=0 // pred_check_branch
    %4232 = sbr.rel (0) target = $region49
  $region48: #{self_attention_block2.1} parent=0 // pred_region
    _
  $region49: #{self_attention_block2.1} parent=0 // pred_fallthru
    _

</llo_original>
